<compile_context>
chip_gen: v5e
topology: v5e:2x2
jax: 0.10.0
libtpu: 0.0.40
codegen_flags: <defaults>
</compile_context>

<pallas_src>
import functools

import numpy as np
import jax
import jax.numpy as jnp
from jax.experimental import pallas as pl
from jax.experimental.pallas import tpu as pltpu

# ----------------------------- problem sizes ------------------------------
TABLE_H = 7                              # tableStatesHeight
TABLE_W = 6                              # tableStatesWidth
W_PAD = 8                                # width padded 6 -> 8 (zero guard columns)
N_SPATIAL = TABLE_H * TABLE_W            # 42
EXTRA_SIZE = 4                           # lives(2) ++ order(2)
ACTION_MASK = 7                          # actionMaskSize
STATE_LEN = 2 * N_SPATIAL + EXTRA_SIZE   # 88
FC1_IN = 64 * N_SPATIAL + EXTRA_SIZE     # 2692
OUT_PAD = 128                            # lane-dense padded output width
X_LANES = 2 * W_PAD + EXTRA_SIZE         # 20: lanes 0:16 conv1 input (w*2+c), 16:20 extras (h==0 band)
CB_MAX = 128                             # max padded batch rows per grid step (VMEM-sized for v7x/v5e)


# --------------------------- fused forward kernel --------------------------
def _fused_forward_kernel(x_ref,
                          w1_ref, b1_ref, w2_ref, b2_ref, w3_ref, b3_ref,
                          wf1_ref, wf1e_ref, bf1_ref,
                          wf2_ref, bf2_ref, wf3_ref, bf3_ref,
                          out_ref, buf_a, buf_b, *, cb):
    """Whole forward pass for one batch chunk of cb padded samples."""
    g = cb                 # one guard h-band (h = -1 / h = 7) above and below
    m = TABLE_H * cb       # valid activation rows (h-major, batch-minor)
    f32 = jnp.float32

    def conv3x3_relu(src_ref, kin, w_ref, b_ref):
        # 3x3 "same" conv = 3 row-shifted matmuls against block-banded weights
        # (w and channels packed on the lane axis -> full-K lane-dense MXU work,
        #  no per-tap staging copies and no validity masks).
        acc = jnp.dot(src_ref[0:m, 0:kin], w_ref[0], preferred_element_type=f32)
        acc = acc + jnp.dot(src_ref[g:g + m, 0:kin], w_ref[1],
                            preferred_element_type=f32)
        acc = acc + jnp.dot(src_ref[2 * g:2 * g + m, 0:kin], w_ref[2],
                            preferred_element_type=f32)
        return jnp.maximum(acc + b_ref[...], 0.0)

    # Zero only the guard-row bands actually read by the shifted conv reads.
    buf_a[0:g, 0:128] = jnp.zeros((g, 128), buf_a.dtype)
    buf_a[8 * g:9 * g, 0:128] = jnp.zeros((g, 128), buf_a.dtype)
    buf_b[0:g, :] = jnp.zeros((g, 256), buf_b.dtype)
    buf_b[8 * g:9 * g, :] = jnp.zeros((g, 256), buf_b.dtype)

    # conv1 (2->16), conv2 (16->32), conv3 (32->64); bf16 operands, f32 accum.
    buf_a[g:g + m, 0:128] = conv3x3_relu(x_ref, 16, w1_ref, b1_ref).astype(buf_a.dtype)
    buf_b[g:g + m, :] = conv3x3_relu(buf_a, 128, w2_ref, b2_ref).astype(buf_b.dtype)
    buf_a[g:g + m, :] = conv3x3_relu(buf_b, 256, w3_ref, b3_ref).astype(buf_a.dtype)

    # fc1: contract over (h, w, c).  Each h-slab is a lane-dense (cb, 512)
    # block; padded w columns carry zero weight rows, so no masking is needed.
    # The 4 extra features live at lanes 16:20 of the h==0 band of x.
    acc = jnp.dot(x_ref[g:g + cb, 16:20], wf1e_ref[...], preferred_element_type=f32)
    for h in range(TABLE_H):
        acc = acc + jnp.dot(buf_a[g + h * cb:g + (h + 1) * cb, :], wf1_ref[h],
                            preferred_element_type=f32)
    h1 = jnp.maximum(acc + bf1_ref[...], 0.0).astype(jnp.bfloat16)        # (cb, 128)

    h2 = jnp.maximum(
        jnp.dot(h1, wf2_ref[...], preferred_element_type=f32) + bf2_ref[...], 0.0
    ).astype(jnp.bfloat16)                                                # (cb, 64)

    out_ref[...] = (jnp.dot(h2, wf3_ref[...], preferred_element_type=f32)
                    + bf3_ref[...])                                       # (cb, 128) lane-dense f32


# ------------------------------- wrapper -----------------------------------
def _round_up(n, k):
    return ((n + k - 1) // k) * k


def _resident_spec(arr):
    """Whole-array block with a constant index_map -> fetched once, VMEM resident."""
    zeros = (0,) * arr.ndim
    return pl.BlockSpec(arr.shape, lambda i, _z=zeros: _z)


def forward(params, states):
    """states: (B, 88) f32 -> (B, ACTION_MASK) f32 (same semantics as PyTorch)."""
    b = states.shape[0]
    assert states.shape[1] == STATE_LEN
    cb = min(CB_MAX, _round_up(b, 16))           # padded batch rows per grid step
    n_chunks = -(-b // cb)
    bp = n_chunks * cb

    # decode_state, batched (a few tiny XLA ops) + repack into the kernel layout:
    # rows = (chunk, guard/h, batch), lanes = w*2 + c (w < 6), 12:16 zero, 16:20 extras.
    s = jnp.pad(states, ((0, bp - b), (0, 0)))
    table = s[:, :2 * N_SPATIAL].reshape(bp, 2, TABLE_H, TABLE_W)          # NCHW
    extras = s[:, 2 * N_SPATIAL:STATE_LEN]                                 # (bp, 4)

    x = jnp.transpose(table, (0, 2, 3, 1)).reshape(bp, TABLE_H, 2 * TABLE_W)
    x = jnp.pad(x, ((0, 0), (0, 0), (0, X_LANES - 2 * TABLE_W)))
    x = x.at[:, 0, 16:20].set(extras)                                      # stash extras in the h==0 band
    x = x.reshape(n_chunks, cb, TABLE_H, X_LANES).transpose(0, 2, 1, 3)    # (chunk, h, b, lane)
    x = jnp.pad(x, ((0, 0), (1, 1), (0, 0), (0, 0)))                       # zero guard h-rows
    x = x.reshape(n_chunks * 9 * cb, X_LANES).astype(jnp.bfloat16)

    weights = [params[k] for k in (
        "conv1_w", "conv1_b", "conv2_w", "conv2_b", "conv3_w", "conv3_b",
        "fc1_w_spatial", "fc1_w_extra", "fc1_b",
        "fc2_w", "fc2_b", "fc3_w", "fc3_b")]

    grid_spec = pltpu.PrefetchScalarGridSpec(
        num_scalar_prefetch=0,
        grid=(n_chunks,),
        in_specs=[pl.BlockSpec((9 * cb, X_LANES), lambda i: (i, 0))]
                 + [_resident_spec(w) for w in weights],
        out_specs=pl.BlockSpec((cb, OUT_PAD), lambda i: (i, 0)),
        scratch_shapes=[pltpu.VMEM((9 * cb, 512), jnp.bfloat16),
                        pltpu.VMEM((9 * cb, 256), jnp.bfloat16)])

    out = pl.pallas_call(
        functools.partial(_fused_forward_kernel, cb=cb),
        out_shape=jax.ShapeDtypeStruct((bp, OUT_PAD), jnp.float32),
        grid_spec=grid_spec,
        compiler_params=pltpu.CompilerParams(
            dimension_semantics=("parallel",),
            vmem_limit_bytes=32 * 1024 * 1024),
    )(x, *weights)
    return out[:b, :ACTION_MASK]


# ------------------------------ parameters ---------------------------------
def init_params(key):
    """PyTorch-layout parameters (Conv2d OIHW weights, Linear stored as (in, out))."""
    ks = jax.random.split(key, 12)

    def rnd(k, shape, fan_in):
        return jax.random.normal(k, shape, dtype=jnp.float32) / np.sqrt(fan_in)

    return {
        "conv1_w": rnd(ks[0], (16, 2, 3, 3), 18),   "conv1_b": rnd(ks[1], (16,), 18),
        "conv2_w": rnd(ks[2], (32, 16, 3, 3), 144), "conv2_b": rnd(ks[3], (32,), 144),
        "conv3_w": rnd(ks[4], (64, 32, 3, 3), 288), "conv3_b": rnd(ks[5], (64,), 288),
        "fc1_w": rnd(ks[6], (FC1_IN, 128), FC1_IN), "fc1_b": rnd(ks[7], (128,), FC1_IN),
        "fc2_w": rnd(ks[8], (128, 64), 128),        "fc2_b": rnd(ks[9], (64,), 128),
        "fc3_w": rnd(ks[10], (64, ACTION_MASK), 64),
        "fc3_b": rnd(ks[11], (ACTION_MASK,), 64),
    }


def prepare_params(p):
    """One-time repack of PyTorch-layout params into the fused kernel's layout."""
    def conv_big(w, bias):
        # (Cout, Cin, 3, 3) -> per-kh block-banded (8*Cin, 8*Cout) weights.
        w = np.asarray(w); bias = np.asarray(bias)
        cout, cin = w.shape[0], w.shape[1]
        wb = np.zeros((3, W_PAD * cin, W_PAD * cout), np.float32)
        for kh in range(3):
            for kw in range(3):
                for wo in range(TABLE_W):
                    wi = wo + kw - 1
                    if 0 <= wi < TABLE_W:
                        wb[kh, wi * cin:(wi + 1) * cin,
                           wo * cout:(wo + 1) * cout] = w[:, :, kh, kw].T
        bb = np.tile(bias, W_PAD)[None, :]
        return jnp.asarray(wb, jnp.bfloat16), jnp.asarray(bb, jnp.float32)

    w1, b1 = conv_big(p["conv1_w"], p["conv1_b"])
    w2, b2 = conv_big(p["conv2_w"], p["conv2_b"])
    w3, b3 = conv_big(p["conv3_w"], p["conv3_b"])

    # fc1 rows 0..2687 follow PyTorch's NCHW flatten (index c*42 + h*6 + w);
    # regroup into one (512, 128) slab per h with lane order w*64 + c and
    # zero rows for the padded w in {6, 7}.
    fc1 = np.asarray(p["fc1_w"])                                   # (2692, 128)
    sp = fc1[:64 * N_SPATIAL].reshape(64, TABLE_H, TABLE_W, 128)
    w1s = np.zeros((TABLE_H, W_PAD * 64, 128), np.float32)
    for h in range(TABLE_H):
        w1s[h, :TABLE_W * 64, :] = np.transpose(sp[:, h], (1, 0, 2)).reshape(TABLE_W * 64, 128)

    fc3_w = np.zeros((64, OUT_PAD), np.float32)
    fc3_w[:, :ACTION_MASK] = np.asarray(p["fc3_w"])
    fc3_b = np.zeros((1, OUT_PAD), np.float32)
    fc3_b[0, :ACTION_MASK] = np.asarray(p["fc3_b"])

    return {
        "conv1_w": w1, "conv1_b": b1,
        "conv2_w": w2, "conv2_b": b2,
        "conv3_w": w3, "conv3_b": b3,
        "fc1_w_spatial": jnp.asarray(w1s, jnp.bfloat16),
        "fc1_w_extra": jnp.asarray(fc1[64 * N_SPATIAL:], jnp.bfloat16),     # (4, 128)
        "fc1_b": jnp.asarray(np.asarray(p["fc1_b"])[None, :], jnp.float32),
        "fc2_w": jnp.asarray(p["fc2_w"], jnp.bfloat16),
        "fc2_b": jnp.asarray(np.asarray(p["fc2_b"])[None, :], jnp.float32),
        "fc3_w": jnp.asarray(fc3_w, jnp.bfloat16),
        "fc3_b": jnp.asarray(fc3_b, jnp.float32),
    }


# ------------------------- pure-JAX reference (test) ------------------------
def reference_forward(params, states):
    b = states.shape[0]
    x = states[:, :2 * N_SPATIAL].reshape(b, 2, TABLE_H, TABLE_W)
    extras = states[:, 2 * N_SPATIAL:STATE_LEN]
    for i in (1, 2, 3):
        w, bias = params[f"conv{i}_w"], params[f"conv{i}_b"]
        x = jax.lax.conv_general_dilated(
            x, w, window_strides=(1, 1), padding=((1, 1), (1, 1)),
            dimension_numbers=("NCHW", "OIHW", "NCHW"))
        x = jnp.maximum(x + bias[None, :, None, None], 0.0)
    x = x.reshape(b, 64 * N_SPATIAL)                 # NCHW flatten, like nn.Flatten
    x = jnp.concatenate([x, extras], axis=1)
    x = jnp.maximum(x @ params["fc1_w"] + params["fc1_b"], 0.0)
    x = jnp.maximum(x @ params["fc2_w"] + params["fc2_b"], 0.0)
    return x @ params["fc3_w"] + params["fc3_b"]


# ---------------------------------- main ------------------------------------
if __name__ == "__main__":
    key = jax.random.PRNGKey(0)
    k_params, k_states = jax.random.split(key)

    torch_layout_params = init_params(k_params)
    params = prepare_params(torch_layout_params)     # one-time weight repack

    batch = 2
    states = jax.random.normal(k_states, (batch, STATE_LEN), dtype=jnp.float32)

    out = jax.jit(forward)(params, states)
    out = jax.block_until_ready(out)

    assert out.shape == (batch, ACTION_MASK), out.shape
    assert out.dtype == jnp.float32

    ref = reference_forward(torch_layout_params, states)
    max_err = float(jnp.max(jnp.abs(out - ref)))
    assert jnp.allclose(out, ref, rtol=5e-2, atol=5e-2), f"max abs err {max_err}"

    print("KERNEL_OK")
</pallas_src>

<mosaic_0001>
module attributes {stable_mosaic.version = 11 : i64} {
  func.func @_fused_forward_kernel(%arg0: i32, %arg1: memref<144x20xbf16, #tpu.memory_space<vmem>>, %arg2: memref<3x16x128xbf16, #tpu.memory_space<vmem>>, %arg3: memref<1x128xf32, #tpu.memory_space<vmem>>, %arg4: memref<3x128x256xbf16, #tpu.memory_space<vmem>>, %arg5: memref<1x256xf32, #tpu.memory_space<vmem>>, %arg6: memref<3x256x512xbf16, #tpu.memory_space<vmem>>, %arg7: memref<1x512xf32, #tpu.memory_space<vmem>>, %arg8: memref<7x512x128xbf16, #tpu.memory_space<vmem>>, %arg9: memref<4x128xbf16, #tpu.memory_space<vmem>>, %arg10: memref<1x128xf32, #tpu.memory_space<vmem>>, %arg11: memref<128x64xbf16, #tpu.memory_space<vmem>>, %arg12: memref<1x64xf32, #tpu.memory_space<vmem>>, %arg13: memref<64x128xbf16, #tpu.memory_space<vmem>>, %arg14: memref<1x128xf32, #tpu.memory_space<vmem>>, %arg15: memref<16x128xf32, #tpu.memory_space<vmem>>, %arg16: memref<144x512xbf16, #tpu.memory_space<vmem>>, %arg17: memref<144x256xbf16, #tpu.memory_space<vmem>>) attributes {dimension_semantics = [#tpu.dimension_semantics<parallel>], iteration_bounds = array<i64: 1>, scalar_prefetch = 0 : i64, scratch_operands = 2 : i64, tpu.core_type = #tpu.core_type<tc>, window_params = [{transform_indices = @transform_0, window_bounds = array<i64: 144, 20>}, {pipeline_mode = #tpu.pipeline_mode<synchronous>, transform_indices = @transform_1, window_bounds = array<i64: 3, 16, 128>}, {pipeline_mode = #tpu.pipeline_mode<synchronous>, transform_indices = @transform_2, window_bounds = array<i64: 1, 128>}, {pipeline_mode = #tpu.pipeline_mode<synchronous>, transform_indices = @transform_3, window_bounds = array<i64: 3, 128, 256>}, {pipeline_mode = #tpu.pipeline_mode<synchronous>, transform_indices = @transform_4, window_bounds = array<i64: 1, 256>}, {pipeline_mode = #tpu.pipeline_mode<synchronous>, transform_indices = @transform_5, window_bounds = array<i64: 3, 256, 512>}, {pipeline_mode = #tpu.pipeline_mode<synchronous>, transform_indices = @transform_6, window_bounds = array<i64: 1, 512>}, {pipeline_mode = #tpu.pipeline_mode<synchronous>, transform_indices = @transform_7, window_bounds = array<i64: 7, 512, 128>}, {pipeline_mode = #tpu.pipeline_mode<synchronous>, transform_indices = @transform_8, window_bounds = array<i64: 4, 128>}, {pipeline_mode = #tpu.pipeline_mode<synchronous>, transform_indices = @transform_9, window_bounds = array<i64: 1, 128>}, {pipeline_mode = #tpu.pipeline_mode<synchronous>, transform_indices = @transform_10, window_bounds = array<i64: 128, 64>}, {pipeline_mode = #tpu.pipeline_mode<synchronous>, transform_indices = @transform_11, window_bounds = array<i64: 1, 64>}, {pipeline_mode = #tpu.pipeline_mode<synchronous>, transform_indices = @transform_12, window_bounds = array<i64: 64, 128>}, {pipeline_mode = #tpu.pipeline_mode<synchronous>, transform_indices = @transform_13, window_bounds = array<i64: 1, 128>}, {transform_indices = @transform_14, window_bounds = array<i64: 16, 128>}]} {
    %cst = arith.constant 0.000000e+00 : bf16
    %0 = vector.broadcast %cst : bf16 to vector<16x128xbf16>
    %c0 = arith.constant 0 : index
    %c0_0 = arith.constant 0 : index
    %1 = vector.load %arg16[%c0, %c0_0] : memref<144x512xbf16, #tpu.memory_space<vmem>>, vector<16x128xbf16>
    tpu.vector_store %arg16[%c0, %c0_0], %0 {strides = array<i32>} : memref<144x512xbf16, #tpu.memory_space<vmem>>, vector<16x128xbf16>,
    %cst_1 = arith.constant 0.000000e+00 : bf16
    %2 = vector.broadcast %cst_1 : bf16 to vector<16x128xbf16>
    %c128 = arith.constant 128 : index
    %c0_2 = arith.constant 0 : index
    %3 = vector.load %arg16[%c128, %c0_2] : memref<144x512xbf16, #tpu.memory_space<vmem>>, vector<16x128xbf16>
    tpu.vector_store %arg16[%c128, %c0_2], %2 {strides = array<i32>} : memref<144x512xbf16, #tpu.memory_space<vmem>>, vector<16x128xbf16>,
    %cst_3 = arith.constant 0.000000e+00 : bf16
    %4 = vector.broadcast %cst_3 : bf16 to vector<16x256xbf16>
    %c0_4 = arith.constant 0 : index
    %c0_5 = arith.constant 0 : index
    %5 = vector.load %arg17[%c0_4, %c0_5] : memref<144x256xbf16, #tpu.memory_space<vmem>>, vector<16x256xbf16>
    tpu.vector_store %arg17[%c0_4, %c0_5], %4 {strides = array<i32>} : memref<144x256xbf16, #tpu.memory_space<vmem>>, vector<16x256xbf16>,
    %cst_6 = arith.constant 0.000000e+00 : bf16
    %6 = vector.broadcast %cst_6 : bf16 to vector<16x256xbf16>
    %c128_7 = arith.constant 128 : index
    %c0_8 = arith.constant 0 : index
    %7 = vector.load %arg17[%c128_7, %c0_8] : memref<144x256xbf16, #tpu.memory_space<vmem>>, vector<16x256xbf16>
    tpu.vector_store %arg17[%c128_7, %c0_8], %6 {strides = array<i32>} : memref<144x256xbf16, #tpu.memory_space<vmem>>, vector<16x256xbf16>,
    %c0_9 = arith.constant 0 : index
    %c0_10 = arith.constant 0 : index
    %8 = vector.load %arg1[%c0_9, %c0_10] : memref<144x20xbf16, #tpu.memory_space<vmem>>, vector<112x16xbf16>
    %c0_11 = arith.constant 0 : index
    %c0_12 = arith.constant 0 : index
    %c0_13 = arith.constant 0 : index
    %9 = vector.load %arg2[%c0_11, %c0_12, %c0_13] : memref<3x16x128xbf16, #tpu.memory_space<vmem>>, vector<1x16x128xbf16>
    %10 = vector.shape_cast %9 : vector<1x16x128xbf16> to vector<16x128xbf16>
    %cst_14 = arith.constant dense<0.000000e+00> : vector<112x128xf32>
    %11 = tpu.matmul %8, %10, %cst_14 {dimension_numbers = #tpu.dot_dimension_numbers<[1], [0], [0], [1], [0, 0, 1, 1], [], []>} : vector<112x16xbf16>, vector<16x128xbf16>, vector<112x128xf32> -> vector<112x128xf32>
    %c16 = arith.constant 16 : index
    %c0_15 = arith.constant 0 : index
    %12 = vector.load %arg1[%c16, %c0_15] : memref<144x20xbf16, #tpu.memory_space<vmem>>, vector<112x16xbf16>
    %c1 = arith.constant 1 : index
    %c0_16 = arith.constant 0 : index
    %c0_17 = arith.constant 0 : index
    %13 = vector.load %arg2[%c1, %c0_16, %c0_17] : memref<3x16x128xbf16, #tpu.memory_space<vmem>>, vector<1x16x128xbf16>
    %14 = vector.shape_cast %13 : vector<1x16x128xbf16> to vector<16x128xbf16>
    %cst_18 = arith.constant dense<0.000000e+00> : vector<112x128xf32>
    %15 = tpu.matmul %12, %14, %cst_18 {dimension_numbers = #tpu.dot_dimension_numbers<[1], [0], [0], [1], [0, 0, 1, 1], [], []>} : vector<112x16xbf16>, vector<16x128xbf16>, vector<112x128xf32> -> vector<112x128xf32>
    %16 = arith.addf %11, %15 : vector<112x128xf32>
    %c32 = arith.constant 32 : index
    %c0_19 = arith.constant 0 : index
    %17 = vector.load %arg1[%c32, %c0_19] : memref<144x20xbf16, #tpu.memory_space<vmem>>, vector<112x16xbf16>
    %c2 = arith.constant 2 : index
    %c0_20 = arith.constant 0 : index
    %c0_21 = arith.constant 0 : index
    %18 = vector.load %arg2[%c2, %c0_20, %c0_21] : memref<3x16x128xbf16, #tpu.memory_space<vmem>>, vector<1x16x128xbf16>
    %19 = vector.shape_cast %18 : vector<1x16x128xbf16> to vector<16x128xbf16>
    %cst_22 = arith.constant dense<0.000000e+00> : vector<112x128xf32>
    %20 = tpu.matmul %17, %19, %cst_22 {dimension_numbers = #tpu.dot_dimension_numbers<[1], [0], [0], [1], [0, 0, 1, 1], [], []>} : vector<112x16xbf16>, vector<16x128xbf16>, vector<112x128xf32> -> vector<112x128xf32>
    %21 = arith.addf %16, %20 : vector<112x128xf32>
    %c0_23 = arith.constant 0 : index
    %c0_24 = arith.constant 0 : index
    %22 = vector.load %arg3[%c0_23, %c0_24] : memref<1x128xf32, #tpu.memory_space<vmem>>, vector<1x128xf32>
    %23 = vector.broadcast %22 : vector<1x128xf32> to vector<112x128xf32>
    %24 = arith.addf %21, %23 : vector<112x128xf32>
    %cst_25 = arith.constant 0.000000e+00 : f32
    %25 = vector.broadcast %cst_25 : f32 to vector<112x128xf32>
    %26 = arith.maximumf %24, %25 : vector<112x128xf32>
    %27 = arith.truncf %26 : vector<112x128xf32> to vector<112x128xbf16>
    %c16_26 = arith.constant 16 : index
    %c0_27 = arith.constant 0 : index
    %28 = vector.load %arg16[%c16_26, %c0_27] : memref<144x512xbf16, #tpu.memory_space<vmem>>, vector<112x128xbf16>
    tpu.vector_store %arg16[%c16_26, %c0_27], %27 {strides = array<i32>} : memref<144x512xbf16, #tpu.memory_space<vmem>>, vector<112x128xbf16>,
    %c0_28 = arith.constant 0 : index
    %c0_29 = arith.constant 0 : index
    %29 = vector.load %arg16[%c0_28, %c0_29] : memref<144x512xbf16, #tpu.memory_space<vmem>>, vector<112x128xbf16>
    %c0_30 = arith.constant 0 : index
    %c0_31 = arith.constant 0 : index
    %c0_32 = arith.constant 0 : index
    %30 = vector.load %arg4[%c0_30, %c0_31, %c0_32] : memref<3x128x256xbf16, #tpu.memory_space<vmem>>, vector<1x128x256xbf16>
    %31 = vector.shape_cast %30 : vector<1x128x256xbf16> to vector<128x256xbf16>
    %cst_33 = arith.constant dense<0.000000e+00> : vector<112x256xf32>
    %32 = tpu.matmul %29, %31, %cst_33 {dimension_numbers = #tpu.dot_dimension_numbers<[1], [0], [0], [1], [0, 0, 1, 1], [], []>} : vector<112x128xbf16>, vector<128x256xbf16>, vector<112x256xf32> -> vector<112x256xf32>
    %c16_34 = arith.constant 16 : index
    %c0_35 = arith.constant 0 : index
    %33 = vector.load %arg16[%c16_34, %c0_35] : memref<144x512xbf16, #tpu.memory_space<vmem>>, vector<112x128xbf16>
    %c1_36 = arith.constant 1 : index
    %c0_37 = arith.constant 0 : index
    %c0_38 = arith.constant 0 : index
    %34 = vector.load %arg4[%c1_36, %c0_37, %c0_38] : memref<3x128x256xbf16, #tpu.memory_space<vmem>>, vector<1x128x256xbf16>
    %35 = vector.shape_cast %34 : vector<1x128x256xbf16> to vector<128x256xbf16>
    %cst_39 = arith.constant dense<0.000000e+00> : vector<112x256xf32>
    %36 = tpu.matmul %33, %35, %cst_39 {dimension_numbers = #tpu.dot_dimension_numbers<[1], [0], [0], [1], [0, 0, 1, 1], [], []>} : vector<112x128xbf16>, vector<128x256xbf16>, vector<112x256xf32> -> vector<112x256xf32>
    %37 = arith.addf %32, %36 : vector<112x256xf32>
    %c32_40 = arith.constant 32 : index
    %c0_41 = arith.constant 0 : index
    %38 = vector.load %arg16[%c32_40, %c0_41] : memref<144x512xbf16, #tpu.memory_space<vmem>>, vector<112x128xbf16>
    %c2_42 = arith.constant 2 : index
    %c0_43 = arith.constant 0 : index
    %c0_44 = arith.constant 0 : index
    %39 = vector.load %arg4[%c2_42, %c0_43, %c0_44] : memref<3x128x256xbf16, #tpu.memory_space<vmem>>, vector<1x128x256xbf16>
    %40 = vector.shape_cast %39 : vector<1x128x256xbf16> to vector<128x256xbf16>
    %cst_45 = arith.constant dense<0.000000e+00> : vector<112x256xf32>
    %41 = tpu.matmul %38, %40, %cst_45 {dimension_numbers = #tpu.dot_dimension_numbers<[1], [0], [0], [1], [0, 0, 1, 1], [], []>} : vector<112x128xbf16>, vector<128x256xbf16>, vector<112x256xf32> -> vector<112x256xf32>
    %42 = arith.addf %37, %41 : vector<112x256xf32>
    %c0_46 = arith.constant 0 : index
    %c0_47 = arith.constant 0 : index
    %43 = vector.load %arg5[%c0_46, %c0_47] : memref<1x256xf32, #tpu.memory_space<vmem>>, vector<1x256xf32>
    %44 = vector.broadcast %43 : vector<1x256xf32> to vector<112x256xf32>
    %45 = arith.addf %42, %44 : vector<112x256xf32>
    %cst_48 = arith.constant 0.000000e+00 : f32
    %46 = vector.broadcast %cst_48 : f32 to vector<112x256xf32>
    %47 = arith.maximumf %45, %46 : vector<112x256xf32>
    %48 = arith.truncf %47 : vector<112x256xf32> to vector<112x256xbf16>
    %c16_49 = arith.constant 16 : index
    %c0_50 = arith.constant 0 : index
    %49 = vector.load %arg17[%c16_49, %c0_50] : memref<144x256xbf16, #tpu.memory_space<vmem>>, vector<112x256xbf16>
    tpu.vector_store %arg17[%c16_49, %c0_50], %48 {strides = array<i32>} : memref<144x256xbf16, #tpu.memory_space<vmem>>, vector<112x256xbf16>,
    %c0_51 = arith.constant 0 : index
    %c0_52 = arith.constant 0 : index
    %50 = vector.load %arg17[%c0_51, %c0_52] : memref<144x256xbf16, #tpu.memory_space<vmem>>, vector<112x256xbf16>
    %c0_53 = arith.constant 0 : index
    %c0_54 = arith.constant 0 : index
    %c0_55 = arith.constant 0 : index
    %51 = vector.load %arg6[%c0_53, %c0_54, %c0_55] : memref<3x256x512xbf16, #tpu.memory_space<vmem>>, vector<1x256x512xbf16>
    %52 = vector.shape_cast %51 : vector<1x256x512xbf16> to vector<256x512xbf16>
    %cst_56 = arith.constant dense<0.000000e+00> : vector<112x512xf32>
    %53 = tpu.matmul %50, %52, %cst_56 {dimension_numbers = #tpu.dot_dimension_numbers<[1], [0], [0], [1], [0, 0, 1, 1], [], []>} : vector<112x256xbf16>, vector<256x512xbf16>, vector<112x512xf32> -> vector<112x512xf32>
    %c16_57 = arith.constant 16 : index
    %c0_58 = arith.constant 0 : index
    %54 = vector.load %arg17[%c16_57, %c0_58] : memref<144x256xbf16, #tpu.memory_space<vmem>>, vector<112x256xbf16>
    %c1_59 = arith.constant 1 : index
    %c0_60 = arith.constant 0 : index
    %c0_61 = arith.constant 0 : index
    %55 = vector.load %arg6[%c1_59, %c0_60, %c0_61] : memref<3x256x512xbf16, #tpu.memory_space<vmem>>, vector<1x256x512xbf16>
    %56 = vector.shape_cast %55 : vector<1x256x512xbf16> to vector<256x512xbf16>
    %cst_62 = arith.constant dense<0.000000e+00> : vector<112x512xf32>
    %57 = tpu.matmul %54, %56, %cst_62 {dimension_numbers = #tpu.dot_dimension_numbers<[1], [0], [0], [1], [0, 0, 1, 1], [], []>} : vector<112x256xbf16>, vector<256x512xbf16>, vector<112x512xf32> -> vector<112x512xf32>
    %58 = arith.addf %53, %57 : vector<112x512xf32>
    %c32_63 = arith.constant 32 : index
    %c0_64 = arith.constant 0 : index
    %59 = vector.load %arg17[%c32_63, %c0_64] : memref<144x256xbf16, #tpu.memory_space<vmem>>, vector<112x256xbf16>
    %c2_65 = arith.constant 2 : index
    %c0_66 = arith.constant 0 : index
    %c0_67 = arith.constant 0 : index
    %60 = vector.load %arg6[%c2_65, %c0_66, %c0_67] : memref<3x256x512xbf16, #tpu.memory_space<vmem>>, vector<1x256x512xbf16>
    %61 = vector.shape_cast %60 : vector<1x256x512xbf16> to vector<256x512xbf16>
    %cst_68 = arith.constant dense<0.000000e+00> : vector<112x512xf32>
    %62 = tpu.matmul %59, %61, %cst_68 {dimension_numbers = #tpu.dot_dimension_numbers<[1], [0], [0], [1], [0, 0, 1, 1], [], []>} : vector<112x256xbf16>, vector<256x512xbf16>, vector<112x512xf32> -> vector<112x512xf32>
    %63 = arith.addf %58, %62 : vector<112x512xf32>
    %c0_69 = arith.constant 0 : index
    %c0_70 = arith.constant 0 : index
    %64 = vector.load %arg7[%c0_69, %c0_70] : memref<1x512xf32, #tpu.memory_space<vmem>>, vector<1x512xf32>
    %65 = vector.broadcast %64 : vector<1x512xf32> to vector<112x512xf32>
    %66 = arith.addf %63, %65 : vector<112x512xf32>
    %cst_71 = arith.constant 0.000000e+00 : f32
    %67 = vector.broadcast %cst_71 : f32 to vector<112x512xf32>
    %68 = arith.maximumf %66, %67 : vector<112x512xf32>
    %69 = arith.truncf %68 : vector<112x512xf32> to vector<112x512xbf16>
    %c16_72 = arith.constant 16 : index
    %c0_73 = arith.constant 0 : index
    %70 = vector.load %arg16[%c16_72, %c0_73] : memref<144x512xbf16, #tpu.memory_space<vmem>>, vector<112x512xbf16>
    tpu.vector_store %arg16[%c16_72, %c0_73], %69 {strides = array<i32>} : memref<144x512xbf16, #tpu.memory_space<vmem>>, vector<112x512xbf16>,
    %c16_74 = arith.constant 16 : index
    %c16_75 = arith.constant 16 : index
    %71 = vector.load %arg1[%c16_74, %c16_75] : memref<144x20xbf16, #tpu.memory_space<vmem>>, vector<16x4xbf16>
    %c0_76 = arith.constant 0 : index
    %c0_77 = arith.constant 0 : index
    %72 = vector.load %arg9[%c0_76, %c0_77] : memref<4x128xbf16, #tpu.memory_space<vmem>>, vector<4x128xbf16>
    %cst_78 = arith.constant dense<0.000000e+00> : vector<16x128xf32>
    %73 = tpu.matmul %71, %72, %cst_78 {dimension_numbers = #tpu.dot_dimension_numbers<[1], [0], [0], [1], [0, 0, 1, 1], [], []>} : vector<16x4xbf16>, vector<4x128xbf16>, vector<16x128xf32> -> vector<16x128xf32>
    %c16_79 = arith.constant 16 : index
    %c0_80 = arith.constant 0 : index
    %74 = vector.load %arg16[%c16_79, %c0_80] : memref<144x512xbf16, #tpu.memory_space<vmem>>, vector<16x512xbf16>
    %c0_81 = arith.constant 0 : index
    %c0_82 = arith.constant 0 : index
    %c0_83 = arith.constant 0 : index
    %75 = vector.load %arg8[%c0_81, %c0_82, %c0_83] : memref<7x512x128xbf16, #tpu.memory_space<vmem>>, vector<1x512x128xbf16>
    %76 = vector.shape_cast %75 : vector<1x512x128xbf16> to vector<512x128xbf16>
    %cst_84 = arith.constant dense<0.000000e+00> : vector<16x128xf32>
    %77 = tpu.matmul %74, %76, %cst_84 {dimension_numbers = #tpu.dot_dimension_numbers<[1], [0], [0], [1], [0, 0, 1, 1], [], []>} : vector<16x512xbf16>, vector<512x128xbf16>, vector<16x128xf32> -> vector<16x128xf32>
    %78 = arith.addf %73, %77 : vector<16x128xf32>
    %c32_85 = arith.constant 32 : index
    %c0_86 = arith.constant 0 : index
    %79 = vector.load %arg16[%c32_85, %c0_86] : memref<144x512xbf16, #tpu.memory_space<vmem>>, vector<16x512xbf16>
    %c1_87 = arith.constant 1 : index
    %c0_88 = arith.constant 0 : index
    %c0_89 = arith.constant 0 : index
    %80 = vector.load %arg8[%c1_87, %c0_88, %c0_89] : memref<7x512x128xbf16, #tpu.memory_space<vmem>>, vector<1x512x128xbf16>
    %81 = vector.shape_cast %80 : vector<1x512x128xbf16> to vector<512x128xbf16>
    %cst_90 = arith.constant dense<0.000000e+00> : vector<16x128xf32>
    %82 = tpu.matmul %79, %81, %cst_90 {dimension_numbers = #tpu.dot_dimension_numbers<[1], [0], [0], [1], [0, 0, 1, 1], [], []>} : vector<16x512xbf16>, vector<512x128xbf16>, vector<16x128xf32> -> vector<16x128xf32>
    %83 = arith.addf %78, %82 : vector<16x128xf32>
    %c48 = arith.constant 48 : index
    %c0_91 = arith.constant 0 : index
    %84 = vector.load %arg16[%c48, %c0_91] : memref<144x512xbf16, #tpu.memory_space<vmem>>, vector<16x512xbf16>
    %c2_92 = arith.constant 2 : index
    %c0_93 = arith.constant 0 : index
    %c0_94 = arith.constant 0 : index
    %85 = vector.load %arg8[%c2_92, %c0_93, %c0_94] : memref<7x512x128xbf16, #tpu.memory_space<vmem>>, vector<1x512x128xbf16>
    %86 = vector.shape_cast %85 : vector<1x512x128xbf16> to vector<512x128xbf16>
    %cst_95 = arith.constant dense<0.000000e+00> : vector<16x128xf32>
    %87 = tpu.matmul %84, %86, %cst_95 {dimension_numbers = #tpu.dot_dimension_numbers<[1], [0], [0], [1], [0, 0, 1, 1], [], []>} : vector<16x512xbf16>, vector<512x128xbf16>, vector<16x128xf32> -> vector<16x128xf32>
    %88 = arith.addf %83, %87 : vector<16x128xf32>
    %c64 = arith.constant 64 : index
    %c0_96 = arith.constant 0 : index
    %89 = vector.load %arg16[%c64, %c0_96] : memref<144x512xbf16, #tpu.memory_space<vmem>>, vector<16x512xbf16>
    %c3 = arith.constant 3 : index
    %c0_97 = arith.constant 0 : index
    %c0_98 = arith.constant 0 : index
    %90 = vector.load %arg8[%c3, %c0_97, %c0_98] : memref<7x512x128xbf16, #tpu.memory_space<vmem>>, vector<1x512x128xbf16>
    %91 = vector.shape_cast %90 : vector<1x512x128xbf16> to vector<512x128xbf16>
    %cst_99 = arith.constant dense<0.000000e+00> : vector<16x128xf32>
    %92 = tpu.matmul %89, %91, %cst_99 {dimension_numbers = #tpu.dot_dimension_numbers<[1], [0], [0], [1], [0, 0, 1, 1], [], []>} : vector<16x512xbf16>, vector<512x128xbf16>, vector<16x128xf32> -> vector<16x128xf32>
    %93 = arith.addf %88, %92 : vector<16x128xf32>
    %c80 = arith.constant 80 : index
    %c0_100 = arith.constant 0 : index
    %94 = vector.load %arg16[%c80, %c0_100] : memref<144x512xbf16, #tpu.memory_space<vmem>>, vector<16x512xbf16>
    %c4 = arith.constant 4 : index
    %c0_101 = arith.constant 0 : index
    %c0_102 = arith.constant 0 : index
    %95 = vector.load %arg8[%c4, %c0_101, %c0_102] : memref<7x512x128xbf16, #tpu.memory_space<vmem>>, vector<1x512x128xbf16>
    %96 = vector.shape_cast %95 : vector<1x512x128xbf16> to vector<512x128xbf16>
    %cst_103 = arith.constant dense<0.000000e+00> : vector<16x128xf32>
    %97 = tpu.matmul %94, %96, %cst_103 {dimension_numbers = #tpu.dot_dimension_numbers<[1], [0], [0], [1], [0, 0, 1, 1], [], []>} : vector<16x512xbf16>, vector<512x128xbf16>, vector<16x128xf32> -> vector<16x128xf32>
    %98 = arith.addf %93, %97 : vector<16x128xf32>
    %c96 = arith.constant 96 : index
    %c0_104 = arith.constant 0 : index
    %99 = vector.load %arg16[%c96, %c0_104] : memref<144x512xbf16, #tpu.memory_space<vmem>>, vector<16x512xbf16>
    %c5 = arith.constant 5 : index
    %c0_105 = arith.constant 0 : index
    %c0_106 = arith.constant 0 : index
    %100 = vector.load %arg8[%c5, %c0_105, %c0_106] : memref<7x512x128xbf16, #tpu.memory_space<vmem>>, vector<1x512x128xbf16>
    %101 = vector.shape_cast %100 : vector<1x512x128xbf16> to vector<512x128xbf16>
    %cst_107 = arith.constant dense<0.000000e+00> : vector<16x128xf32>
    %102 = tpu.matmul %99, %101, %cst_107 {dimension_numbers = #tpu.dot_dimension_numbers<[1], [0], [0], [1], [0, 0, 1, 1], [], []>} : vector<16x512xbf16>, vector<512x128xbf16>, vector<16x128xf32> -> vector<16x128xf32>
    %103 = arith.addf %98, %102 : vector<16x128xf32>
    %c112 = arith.constant 112 : index
    %c0_108 = arith.constant 0 : index
    %104 = vector.load %arg16[%c112, %c0_108] : memref<144x512xbf16, #tpu.memory_space<vmem>>, vector<16x512xbf16>
    %c6 = arith.constant 6 : index
    %c0_109 = arith.constant 0 : index
    %c0_110 = arith.constant 0 : index
    %105 = vector.load %arg8[%c6, %c0_109, %c0_110] : memref<7x512x128xbf16, #tpu.memory_space<vmem>>, vector<1x512x128xbf16>
    %106 = vector.shape_cast %105 : vector<1x512x128xbf16> to vector<512x128xbf16>
    %cst_111 = arith.constant dense<0.000000e+00> : vector<16x128xf32>
    %107 = tpu.matmul %104, %106, %cst_111 {dimension_numbers = #tpu.dot_dimension_numbers<[1], [0], [0], [1], [0, 0, 1, 1], [], []>} : vector<16x512xbf16>, vector<512x128xbf16>, vector<16x128xf32> -> vector<16x128xf32>
    %108 = arith.addf %103, %107 : vector<16x128xf32>
    %c0_112 = arith.constant 0 : index
    %c0_113 = arith.constant 0 : index
    %109 = vector.load %arg10[%c0_112, %c0_113] : memref<1x128xf32, #tpu.memory_space<vmem>>, vector<1x128xf32>
    %110 = vector.broadcast %109 : vector<1x128xf32> to vector<16x128xf32>
    %111 = arith.addf %108, %110 : vector<16x128xf32>
    %cst_114 = arith.constant 0.000000e+00 : f32
    %112 = vector.broadcast %cst_114 : f32 to vector<16x128xf32>
    %113 = arith.maximumf %111, %112 : vector<16x128xf32>
    %114 = arith.truncf %113 : vector<16x128xf32> to vector<16x128xbf16>
    %c0_115 = arith.constant 0 : index
    %c0_116 = arith.constant 0 : index
    %115 = vector.load %arg11[%c0_115, %c0_116] : memref<128x64xbf16, #tpu.memory_space<vmem>>, vector<128x64xbf16>
    %cst_117 = arith.constant dense<0.000000e+00> : vector<16x64xf32>
    %116 = tpu.matmul %114, %115, %cst_117 {dimension_numbers = #tpu.dot_dimension_numbers<[1], [0], [0], [1], [0, 0, 1, 1], [], []>} : vector<16x128xbf16>, vector<128x64xbf16>, vector<16x64xf32> -> vector<16x64xf32>
    %c0_118 = arith.constant 0 : index
    %c0_119 = arith.constant 0 : index
    %117 = vector.load %arg12[%c0_118, %c0_119] : memref<1x64xf32, #tpu.memory_space<vmem>>, vector<1x64xf32>
    %118 = vector.broadcast %117 : vector<1x64xf32> to vector<16x64xf32>
    %119 = arith.addf %116, %118 : vector<16x64xf32>
    %cst_120 = arith.constant 0.000000e+00 : f32
    %120 = vector.broadcast %cst_120 : f32 to vector<16x64xf32>
    %121 = arith.maximumf %119, %120 : vector<16x64xf32>
    %122 = arith.truncf %121 : vector<16x64xf32> to vector<16x64xbf16>
    %c0_121 = arith.constant 0 : index
    %c0_122 = arith.constant 0 : index
    %123 = vector.load %arg13[%c0_121, %c0_122] : memref<64x128xbf16, #tpu.memory_space<vmem>>, vector<64x128xbf16>
    %cst_123 = arith.constant dense<0.000000e+00> : vector<16x128xf32>
    %124 = tpu.matmul %122, %123, %cst_123 {dimension_numbers = #tpu.dot_dimension_numbers<[1], [0], [0], [1], [0, 0, 1, 1], [], []>} : vector<16x64xbf16>, vector<64x128xbf16>, vector<16x128xf32> -> vector<16x128xf32>
    %c0_124 = arith.constant 0 : index
    %c0_125 = arith.constant 0 : index
    %125 = vector.load %arg14[%c0_124, %c0_125] : memref<1x128xf32, #tpu.memory_space<vmem>>, vector<1x128xf32>
    %126 = vector.broadcast %125 : vector<1x128xf32> to vector<16x128xf32>
    %127 = arith.addf %124, %126 : vector<16x128xf32>
    %c0_126 = arith.constant 0 : index
    %c0_127 = arith.constant 0 : index
    %128 = vector.load %arg15[%c0_126, %c0_127] : memref<16x128xf32, #tpu.memory_space<vmem>>, vector<16x128xf32>
    tpu.vector_store %arg15[%c0_126, %c0_127], %127 {strides = array<i32>} : memref<16x128xf32, #tpu.memory_space<vmem>>, vector<16x128xf32>,
    return
  }
  func.func @transform_0(%arg0: i32) -> (i32, i32) {
    %c0_i32 = arith.constant 0 : i32
    %c0_i32_0 = arith.constant 0 : i32
    return %arg0, %c0_i32 : i32, i32
  }
  func.func @transform_1(%arg0: i32) -> (i32, i32, i32) {
    %c0_i32 = arith.constant 0 : i32
    %c0_i32_0 = arith.constant 0 : i32
    %c0_i32_1 = arith.constant 0 : i32
    %c0_i32_2 = arith.constant 0 : i32
    return %c0_i32, %c0_i32_0, %c0_i32_1 : i32, i32, i32
  }
  func.func @transform_2(%arg0: i32) -> (i32, i32) {
    %c0_i32 = arith.constant 0 : i32
    %c0_i32_0 = arith.constant 0 : i32
    %c0_i32_1 = arith.constant 0 : i32
    return %c0_i32, %c0_i32_0 : i32, i32
  }
  func.func @transform_3(%arg0: i32) -> (i32, i32, i32) {
    %c0_i32 = arith.constant 0 : i32
    %c0_i32_0 = arith.constant 0 : i32
    %c0_i32_1 = arith.constant 0 : i32
    %c0_i32_2 = arith.constant 0 : i32
    return %c0_i32, %c0_i32_0, %c0_i32_1 : i32, i32, i32
  }
  func.func @transform_4(%arg0: i32) -> (i32, i32) {
    %c0_i32 = arith.constant 0 : i32
    %c0_i32_0 = arith.constant 0 : i32
    %c0_i32_1 = arith.constant 0 : i32
    return %c0_i32, %c0_i32_0 : i32, i32
  }
  func.func @transform_5(%arg0: i32) -> (i32, i32, i32) {
    %c0_i32 = arith.constant 0 : i32
    %c0_i32_0 = arith.constant 0 : i32
    %c0_i32_1 = arith.constant 0 : i32
    %c0_i32_2 = arith.constant 0 : i32
    return %c0_i32, %c0_i32_0, %c0_i32_1 : i32, i32, i32
  }
  func.func @transform_6(%arg0: i32) -> (i32, i32) {
    %c0_i32 = arith.constant 0 : i32
    %c0_i32_0 = arith.constant 0 : i32
    %c0_i32_1 = arith.constant 0 : i32
    return %c0_i32, %c0_i32_0 : i32, i32
  }
  func.func @transform_7(%arg0: i32) -> (i32, i32, i32) {
    %c0_i32 = arith.constant 0 : i32
    %c0_i32_0 = arith.constant 0 : i32
    %c0_i32_1 = arith.constant 0 : i32
    %c0_i32_2 = arith.constant 0 : i32
    return %c0_i32, %c0_i32_0, %c0_i32_1 : i32, i32, i32
  }
  func.func @transform_8(%arg0: i32) -> (i32, i32) {
    %c0_i32 = arith.constant 0 : i32
    %c0_i32_0 = arith.constant 0 : i32
    %c0_i32_1 = arith.constant 0 : i32
    return %c0_i32, %c0_i32_0 : i32, i32
  }
  func.func @transform_9(%arg0: i32) -> (i32, i32) {
    %c0_i32 = arith.constant 0 : i32
    %c0_i32_0 = arith.constant 0 : i32
    %c0_i32_1 = arith.constant 0 : i32
    return %c0_i32, %c0_i32_0 : i32, i32
  }
  func.func @transform_10(%arg0: i32) -> (i32, i32) {
    %c0_i32 = arith.constant 0 : i32
    %c0_i32_0 = arith.constant 0 : i32
    %c0_i32_1 = arith.constant 0 : i32
    return %c0_i32, %c0_i32_0 : i32, i32
  }
  func.func @transform_11(%arg0: i32) -> (i32, i32) {
    %c0_i32 = arith.constant 0 : i32
    %c0_i32_0 = arith.constant 0 : i32
    %c0_i32_1 = arith.constant 0 : i32
    return %c0_i32, %c0_i32_0 : i32, i32
  }
  func.func @transform_12(%arg0: i32) -> (i32, i32) {
    %c0_i32 = arith.constant 0 : i32
    %c0_i32_0 = arith.constant 0 : i32
    %c0_i32_1 = arith.constant 0 : i32
    return %c0_i32, %c0_i32_0 : i32, i32
  }
  func.func @transform_13(%arg0: i32) -> (i32, i32) {
    %c0_i32 = arith.constant 0 : i32
    %c0_i32_0 = arith.constant 0 : i32
    %c0_i32_1 = arith.constant 0 : i32
    return %c0_i32, %c0_i32_0 : i32, i32
  }
  func.func @transform_14(%arg0: i32) -> (i32, i32) {
    %c0_i32 = arith.constant 0 : i32
    %c0_i32_0 = arith.constant 0 : i32
    return %arg0, %c0_i32 : i32, i32
  }
}

</mosaic_0001>

<llo_original>
// kernel: forward.1
$region0: #{forward.1}
  #allocation0 [shape = 'u32[]', space=smem, size = 0x4, offset = 0x4, fixed_abs, tag = 'smem constant byte address 0x4 - core index']
  #allocation1 [shape = 'u32[72,128]{1,0:T(1,128)}', space=vmem, size = 0x9000, scoped, tag = 'internal scratch']
  #allocation2 [shape = 'bf16[144,512]{1,0:T(8,128)(2,1)}', space=vmem, size = 0x24000, scoped, tag = 'scratch operand']
  #allocation3 [shape = 'bf16[144,256]{1,0:T(8,128)(2,1)}', space=vmem, size = 0x12000, scoped, tag = 'scratch operand']
  %s0 = inlined_call_operand.vmem [shape: bf16[144,20], index: 0, kind: input, shape index: {}]
  %s1 = inlined_call_operand.vmem [shape: bf16[3,16,128], index: 1, kind: input, shape index: {}]
  %s2 = inlined_call_operand.vmem [shape: f32[1,128], index: 2, kind: input, shape index: {}]
  %s3 = inlined_call_operand.vmem [shape: bf16[3,128,256], index: 3, kind: input, shape index: {}]
  %s4 = inlined_call_operand.vmem [shape: f32[1,256], index: 4, kind: input, shape index: {}]
  %s5 = inlined_call_operand.hbm [shape: bf16[3,256,512], index: 5, kind: input, shape index: {}]
  %s6 = inlined_call_operand.vmem [shape: f32[1,512], index: 6, kind: input, shape index: {}]
  %s7 = inlined_call_operand.hbm [shape: bf16[7,512,128], index: 7, kind: input, shape index: {}]
  %s8 = inlined_call_operand.vmem [shape: bf16[4,128], index: 8, kind: input, shape index: {}]
  %s9 = inlined_call_operand.vmem [shape: f32[1,128], index: 9, kind: input, shape index: {}]
  %s10 = inlined_call_operand.vmem [shape: bf16[128,64], index: 10, kind: input, shape index: {}]
  %s11 = inlined_call_operand.vmem [shape: f32[1,64], index: 11, kind: input, shape index: {}]
  %s12 = inlined_call_operand.vmem [shape: bf16[64,128], index: 12, kind: input, shape index: {}]
  %s13 = inlined_call_operand.vmem [shape: f32[1,128], index: 13, kind: input, shape index: {}]
  %s14 = inlined_call_operand.vmem [shape: f32[16,128], index: 14, kind: output, shape index: {}]
  %s15 = sld [smem:[#allocation0]]
  $region74: #{forward.1} parent=0
    _
  %s17 = ssub.s32 1, %s15
  %s18 = scalar_select 0, %s17, %s15
  $region1: #{forward.1} parent=0
    #allocation4 [shape = 'u8[786432]{0}', space=vmem, size = 0xc0000, scoped, tag = 'input window, operand 5, single buffered']
    #allocation5 [shape = 's32[1]{0}', space=sflag, size = 0x4, scoped, tag = 'scoped memory for forward.1']
    #allocation6 [shape = 'u8[917504]{0}', space=vmem, size = 0xe0000, scoped, tag = 'input window, operand 7, single buffered']
    #allocation7 [shape = 's32[1]{0}', space=sflag, size = 0x4, scoped, tag = 'scoped memory for forward.1']
    %19 = vsyncpa [#allocation5], 0
    %20 = vsyncpa [#allocation7], 0
    // Predicated region
    $region2: #{forward.1} parent=1 // pred_check
      _
    $region3: #{forward.1} parent=1 // pred_check_branch
      %22 = sbr.rel (0) target = $region5
    $region4: #{forward.1} parent=1 // pred_region
      _
    $region5: #{forward.1} parent=1 // pred_fallthru
      _
    // Predicated region
    $region6: #{forward.1} parent=1 // pred_check
      _
    $region7: #{forward.1} parent=1 // pred_check_branch
      %24 = sbr.rel (0) target = $region9
    $region8: #{forward.1} parent=1 // pred_region
      _
    $region9: #{forward.1} parent=1 // pred_fallthru
      _
    // Predicated region
    $region10: #{forward.1} parent=1 // pred_check
      _
    $region11: #{forward.1} parent=1 // pred_check_branch
      %26 = sbr.rel (0) target = $region13
    $region12: #{forward.1} parent=1 // pred_region
      _
    $region13: #{forward.1} parent=1 // pred_fallthru
      _
    // Predicated region
    $region14: #{forward.1} parent=1 // pred_check
      _
    $region15: #{forward.1} parent=1 // pred_check_branch
      %28 = sbr.rel (0) target = $region17
    $region16: #{forward.1} parent=1 // pred_region
      _
    $region17: #{forward.1} parent=1 // pred_fallthru
      _
    // Predicated region
    $region18: #{forward.1} parent=1 // pred_check
      _
    $region19: #{forward.1} parent=1 // pred_check_branch
      %30 = sbr.rel (0) target = $region21
    $region20: #{forward.1} parent=1 // pred_region
      _
    $region21: #{forward.1} parent=1 // pred_fallthru
      _
    // Predicated region
    $region22: #{forward.1} parent=1 // pred_check
      _
    $region23: #{forward.1} parent=1 // pred_check_branch
      %32 = sbr.rel (0) target = $region25
    $region24: #{forward.1} parent=1 // pred_region
      %34 = vsyncadd [#allocation5], 0
      %s35 = sshll.u32 %s5, 4
      %s36 = int_to_ptr.hbm [resolvable:$true] %s35
      %s37 = sshll.u32 [#allocation4], 4
      %s38 = int_to_ptr.vmem [resolvable:$true] %s37
      %43 = dma.hbm_to_vmem [thread:$0]  %s36, 24576, %s38, [#allocation5], 256, 256, 16
    $region25: #{forward.1} parent=1 // pred_fallthru
      _
    // Predicated region
    $region26: #{forward.1} parent=1 // pred_check
      _
    $region27: #{forward.1} parent=1 // pred_check_branch
      %45 = sbr.rel (0) target = $region29
    $region28: #{forward.1} parent=1 // pred_region
      _
    $region29: #{forward.1} parent=1 // pred_fallthru
      _
    // Predicated region
    $region30: #{forward.1} parent=1 // pred_check
      _
    $region31: #{forward.1} parent=1 // pred_check_branch
      %47 = sbr.rel (0) target = $region33
    $region32: #{forward.1} parent=1 // pred_region
      %49 = vsyncadd [#allocation7], 0
      %s50 = sshll.u32 %s7, 4
      %s51 = int_to_ptr.hbm [resolvable:$true] %s50
      %s52 = sshll.u32 [#allocation6], 4
      %s53 = int_to_ptr.vmem [resolvable:$true] %s52
      %58 = dma.hbm_to_vmem [thread:$0]  %s51, 28672, %s53, [#allocation7], 64, 64, 4
    $region33: #{forward.1} parent=1 // pred_fallthru
      _
    // Predicated region
    $region34: #{forward.1} parent=1 // pred_check
      _
    $region35: #{forward.1} parent=1 // pred_check_branch
      %60 = sbr.rel (0) target = $region37
    $region36: #{forward.1} parent=1 // pred_region
      _
    $region37: #{forward.1} parent=1 // pred_fallthru
      _
    // Predicated region
    $region38: #{forward.1} parent=1 // pred_check
      _
    $region39: #{forward.1} parent=1 // pred_check_branch
      %62 = sbr.rel (0) target = $region41
    $region40: #{forward.1} parent=1 // pred_region
      _
    $region41: #{forward.1} parent=1 // pred_fallthru
      _
    // Predicated region
    $region42: #{forward.1} parent=1 // pred_check
      _
    $region43: #{forward.1} parent=1 // pred_check_branch
      %64 = sbr.rel (0) target = $region45
    $region44: #{forward.1} parent=1 // pred_region
      _
    $region45: #{forward.1} parent=1 // pred_fallthru
      _
    // Predicated region
    $region46: #{forward.1} parent=1 // pred_check
      _
    $region47: #{forward.1} parent=1 // pred_check_branch
      %66 = sbr.rel (0) target = $region49
    $region48: #{forward.1} parent=1 // pred_region
      _
    $region49: #{forward.1} parent=1 // pred_fallthru
      _
    // Predicated region
    $region50: #{forward.1} parent=1 // pred_check
      _
    $region51: #{forward.1} parent=1 // pred_check_branch
      %68 = sbr.rel (0) target = $region53
    $region52: #{forward.1} parent=1 // pred_region
      _
    $region53: #{forward.1} parent=1 // pred_fallthru
      _
    // Predicated region
    $region54: #{forward.1} parent=1 // pred_check
      _
    $region55: #{forward.1} parent=1 // pred_check_branch
      %70 = sbr.rel (0) target = $region57
    $region56: #{forward.1} parent=1 // pred_region
      _
    $region57: #{forward.1} parent=1 // pred_fallthru
      _
    // Predicated region
    $region58: #{forward.1} parent=1 // pred_check
      _
    $region59: #{forward.1} parent=1 // pred_check_branch
      %72 = sbr.rel (0) target = $region61
    $region60: #{forward.1} parent=1 // pred_region
      %74 = dma.done [#allocation5], 24576
    $region61: #{forward.1} parent=1 // pred_fallthru
      _
    // Predicated region
    $region62: #{forward.1} parent=1 // pred_check
      _
    $region63: #{forward.1} parent=1 // pred_check_branch
      %76 = sbr.rel (0) target = $region65
    $region64: #{forward.1} parent=1 // pred_region
      %78 = dma.done [#allocation7], 28672
    $region65: #{forward.1} parent=1 // pred_fallthru
      _
    %80 = vst [vmem:[#allocation2] sm:$0xf] 0
    %81 = vst [vmem:[#allocation2 + $0x10] sm:$0xf] 0
    %82 = vst [vmem:[#allocation2 + $0x100] sm:$0xf] 0
    %83 = vst [vmem:[#allocation2 + $0x110] sm:$0xf] 0
    %84 = vst [vmem:[#allocation3] sm:$0xff] 0
    %85 = vst [vmem:[#allocation3 + $0x8] sm:$0xff] 0
    %86 = vst [vmem:[#allocation3 + $0x80] sm:$0xff] 0
    %87 = vst [vmem:[#allocation3 + $0x88] sm:$0xff] 0
    %v88 = vld [vmem:[%s0] sm:$0xf]
    %v89 = vld [vmem:[%s0 + $0x4] sm:$0xf]
    %v90 = vld [vmem:[%s0 + $0x8] sm:$0xf]
    %v91 = vld [vmem:[%s0 + $0xc] sm:$0xf]
    %v92 = vld [vmem:[%s0 + $0x10] sm:$0xf]
    %v93 = vld [vmem:[%s0 + $0x14] sm:$0xf]
    %v94 = vld [vmem:[%s0 + $0x18] sm:$0xf]
    %v95 = vld [vmem:[%s0 + $0x1c] sm:$0xf]
    %v96 = vld [vmem:[%s0 + $0x20] sm:$0xf]
    %v97 = vld [vmem:[%s0 + $0x24] sm:$0xf]
    %v98 = vld [vmem:[%s0 + $0x28] sm:$0xf]
    %v99 = vld [vmem:[%s0 + $0x2c] sm:$0xf]
    %v100 = vld [vmem:[%s0 + $0x30] sm:$0xf]
    %v101 = vld [vmem:[%s0 + $0x34] sm:$0xf]
    %v102 = vld [vmem:[%s1] sm:$0xf]
    %v103 = vld [vmem:[%s1 + $0x4] sm:$0xf]
    %v104 = vld [vmem:[%s0 + $0x38] sm:$0xf]
    %v105 = vld [vmem:[%s0 + $0x3c] sm:$0xf]
    %s106 = scalar_lea.vmem %s1, 8
    %v107 = vld [vmem:[%s106] sm:$0xf]
    %v108 = vld [vmem:[%s106 + $0x4] sm:$0xf]
    %v123 = vunpack.c.l.b16 %v90
    %v124 = vunpack.c.l.b16 %v91
    %v125 = vunpack.c.l.b16 %v92
    %v126 = vunpack.c.l.b16 %v93
    %v127 = vunpack.c.l.b16 %v94
    %v128 = vunpack.c.l.b16 %v95
    %v129 = vunpack.c.l.b16 %v96
    %v130 = vunpack.c.l.b16 %v97
    %v131 = vunpack.c.l.b16 %v98
    %v132 = vunpack.c.l.b16 %v99
    %v133 = vunpack.c.l.b16 %v100
    %v134 = vunpack.c.l.b16 %v101
    %v135 = vunpack.c.l.b16 %v104
    %v136 = vunpack.c.l.b16 %v105
    %v137 = vpack.c.b16 %v124, %v123
    %v138 = vpack.c.b16 %v126, %v125
    %v139 = vpack.c.b16 %v128, %v127
    %v140 = vpack.c.b16 %v130, %v129
    %v141 = vpack.c.b16 %v132, %v131
    %v142 = vpack.c.b16 %v134, %v133
    %v143 = vpack.c.b16 %v136, %v135
    %v146 = vunpack.c.l.b16 %v107
    %v147 = vunpack.c.l.b16 %v108
    %v148 = vpack.c.b16 %v147, %v146
    %vm150 = vcmask 130048
    %v152 = vsel %vm150, %v137, 0
    %v155 = vsel %vm150, %v138, 0
    %v158 = vsel %vm150, %v139, 0
    %v161 = vsel %vm150, %v140, 0
    %v164 = vsel %vm150, %v141, 0
    %v167 = vsel %vm150, %v142, 0
    %v170 = vsel %vm150, %v143, 0
    %172 = vmatpush.bf16.msra.mxu0 0
    %173 = vmatpush.bf16.msra.mxu0 0
    %174 = vmatpush.bf16.msra.mxu0 0
    %175 = vmatpush.bf16.msra.mxu0 0
    %176 = vmatpush.bf16.msra.mxu0 0
    %177 = vmatpush.bf16.msra.mxu0 0
    %178 = vmatpush.bf16.msra.mxu0 0
    %179 = vmatpush.bf16.msra.mxu0 %v148
    %180 = vmatmul.bf16.gmra.mxu0 %v152
    %v181 = vpop.f32.mrf.mxu0
    %v182 = vadd.f32 0.0, %v181
    %v183 = vpop.f32.mrf.mxu0
    %v184 = vadd.f32 0.0, %v183
    %185 = vmatmul.bf16.gmra.mxu0 %v155
    %v186 = vpop.f32.mrf.mxu0
    %v187 = vadd.f32 0.0, %v186
    %v188 = vpop.f32.mrf.mxu0
    %v189 = vadd.f32 0.0, %v188
    %190 = vmatmul.bf16.gmra.mxu0 %v158
    %v191 = vpop.f32.mrf.mxu0
    %v192 = vadd.f32 0.0, %v191
    %v193 = vpop.f32.mrf.mxu0
    %v194 = vadd.f32 0.0, %v193
    %195 = vmatmul.bf16.gmra.mxu0 %v161
    %v196 = vpop.f32.mrf.mxu0
    %v197 = vadd.f32 0.0, %v196
    %v198 = vpop.f32.mrf.mxu0
    %v199 = vadd.f32 0.0, %v198
    %200 = vmatmul.bf16.gmra.mxu0 %v164
    %v201 = vpop.f32.mrf.mxu0
    %v202 = vadd.f32 0.0, %v201
    %v203 = vpop.f32.mrf.mxu0
    %v204 = vadd.f32 0.0, %v203
    %205 = vmatmul.bf16.gmra.mxu0 %v167
    %v206 = vpop.f32.mrf.mxu0
    %v207 = vadd.f32 0.0, %v206
    %v208 = vpop.f32.mrf.mxu0
    %v209 = vadd.f32 0.0, %v208
    %210 = vmatmul.bf16.gmra.mxu0 %v170
    %v211 = vpop.f32.mrf.mxu0
    %v212 = vadd.f32 0.0, %v211
    %v213 = vpop.f32.mrf.mxu0
    %v214 = vadd.f32 0.0, %v213
    %215 = vdwg.mxu0
    %v218 = vunpack.c.l.b16 %v88
    %v219 = vunpack.c.l.b16 %v89
    %v220 = vpack.c.b16 %v219, %v218
    %v223 = vunpack.c.l.b16 %v102
    %v224 = vunpack.c.l.b16 %v103
    %v225 = vpack.c.b16 %v224, %v223
    %v228 = vsel %vm150, %v220, 0
    %230 = vmatpush.bf16.msra.mxu0 0
    %231 = vmatpush.bf16.msra.mxu0 0
    %232 = vmatpush.bf16.msra.mxu0 0
    %233 = vmatpush.bf16.msra.mxu0 0
    %234 = vmatpush.bf16.msra.mxu0 0
    %235 = vmatpush.bf16.msra.mxu0 0
    %236 = vmatpush.bf16.msra.mxu0 0
    %237 = vmatpush.bf16.msra.mxu0 %v225
    %238 = vmatmul.bf16.gmra.mxu0 %v228
    %v239 = vpop.f32.mrf.mxu0
    %v240 = vadd.f32 %v182, %v239
    %v241 = vpop.f32.mrf.mxu0
    %v242 = vadd.f32 %v184, %v241
    %243 = vmatmul.bf16.gmra.mxu0 %v152
    %v244 = vpop.f32.mrf.mxu0
    %v245 = vadd.f32 %v187, %v244
    %v246 = vpop.f32.mrf.mxu0
    %v247 = vadd.f32 %v189, %v246
    %248 = vmatmul.bf16.gmra.mxu0 %v155
    %v249 = vpop.f32.mrf.mxu0
    %v250 = vadd.f32 %v192, %v249
    %v251 = vpop.f32.mrf.mxu0
    %v252 = vadd.f32 %v194, %v251
    %253 = vmatmul.bf16.gmra.mxu0 %v158
    %v254 = vpop.f32.mrf.mxu0
    %v255 = vadd.f32 %v197, %v254
    %v256 = vpop.f32.mrf.mxu0
    %v257 = vadd.f32 %v199, %v256
    %258 = vmatmul.bf16.gmra.mxu0 %v161
    %v259 = vpop.f32.mrf.mxu0
    %v260 = vadd.f32 %v202, %v259
    %v261 = vpop.f32.mrf.mxu0
    %v262 = vadd.f32 %v204, %v261
    %263 = vmatmul.bf16.gmra.mxu0 %v164
    %v264 = vpop.f32.mrf.mxu0
    %v265 = vadd.f32 %v207, %v264
    %v266 = vpop.f32.mrf.mxu0
    %v267 = vadd.f32 %v209, %v266
    %268 = vmatmul.bf16.gmra.mxu0 %v167
    %v269 = vpop.f32.mrf.mxu0
    %v270 = vadd.f32 %v212, %v269
    %v271 = vpop.f32.mrf.mxu0
    %v272 = vadd.f32 %v214, %v271
    %273 = vdwg.mxu0
    %v274 = vld [vmem:[%s0 + $0x10] sm:$0xf]
    %v275 = vld [vmem:[%s0 + $0x14] sm:$0xf]
    %v276 = vld [vmem:[%s0 + $0x18] sm:$0xf]
    %v277 = vld [vmem:[%s0 + $0x1c] sm:$0xf]
    %v278 = vld [vmem:[%s0 + $0x20] sm:$0xf]
    %v279 = vld [vmem:[%s0 + $0x24] sm:$0xf]
    %v280 = vld [vmem:[%s0 + $0x28] sm:$0xf]
    %v281 = vld [vmem:[%s0 + $0x2c] sm:$0xf]
    %v282 = vld [vmem:[%s0 + $0x30] sm:$0xf]
    %v283 = vld [vmem:[%s0 + $0x34] sm:$0xf]
    %v284 = vld [vmem:[%s0 + $0x38] sm:$0xf]
    %v285 = vld [vmem:[%s0 + $0x3c] sm:$0xf]
    %v286 = vld [vmem:[%s0 + $0x40] sm:$0xf]
    %v287 = vld [vmem:[%s0 + $0x44] sm:$0xf]
    %s288 = scalar_lea.vmem %s1, 16
    %v289 = vld [vmem:[%s288] sm:$0xf]
    %v290 = vld [vmem:[%s288 + $0x4] sm:$0xf]
    %v305 = vunpack.c.l.b16 %v274
    %v306 = vunpack.c.l.b16 %v275
    %v307 = vunpack.c.l.b16 %v276
    %v308 = vunpack.c.l.b16 %v277
    %v309 = vunpack.c.l.b16 %v278
    %v310 = vunpack.c.l.b16 %v279
    %v311 = vunpack.c.l.b16 %v280
    %v312 = vunpack.c.l.b16 %v281
    %v313 = vunpack.c.l.b16 %v282
    %v314 = vunpack.c.l.b16 %v283
    %v315 = vunpack.c.l.b16 %v284
    %v316 = vunpack.c.l.b16 %v285
    %v317 = vunpack.c.l.b16 %v286
    %v318 = vunpack.c.l.b16 %v287
    %v319 = vpack.c.b16 %v306, %v305
    %v320 = vpack.c.b16 %v308, %v307
    %v321 = vpack.c.b16 %v310, %v309
    %v322 = vpack.c.b16 %v312, %v311
    %v323 = vpack.c.b16 %v314, %v313
    %v324 = vpack.c.b16 %v316, %v315
    %v325 = vpack.c.b16 %v318, %v317
    %v328 = vunpack.c.l.b16 %v289
    %v329 = vunpack.c.l.b16 %v290
    %v330 = vpack.c.b16 %v329, %v328
    %v333 = vsel %vm150, %v319, 0
    %v336 = vsel %vm150, %v320, 0
    %v339 = vsel %vm150, %v321, 0
    %v342 = vsel %vm150, %v322, 0
    %v345 = vsel %vm150, %v323, 0
    %v348 = vsel %vm150, %v324, 0
    %v351 = vsel %vm150, %v325, 0
    %353 = vmatpush.bf16.msra.mxu0 0
    %354 = vmatpush.bf16.msra.mxu0 0
    %355 = vmatpush.bf16.msra.mxu0 0
    %356 = vmatpush.bf16.msra.mxu0 0
    %357 = vmatpush.bf16.msra.mxu0 0
    %358 = vmatpush.bf16.msra.mxu0 0
    %359 = vmatpush.bf16.msra.mxu0 0
    %360 = vmatpush.bf16.msra.mxu0 %v330
    %361 = vmatmul.bf16.gmra.mxu0 %v333
    %v362 = vpop.f32.mrf.mxu0
    %v363 = vadd.f32 0.0, %v362
    %v364 = vpop.f32.mrf.mxu0
    %v365 = vadd.f32 0.0, %v364
    %366 = vmatmul.bf16.gmra.mxu0 %v336
    %v367 = vpop.f32.mrf.mxu0
    %v368 = vadd.f32 0.0, %v367
    %v369 = vpop.f32.mrf.mxu0
    %v370 = vadd.f32 0.0, %v369
    %371 = vmatmul.bf16.gmra.mxu0 %v339
    %v372 = vpop.f32.mrf.mxu0
    %v373 = vadd.f32 0.0, %v372
    %v374 = vpop.f32.mrf.mxu0
    %v375 = vadd.f32 0.0, %v374
    %376 = vmatmul.bf16.gmra.mxu0 %v342
    %v377 = vpop.f32.mrf.mxu0
    %v378 = vadd.f32 0.0, %v377
    %v379 = vpop.f32.mrf.mxu0
    %v380 = vadd.f32 0.0, %v379
    %381 = vmatmul.bf16.gmra.mxu0 %v345
    %v382 = vpop.f32.mrf.mxu0
    %v383 = vadd.f32 0.0, %v382
    %v384 = vpop.f32.mrf.mxu0
    %v385 = vadd.f32 0.0, %v384
    %386 = vmatmul.bf16.gmra.mxu0 %v348
    %v387 = vpop.f32.mrf.mxu0
    %v388 = vadd.f32 0.0, %v387
    %v389 = vpop.f32.mrf.mxu0
    %v390 = vadd.f32 0.0, %v389
    %391 = vmatmul.bf16.gmra.mxu0 %v351
    %v392 = vpop.f32.mrf.mxu0
    %v393 = vadd.f32 0.0, %v392
    %v394 = vpop.f32.mrf.mxu0
    %v395 = vadd.f32 0.0, %v394
    %396 = vdwg.mxu0
    %v397 = vadd.f32 %v240, %v363
    %v398 = vadd.f32 %v242, %v365
    %v399 = vadd.f32 %v245, %v368
    %v400 = vadd.f32 %v247, %v370
    %v401 = vadd.f32 %v250, %v373
    %v402 = vadd.f32 %v252, %v375
    %v403 = vadd.f32 %v255, %v378
    %v404 = vadd.f32 %v257, %v380
    %v405 = vadd.f32 %v260, %v383
    %v406 = vadd.f32 %v262, %v385
    %v407 = vadd.f32 %v265, %v388
    %v408 = vadd.f32 %v267, %v390
    %v409 = vadd.f32 %v270, %v393
    %v410 = vadd.f32 %v272, %v395
    %v411 = vld [vmem:[%s2] sm:$0x1]
    %v413 = vperm.slane %v411, 0
    %v415 = vadd.f32 %v397, %v413
    %v416 = vadd.f32 %v398, %v413
    %v417 = vadd.f32 %v399, %v413
    %v418 = vadd.f32 %v400, %v413
    %v419 = vadd.f32 %v401, %v413
    %v420 = vadd.f32 %v402, %v413
    %v421 = vadd.f32 %v403, %v413
    %v422 = vadd.f32 %v404, %v413
    %v423 = vadd.f32 %v405, %v413
    %v424 = vadd.f32 %v406, %v413
    %v425 = vadd.f32 %v407, %v413
    %v426 = vadd.f32 %v408, %v413
    %v427 = vadd.f32 %v409, %v413
    %v428 = vadd.f32 %v410, %v413
    %v429 = vmax.f32 %v415, 0.0
    %v430 = vmax.f32 %v416, 0.0
    %v431 = vmax.f32 %v417, 0.0
    %v432 = vmax.f32 %v418, 0.0
    %v433 = vmax.f32 %v419, 0.0
    %v434 = vmax.f32 %v420, 0.0
    %v435 = vmax.f32 %v421, 0.0
    %v436 = vmax.f32 %v422, 0.0
    %v437 = vmax.f32 %v423, 0.0
    %v438 = vmax.f32 %v424, 0.0
    %v439 = vmax.f32 %v425, 0.0
    %v440 = vmax.f32 %v426, 0.0
    %v441 = vmax.f32 %v427, 0.0
    %v442 = vmax.f32 %v428, 0.0
    %v443 = vpack.c.bf16 %v429, %v429
    %v444 = vpack.c.bf16 %v430, %v430
    %v445 = vpack.c.bf16 %v431, %v431
    %v446 = vpack.c.bf16 %v432, %v432
    %v447 = vpack.c.bf16 %v433, %v433
    %v448 = vpack.c.bf16 %v434, %v434
    %v449 = vpack.c.bf16 %v435, %v435
    %v450 = vpack.c.bf16 %v436, %v436
    %v451 = vpack.c.bf16 %v437, %v437
    %v452 = vpack.c.bf16 %v438, %v438
    %v453 = vpack.c.bf16 %v439, %v439
    %v454 = vpack.c.bf16 %v440, %v440
    %v455 = vpack.c.bf16 %v441, %v441
    %v456 = vpack.c.bf16 %v442, %v442
    %457 = vst [vmem:[#allocation2 + $0x20] sm:$0xf] %v443
    %458 = vst [vmem:[#allocation2 + $0x30] sm:$0xf] %v444
    %459 = vst [vmem:[#allocation2 + $0x40] sm:$0xf] %v445
    %460 = vst [vmem:[#allocation2 + $0x50] sm:$0xf] %v446
    %461 = vst [vmem:[#allocation2 + $0x60] sm:$0xf] %v447
    %462 = vst [vmem:[#allocation2 + $0x70] sm:$0xf] %v448
    %463 = vst [vmem:[#allocation2 + $0x80] sm:$0xf] %v449
    %464 = vst [vmem:[#allocation2 + $0x90] sm:$0xf] %v450
    %465 = vst [vmem:[#allocation2 + $0xa0] sm:$0xf] %v451
    %466 = vst [vmem:[#allocation2 + $0xb0] sm:$0xf] %v452
    %467 = vst [vmem:[#allocation2 + $0xc0] sm:$0xf] %v453
    %468 = vst [vmem:[#allocation2 + $0xd0] sm:$0xf] %v454
    %469 = vst [vmem:[#allocation2 + $0xe0] sm:$0xf] %v455
    %470 = vst [vmem:[#allocation2 + $0xf0] sm:$0xf] %v456
    %v471 = vld [vmem:[#allocation2] sm:$0xf]
    %v472 = vld [vmem:[#allocation2 + $0x10] sm:$0xf]
    %v473 = vld [vmem:[#allocation2 + $0x20] sm:$0xf]
    %v474 = vld [vmem:[#allocation2 + $0x30] sm:$0xf]
    %v475 = vld [vmem:[#allocation2 + $0x40] sm:$0xf]
    %v476 = vld [vmem:[#allocation2 + $0x50] sm:$0xf]
    %v477 = vld [vmem:[#allocation2 + $0x60] sm:$0xf]
    %v478 = vld [vmem:[#allocation2 + $0x70] sm:$0xf]
    %v479 = vld [vmem:[#allocation2 + $0x80] sm:$0xf]
    %v480 = vld [vmem:[#allocation2 + $0x90] sm:$0xf]
    %v481 = vld [vmem:[#allocation2 + $0xa0] sm:$0xf]
    %v482 = vld [vmem:[#allocation2 + $0xb0] sm:$0xf]
    %v483 = vld [vmem:[#allocation2 + $0xc0] sm:$0xf]
    %v484 = vld [vmem:[#allocation2 + $0xd0] sm:$0xf]
    %v485 = vld [vmem:[%s3] sm:$0xff]
    %v486 = vld [vmem:[%s3 + $0x8] sm:$0xff]
    %v487 = vld [vmem:[%s3 + $0x10] sm:$0xff]
    %v488 = vld [vmem:[%s3 + $0x18] sm:$0xff]
    %v489 = vld [vmem:[%s3 + $0x20] sm:$0xff]
    %v490 = vld [vmem:[%s3 + $0x28] sm:$0xff]
    %v491 = vld [vmem:[%s3 + $0x30] sm:$0xff]
    %v492 = vld [vmem:[%s3 + $0x38] sm:$0xff]
    %v493 = vld [vmem:[%s3 + $0x40] sm:$0xff]
    %v494 = vld [vmem:[%s3 + $0x48] sm:$0xff]
    %v495 = vld [vmem:[%s3 + $0x50] sm:$0xff]
    %v496 = vld [vmem:[%s3 + $0x58] sm:$0xff]
    %v497 = vld [vmem:[%s3 + $0x60] sm:$0xff]
    %v498 = vld [vmem:[%s3 + $0x68] sm:$0xff]
    %v499 = vld [vmem:[%s3 + $0x70] sm:$0xff]
    %v500 = vld [vmem:[%s3 + $0x78] sm:$0xff]
    %v501 = vld [vmem:[#allocation2 + $0xe0] sm:$0xf]
    %v502 = vld [vmem:[#allocation2 + $0xf0] sm:$0xf]
    %s503 = scalar_lea.vmem %s3, 128
    %v504 = vld [vmem:[%s503] sm:$0xff]
    %v505 = vld [vmem:[%s503 + $0x8] sm:$0xff]
    %v506 = vld [vmem:[%s503 + $0x10] sm:$0xff]
    %v507 = vld [vmem:[%s503 + $0x18] sm:$0xff]
    %v508 = vld [vmem:[%s503 + $0x20] sm:$0xff]
    %v509 = vld [vmem:[%s503 + $0x28] sm:$0xff]
    %v510 = vld [vmem:[%s503 + $0x30] sm:$0xff]
    %v511 = vld [vmem:[%s503 + $0x38] sm:$0xff]
    %v512 = vld [vmem:[%s503 + $0x40] sm:$0xff]
    %v513 = vld [vmem:[%s503 + $0x48] sm:$0xff]
    %v514 = vld [vmem:[%s503 + $0x50] sm:$0xff]
    %v515 = vld [vmem:[%s503 + $0x58] sm:$0xff]
    %v516 = vld [vmem:[%s503 + $0x60] sm:$0xff]
    %v517 = vld [vmem:[%s503 + $0x68] sm:$0xff]
    %v518 = vld [vmem:[%s503 + $0x70] sm:$0xff]
    %v519 = vld [vmem:[%s503 + $0x78] sm:$0xff]
    %v534 = vunpack.c.l.b16 %v473
    %v535 = vunpack.c.l.b16 %v474
    %v536 = vunpack.c.l.b16 %v475
    %v537 = vunpack.c.l.b16 %v476
    %v538 = vunpack.c.l.b16 %v477
    %v539 = vunpack.c.l.b16 %v478
    %v540 = vunpack.c.l.b16 %v479
    %v541 = vunpack.c.l.b16 %v480
    %v542 = vunpack.c.l.b16 %v481
    %v543 = vunpack.c.l.b16 %v482
    %v544 = vunpack.c.l.b16 %v483
    %v545 = vunpack.c.l.b16 %v484
    %v546 = vunpack.c.l.b16 %v501
    %v547 = vunpack.c.l.b16 %v502
    %v548 = vpack.c.b16 %v535, %v534
    %v549 = vpack.c.b16 %v537, %v536
    %v550 = vpack.c.b16 %v539, %v538
    %v551 = vpack.c.b16 %v541, %v540
    %v552 = vpack.c.b16 %v543, %v542
    %v553 = vpack.c.b16 %v545, %v544
    %v554 = vpack.c.b16 %v547, %v546
    %v578 = vunpack.c.l.b16 %v504
    %v579 = vunpack.c.h.b16 %v504
    %v580 = vunpack.c.l.b16 %v505
    %v581 = vunpack.c.h.b16 %v505
    %v582 = vunpack.c.l.b16 %v506
    %v583 = vunpack.c.h.b16 %v506
    %v584 = vunpack.c.l.b16 %v507
    %v585 = vunpack.c.h.b16 %v507
    %v586 = vunpack.c.l.b16 %v508
    %v587 = vunpack.c.h.b16 %v508
    %v588 = vunpack.c.l.b16 %v509
    %v589 = vunpack.c.h.b16 %v509
    %v590 = vunpack.c.l.b16 %v510
    %v591 = vunpack.c.h.b16 %v510
    %v592 = vunpack.c.l.b16 %v511
    %v593 = vunpack.c.h.b16 %v511
    %v594 = vunpack.c.l.b16 %v512
    %v595 = vunpack.c.h.b16 %v512
    %v596 = vunpack.c.l.b16 %v513
    %v597 = vunpack.c.h.b16 %v513
    %v598 = vunpack.c.l.b16 %v514
    %v599 = vunpack.c.h.b16 %v514
    %v600 = vunpack.c.l.b16 %v515
    %v601 = vunpack.c.h.b16 %v515
    %v602 = vunpack.c.l.b16 %v516
    %v603 = vunpack.c.h.b16 %v516
    %v604 = vunpack.c.l.b16 %v517
    %v605 = vunpack.c.h.b16 %v517
    %v606 = vunpack.c.l.b16 %v518
    %v607 = vunpack.c.h.b16 %v518
    %v608 = vunpack.c.l.b16 %v519
    %v609 = vunpack.c.h.b16 %v519
    %v610 = vpack.c.b16 %v580, %v578
    %v611 = vpack.c.b16 %v581, %v579
    %v612 = vpack.c.b16 %v584, %v582
    %v613 = vpack.c.b16 %v585, %v583
    %v614 = vpack.c.b16 %v588, %v586
    %v615 = vpack.c.b16 %v589, %v587
    %v616 = vpack.c.b16 %v592, %v590
    %v617 = vpack.c.b16 %v593, %v591
    %v618 = vpack.c.b16 %v596, %v594
    %v619 = vpack.c.b16 %v597, %v595
    %v620 = vpack.c.b16 %v600, %v598
    %v621 = vpack.c.b16 %v601, %v599
    %v622 = vpack.c.b16 %v604, %v602
    %v623 = vpack.c.b16 %v605, %v603
    %v624 = vpack.c.b16 %v608, %v606
    %v625 = vpack.c.b16 %v609, %v607
    %642 = vmatpush.bf16.msra.mxu0 %v624
    %643 = vmatpush.bf16.msra.mxu0 %v622
    %644 = vmatpush.bf16.msra.mxu0 %v620
    %645 = vmatpush.bf16.msra.mxu0 %v618
    %646 = vmatpush.bf16.msra.mxu0 %v616
    %647 = vmatpush.bf16.msra.mxu0 %v614
    %648 = vmatpush.bf16.msra.mxu0 %v612
    %649 = vmatpush.bf16.msra.mxu0 %v610
    %650 = vmatmul.bf16.gmra.mxu0 %v548
    %v651 = vpop.f32.mrf.mxu0
    %v652 = vadd.f32 0.0, %v651
    %v653 = vpop.f32.mrf.mxu0
    %v654 = vadd.f32 0.0, %v653
    %655 = vmatmul.bf16.gmra.mxu0 %v549
    %v656 = vpop.f32.mrf.mxu0
    %v657 = vadd.f32 0.0, %v656
    %v658 = vpop.f32.mrf.mxu0
    %v659 = vadd.f32 0.0, %v658
    %660 = vmatmul.bf16.gmra.mxu0 %v550
    %v661 = vpop.f32.mrf.mxu0
    %v662 = vadd.f32 0.0, %v661
    %v663 = vpop.f32.mrf.mxu0
    %v664 = vadd.f32 0.0, %v663
    %665 = vmatmul.bf16.gmra.mxu0 %v551
    %v666 = vpop.f32.mrf.mxu0
    %v667 = vadd.f32 0.0, %v666
    %v668 = vpop.f32.mrf.mxu0
    %v669 = vadd.f32 0.0, %v668
    %670 = vmatmul.bf16.gmra.mxu0 %v552
    %v671 = vpop.f32.mrf.mxu0
    %v672 = vadd.f32 0.0, %v671
    %v673 = vpop.f32.mrf.mxu0
    %v674 = vadd.f32 0.0, %v673
    %675 = vmatmul.bf16.gmra.mxu0 %v553
    %v676 = vpop.f32.mrf.mxu0
    %v677 = vadd.f32 0.0, %v676
    %v678 = vpop.f32.mrf.mxu0
    %v679 = vadd.f32 0.0, %v678
    %680 = vmatmul.bf16.gmra.mxu0 %v554
    %v681 = vpop.f32.mrf.mxu0
    %v682 = vadd.f32 0.0, %v681
    %v683 = vpop.f32.mrf.mxu0
    %v684 = vadd.f32 0.0, %v683
    %685 = vdwg.mxu0
    %686 = vmatpush.bf16.msra.mxu0 %v625
    %687 = vmatpush.bf16.msra.mxu0 %v623
    %688 = vmatpush.bf16.msra.mxu0 %v621
    %689 = vmatpush.bf16.msra.mxu0 %v619
    %690 = vmatpush.bf16.msra.mxu0 %v617
    %691 = vmatpush.bf16.msra.mxu0 %v615
    %692 = vmatpush.bf16.msra.mxu0 %v613
    %693 = vmatpush.bf16.msra.mxu0 %v611
    %694 = vmatmul.bf16.gmra.mxu0 %v548
    %v695 = vpop.f32.mrf.mxu0
    %v696 = vadd.f32 0.0, %v695
    %v697 = vpop.f32.mrf.mxu0
    %v698 = vadd.f32 0.0, %v697
    %699 = vmatmul.bf16.gmra.mxu0 %v549
    %v700 = vpop.f32.mrf.mxu0
    %v701 = vadd.f32 0.0, %v700
    %v702 = vpop.f32.mrf.mxu0
    %v703 = vadd.f32 0.0, %v702
    %704 = vmatmul.bf16.gmra.mxu0 %v550
    %v705 = vpop.f32.mrf.mxu0
    %v706 = vadd.f32 0.0, %v705
    %v707 = vpop.f32.mrf.mxu0
    %v708 = vadd.f32 0.0, %v707
    %709 = vmatmul.bf16.gmra.mxu0 %v551
    %v710 = vpop.f32.mrf.mxu0
    %v711 = vadd.f32 0.0, %v710
    %v712 = vpop.f32.mrf.mxu0
    %v713 = vadd.f32 0.0, %v712
    %714 = vmatmul.bf16.gmra.mxu0 %v552
    %v715 = vpop.f32.mrf.mxu0
    %v716 = vadd.f32 0.0, %v715
    %v717 = vpop.f32.mrf.mxu0
    %v718 = vadd.f32 0.0, %v717
    %719 = vmatmul.bf16.gmra.mxu0 %v553
    %v720 = vpop.f32.mrf.mxu0
    %v721 = vadd.f32 0.0, %v720
    %v722 = vpop.f32.mrf.mxu0
    %v723 = vadd.f32 0.0, %v722
    %724 = vmatmul.bf16.gmra.mxu0 %v554
    %v725 = vpop.f32.mrf.mxu0
    %v726 = vadd.f32 0.0, %v725
    %v727 = vpop.f32.mrf.mxu0
    %v728 = vadd.f32 0.0, %v727
    %729 = vdwg.mxu0
    %v732 = vunpack.c.l.b16 %v471
    %v733 = vunpack.c.l.b16 %v472
    %v734 = vpack.c.b16 %v733, %v732
    %v752 = vunpack.c.l.b16 %v485
    %v753 = vunpack.c.h.b16 %v485
    %v754 = vunpack.c.l.b16 %v486
    %v755 = vunpack.c.h.b16 %v486
    %v756 = vunpack.c.l.b16 %v487
    %v757 = vunpack.c.h.b16 %v487
    %v758 = vunpack.c.l.b16 %v488
    %v759 = vunpack.c.h.b16 %v488
    %v760 = vunpack.c.l.b16 %v489
    %v761 = vunpack.c.h.b16 %v489
    %v762 = vunpack.c.l.b16 %v490
    %v763 = vunpack.c.h.b16 %v490
    %v764 = vunpack.c.l.b16 %v491
    %v765 = vunpack.c.h.b16 %v491
    %v766 = vunpack.c.l.b16 %v492
    %v767 = vunpack.c.h.b16 %v492
    %v768 = vunpack.c.l.b16 %v493
    %v769 = vunpack.c.h.b16 %v493
    %v770 = vunpack.c.l.b16 %v494
    %v771 = vunpack.c.h.b16 %v494
    %v772 = vunpack.c.l.b16 %v495
    %v773 = vunpack.c.h.b16 %v495
    %v774 = vunpack.c.l.b16 %v496
    %v775 = vunpack.c.h.b16 %v496
    %v776 = vunpack.c.l.b16 %v497
    %v777 = vunpack.c.h.b16 %v497
    %v778 = vunpack.c.l.b16 %v498
    %v779 = vunpack.c.h.b16 %v498
    %v780 = vunpack.c.l.b16 %v499
    %v781 = vunpack.c.h.b16 %v499
    %v782 = vunpack.c.l.b16 %v500
    %v783 = vunpack.c.h.b16 %v500
    %v784 = vpack.c.b16 %v754, %v752
    %v785 = vpack.c.b16 %v755, %v753
    %v786 = vpack.c.b16 %v758, %v756
    %v787 = vpack.c.b16 %v759, %v757
    %v788 = vpack.c.b16 %v762, %v760
    %v789 = vpack.c.b16 %v763, %v761
    %v790 = vpack.c.b16 %v766, %v764
    %v791 = vpack.c.b16 %v767, %v765
    %v792 = vpack.c.b16 %v770, %v768
    %v793 = vpack.c.b16 %v771, %v769
    %v794 = vpack.c.b16 %v774, %v772
    %v795 = vpack.c.b16 %v775, %v773
    %v796 = vpack.c.b16 %v778, %v776
    %v797 = vpack.c.b16 %v779, %v777
    %v798 = vpack.c.b16 %v782, %v780
    %v799 = vpack.c.b16 %v783, %v781
    %816 = vmatpush.bf16.msra.mxu0 %v798
    %817 = vmatpush.bf16.msra.mxu0 %v796
    %818 = vmatpush.bf16.msra.mxu0 %v794
    %819 = vmatpush.bf16.msra.mxu0 %v792
    %820 = vmatpush.bf16.msra.mxu0 %v790
    %821 = vmatpush.bf16.msra.mxu0 %v788
    %822 = vmatpush.bf16.msra.mxu0 %v786
    %823 = vmatpush.bf16.msra.mxu0 %v784
    %824 = vmatmul.bf16.gmra.mxu0 %v734
    %v825 = vpop.f32.mrf.mxu0
    %v826 = vadd.f32 %v652, %v825
    %v827 = vpop.f32.mrf.mxu0
    %v828 = vadd.f32 %v654, %v827
    %829 = vmatmul.bf16.gmra.mxu0 %v548
    %v830 = vpop.f32.mrf.mxu0
    %v831 = vadd.f32 %v657, %v830
    %v832 = vpop.f32.mrf.mxu0
    %v833 = vadd.f32 %v659, %v832
    %834 = vmatmul.bf16.gmra.mxu0 %v549
    %v835 = vpop.f32.mrf.mxu0
    %v836 = vadd.f32 %v662, %v835
    %v837 = vpop.f32.mrf.mxu0
    %v838 = vadd.f32 %v664, %v837
    %839 = vmatmul.bf16.gmra.mxu0 %v550
    %v840 = vpop.f32.mrf.mxu0
    %v841 = vadd.f32 %v667, %v840
    %v842 = vpop.f32.mrf.mxu0
    %v843 = vadd.f32 %v669, %v842
    %844 = vmatmul.bf16.gmra.mxu0 %v551
    %v845 = vpop.f32.mrf.mxu0
    %v846 = vadd.f32 %v672, %v845
    %v847 = vpop.f32.mrf.mxu0
    %v848 = vadd.f32 %v674, %v847
    %849 = vmatmul.bf16.gmra.mxu0 %v552
    %v850 = vpop.f32.mrf.mxu0
    %v851 = vadd.f32 %v677, %v850
    %v852 = vpop.f32.mrf.mxu0
    %v853 = vadd.f32 %v679, %v852
    %854 = vmatmul.bf16.gmra.mxu0 %v553
    %v855 = vpop.f32.mrf.mxu0
    %v856 = vadd.f32 %v682, %v855
    %v857 = vpop.f32.mrf.mxu0
    %v858 = vadd.f32 %v684, %v857
    %859 = vdwg.mxu0
    %860 = vmatpush.bf16.msra.mxu0 %v799
    %861 = vmatpush.bf16.msra.mxu0 %v797
    %862 = vmatpush.bf16.msra.mxu0 %v795
    %863 = vmatpush.bf16.msra.mxu0 %v793
    %864 = vmatpush.bf16.msra.mxu0 %v791
    %865 = vmatpush.bf16.msra.mxu0 %v789
    %866 = vmatpush.bf16.msra.mxu0 %v787
    %867 = vmatpush.bf16.msra.mxu0 %v785
    %868 = vmatmul.bf16.gmra.mxu0 %v734
    %v869 = vpop.f32.mrf.mxu0
    %v870 = vadd.f32 %v696, %v869
    %v871 = vpop.f32.mrf.mxu0
    %v872 = vadd.f32 %v698, %v871
    %873 = vmatmul.bf16.gmra.mxu0 %v548
    %v874 = vpop.f32.mrf.mxu0
    %v875 = vadd.f32 %v701, %v874
    %v876 = vpop.f32.mrf.mxu0
    %v877 = vadd.f32 %v703, %v876
    %878 = vmatmul.bf16.gmra.mxu0 %v549
    %v879 = vpop.f32.mrf.mxu0
    %v880 = vadd.f32 %v706, %v879
    %v881 = vpop.f32.mrf.mxu0
    %v882 = vadd.f32 %v708, %v881
    %883 = vmatmul.bf16.gmra.mxu0 %v550
    %v884 = vpop.f32.mrf.mxu0
    %v885 = vadd.f32 %v711, %v884
    %v886 = vpop.f32.mrf.mxu0
    %v887 = vadd.f32 %v713, %v886
    %888 = vmatmul.bf16.gmra.mxu0 %v551
    %v889 = vpop.f32.mrf.mxu0
    %v890 = vadd.f32 %v716, %v889
    %v891 = vpop.f32.mrf.mxu0
    %v892 = vadd.f32 %v718, %v891
    %893 = vmatmul.bf16.gmra.mxu0 %v552
    %v894 = vpop.f32.mrf.mxu0
    %v895 = vadd.f32 %v721, %v894
    %v896 = vpop.f32.mrf.mxu0
    %v897 = vadd.f32 %v723, %v896
    %898 = vmatmul.bf16.gmra.mxu0 %v553
    %v899 = vpop.f32.mrf.mxu0
    %v900 = vadd.f32 %v726, %v899
    %v901 = vpop.f32.mrf.mxu0
    %v902 = vadd.f32 %v728, %v901
    %903 = vdwg.mxu0
    %v904 = vld [vmem:[#allocation2 + $0x40] sm:$0xf]
    %v905 = vld [vmem:[#allocation2 + $0x50] sm:$0xf]
    %v906 = vld [vmem:[#allocation2 + $0x60] sm:$0xf]
    %v907 = vld [vmem:[#allocation2 + $0x70] sm:$0xf]
    %v908 = vld [vmem:[#allocation2 + $0x80] sm:$0xf]
    %v909 = vld [vmem:[#allocation2 + $0x90] sm:$0xf]
    %v910 = vld [vmem:[#allocation2 + $0xa0] sm:$0xf]
    %v911 = vld [vmem:[#allocation2 + $0xb0] sm:$0xf]
    %v912 = vld [vmem:[#allocation2 + $0xc0] sm:$0xf]
    %v913 = vld [vmem:[#allocation2 + $0xd0] sm:$0xf]
    %v914 = vld [vmem:[#allocation2 + $0xe0] sm:$0xf]
    %v915 = vld [vmem:[#allocation2 + $0xf0] sm:$0xf]
    %v916 = vld [vmem:[#allocation2 + $0x100] sm:$0xf]
    %v917 = vld [vmem:[#allocation2 + $0x110] sm:$0xf]
    %s918 = scalar_lea.vmem %s3, 256
    %v919 = vld [vmem:[%s918] sm:$0xff]
    %v920 = vld [vmem:[%s918 + $0x8] sm:$0xff]
    %v921 = vld [vmem:[%s918 + $0x10] sm:$0xff]
    %v922 = vld [vmem:[%s918 + $0x18] sm:$0xff]
    %v923 = vld [vmem:[%s918 + $0x20] sm:$0xff]
    %v924 = vld [vmem:[%s918 + $0x28] sm:$0xff]
    %v925 = vld [vmem:[%s918 + $0x30] sm:$0xff]
    %v926 = vld [vmem:[%s918 + $0x38] sm:$0xff]
    %v927 = vld [vmem:[%s918 + $0x40] sm:$0xff]
    %v928 = vld [vmem:[%s918 + $0x48] sm:$0xff]
    %v929 = vld [vmem:[%s918 + $0x50] sm:$0xff]
    %v930 = vld [vmem:[%s918 + $0x58] sm:$0xff]
    %v931 = vld [vmem:[%s918 + $0x60] sm:$0xff]
    %v932 = vld [vmem:[%s918 + $0x68] sm:$0xff]
    %v933 = vld [vmem:[%s918 + $0x70] sm:$0xff]
    %v934 = vld [vmem:[%s918 + $0x78] sm:$0xff]
    %v949 = vunpack.c.l.b16 %v904
    %v950 = vunpack.c.l.b16 %v905
    %v951 = vunpack.c.l.b16 %v906
    %v952 = vunpack.c.l.b16 %v907
    %v953 = vunpack.c.l.b16 %v908
    %v954 = vunpack.c.l.b16 %v909
    %v955 = vunpack.c.l.b16 %v910
    %v956 = vunpack.c.l.b16 %v911
    %v957 = vunpack.c.l.b16 %v912
    %v958 = vunpack.c.l.b16 %v913
    %v959 = vunpack.c.l.b16 %v914
    %v960 = vunpack.c.l.b16 %v915
    %v961 = vunpack.c.l.b16 %v916
    %v962 = vunpack.c.l.b16 %v917
    %v963 = vpack.c.b16 %v950, %v949
    %v964 = vpack.c.b16 %v952, %v951
    %v965 = vpack.c.b16 %v954, %v953
    %v966 = vpack.c.b16 %v956, %v955
    %v967 = vpack.c.b16 %v958, %v957
    %v968 = vpack.c.b16 %v960, %v959
    %v969 = vpack.c.b16 %v962, %v961
    %v993 = vunpack.c.l.b16 %v919
    %v994 = vunpack.c.h.b16 %v919
    %v995 = vunpack.c.l.b16 %v920
    %v996 = vunpack.c.h.b16 %v920
    %v997 = vunpack.c.l.b16 %v921
    %v998 = vunpack.c.h.b16 %v921
    %v999 = vunpack.c.l.b16 %v922
    %v1000 = vunpack.c.h.b16 %v922
    %v1001 = vunpack.c.l.b16 %v923
    %v1002 = vunpack.c.h.b16 %v923
    %v1003 = vunpack.c.l.b16 %v924
    %v1004 = vunpack.c.h.b16 %v924
    %v1005 = vunpack.c.l.b16 %v925
    %v1006 = vunpack.c.h.b16 %v925
    %v1007 = vunpack.c.l.b16 %v926
    %v1008 = vunpack.c.h.b16 %v926
    %v1009 = vunpack.c.l.b16 %v927
    %v1010 = vunpack.c.h.b16 %v927
    %v1011 = vunpack.c.l.b16 %v928
    %v1012 = vunpack.c.h.b16 %v928
    %v1013 = vunpack.c.l.b16 %v929
    %v1014 = vunpack.c.h.b16 %v929
    %v1015 = vunpack.c.l.b16 %v930
    %v1016 = vunpack.c.h.b16 %v930
    %v1017 = vunpack.c.l.b16 %v931
    %v1018 = vunpack.c.h.b16 %v931
    %v1019 = vunpack.c.l.b16 %v932
    %v1020 = vunpack.c.h.b16 %v932
    %v1021 = vunpack.c.l.b16 %v933
    %v1022 = vunpack.c.h.b16 %v933
    %v1023 = vunpack.c.l.b16 %v934
    %v1024 = vunpack.c.h.b16 %v934
    %v1025 = vpack.c.b16 %v995, %v993
    %v1026 = vpack.c.b16 %v996, %v994
    %v1027 = vpack.c.b16 %v999, %v997
    %v1028 = vpack.c.b16 %v1000, %v998
    %v1029 = vpack.c.b16 %v1003, %v1001
    %v1030 = vpack.c.b16 %v1004, %v1002
    %v1031 = vpack.c.b16 %v1007, %v1005
    %v1032 = vpack.c.b16 %v1008, %v1006
    %v1033 = vpack.c.b16 %v1011, %v1009
    %v1034 = vpack.c.b16 %v1012, %v1010
    %v1035 = vpack.c.b16 %v1015, %v1013
    %v1036 = vpack.c.b16 %v1016, %v1014
    %v1037 = vpack.c.b16 %v1019, %v1017
    %v1038 = vpack.c.b16 %v1020, %v1018
    %v1039 = vpack.c.b16 %v1023, %v1021
    %v1040 = vpack.c.b16 %v1024, %v1022
    %1057 = vmatpush.bf16.msra.mxu0 %v1039
    %1058 = vmatpush.bf16.msra.mxu0 %v1037
    %1059 = vmatpush.bf16.msra.mxu0 %v1035
    %1060 = vmatpush.bf16.msra.mxu0 %v1033
    %1061 = vmatpush.bf16.msra.mxu0 %v1031
    %1062 = vmatpush.bf16.msra.mxu0 %v1029
    %1063 = vmatpush.bf16.msra.mxu0 %v1027
    %1064 = vmatpush.bf16.msra.mxu0 %v1025
    %1065 = vmatmul.bf16.gmra.mxu0 %v963
    %v1066 = vpop.f32.mrf.mxu0
    %v1067 = vadd.f32 0.0, %v1066
    %v1068 = vpop.f32.mrf.mxu0
    %v1069 = vadd.f32 0.0, %v1068
    %1070 = vmatmul.bf16.gmra.mxu0 %v964
    %v1071 = vpop.f32.mrf.mxu0
    %v1072 = vadd.f32 0.0, %v1071
    %v1073 = vpop.f32.mrf.mxu0
    %v1074 = vadd.f32 0.0, %v1073
    %1075 = vmatmul.bf16.gmra.mxu0 %v965
    %v1076 = vpop.f32.mrf.mxu0
    %v1077 = vadd.f32 0.0, %v1076
    %v1078 = vpop.f32.mrf.mxu0
    %v1079 = vadd.f32 0.0, %v1078
    %1080 = vmatmul.bf16.gmra.mxu0 %v966
    %v1081 = vpop.f32.mrf.mxu0
    %v1082 = vadd.f32 0.0, %v1081
    %v1083 = vpop.f32.mrf.mxu0
    %v1084 = vadd.f32 0.0, %v1083
    %1085 = vmatmul.bf16.gmra.mxu0 %v967
    %v1086 = vpop.f32.mrf.mxu0
    %v1087 = vadd.f32 0.0, %v1086
    %v1088 = vpop.f32.mrf.mxu0
    %v1089 = vadd.f32 0.0, %v1088
    %1090 = vmatmul.bf16.gmra.mxu0 %v968
    %v1091 = vpop.f32.mrf.mxu0
    %v1092 = vadd.f32 0.0, %v1091
    %v1093 = vpop.f32.mrf.mxu0
    %v1094 = vadd.f32 0.0, %v1093
    %1095 = vmatmul.bf16.gmra.mxu0 %v969
    %v1096 = vpop.f32.mrf.mxu0
    %v1097 = vadd.f32 0.0, %v1096
    %v1098 = vpop.f32.mrf.mxu0
    %v1099 = vadd.f32 0.0, %v1098
    %1100 = vdwg.mxu0
    %1101 = vmatpush.bf16.msra.mxu0 %v1040
    %1102 = vmatpush.bf16.msra.mxu0 %v1038
    %1103 = vmatpush.bf16.msra.mxu0 %v1036
    %1104 = vmatpush.bf16.msra.mxu0 %v1034
    %1105 = vmatpush.bf16.msra.mxu0 %v1032
    %1106 = vmatpush.bf16.msra.mxu0 %v1030
    %1107 = vmatpush.bf16.msra.mxu0 %v1028
    %1108 = vmatpush.bf16.msra.mxu0 %v1026
    %1109 = vmatmul.bf16.gmra.mxu0 %v963
    %v1110 = vpop.f32.mrf.mxu0
    %v1111 = vadd.f32 0.0, %v1110
    %v1112 = vpop.f32.mrf.mxu0
    %v1113 = vadd.f32 0.0, %v1112
    %1114 = vmatmul.bf16.gmra.mxu0 %v964
    %v1115 = vpop.f32.mrf.mxu0
    %v1116 = vadd.f32 0.0, %v1115
    %v1117 = vpop.f32.mrf.mxu0
    %v1118 = vadd.f32 0.0, %v1117
    %1119 = vmatmul.bf16.gmra.mxu0 %v965
    %v1120 = vpop.f32.mrf.mxu0
    %v1121 = vadd.f32 0.0, %v1120
    %v1122 = vpop.f32.mrf.mxu0
    %v1123 = vadd.f32 0.0, %v1122
    %1124 = vmatmul.bf16.gmra.mxu0 %v966
    %v1125 = vpop.f32.mrf.mxu0
    %v1126 = vadd.f32 0.0, %v1125
    %v1127 = vpop.f32.mrf.mxu0
    %v1128 = vadd.f32 0.0, %v1127
    %1129 = vmatmul.bf16.gmra.mxu0 %v967
    %v1130 = vpop.f32.mrf.mxu0
    %v1131 = vadd.f32 0.0, %v1130
    %v1132 = vpop.f32.mrf.mxu0
    %v1133 = vadd.f32 0.0, %v1132
    %1134 = vmatmul.bf16.gmra.mxu0 %v968
    %v1135 = vpop.f32.mrf.mxu0
    %v1136 = vadd.f32 0.0, %v1135
    %v1137 = vpop.f32.mrf.mxu0
    %v1138 = vadd.f32 0.0, %v1137
    %1139 = vmatmul.bf16.gmra.mxu0 %v969
    %v1140 = vpop.f32.mrf.mxu0
    %v1141 = vadd.f32 0.0, %v1140
    %v1142 = vpop.f32.mrf.mxu0
    %v1143 = vadd.f32 0.0, %v1142
    %1144 = vdwg.mxu0
    %v1145 = vadd.f32 %v826, %v1067
    %v1146 = vadd.f32 %v870, %v1111
    %v1147 = vadd.f32 %v828, %v1069
    %v1148 = vadd.f32 %v872, %v1113
    %v1149 = vadd.f32 %v831, %v1072
    %v1150 = vadd.f32 %v875, %v1116
    %v1151 = vadd.f32 %v833, %v1074
    %v1152 = vadd.f32 %v877, %v1118
    %v1153 = vadd.f32 %v836, %v1077
    %v1154 = vadd.f32 %v880, %v1121
    %v1155 = vadd.f32 %v838, %v1079
    %v1156 = vadd.f32 %v882, %v1123
    %v1157 = vadd.f32 %v841, %v1082
    %v1158 = vadd.f32 %v885, %v1126
    %v1159 = vadd.f32 %v843, %v1084
    %v1160 = vadd.f32 %v887, %v1128
    %v1161 = vadd.f32 %v846, %v1087
    %v1162 = vadd.f32 %v890, %v1131
    %v1163 = vadd.f32 %v848, %v1089
    %v1164 = vadd.f32 %v892, %v1133
    %v1165 = vadd.f32 %v851, %v1092
    %v1166 = vadd.f32 %v895, %v1136
    %v1167 = vadd.f32 %v853, %v1094
    %v1168 = vadd.f32 %v897, %v1138
    %v1169 = vadd.f32 %v856, %v1097
    %v1170 = vadd.f32 %v900, %v1141
    %v1171 = vadd.f32 %v858, %v1099
    %v1172 = vadd.f32 %v902, %v1143
    %v1173 = vld [vmem:[%s4] sm:$0x3]
    %v1175 = vperm.slane %v1173, 0
    %v1176 = vperm.slane %v1173, 1
    %v1179 = vadd.f32 %v1145, %v1175
    %v1180 = vadd.f32 %v1146, %v1176
    %v1181 = vadd.f32 %v1147, %v1175
    %v1182 = vadd.f32 %v1148, %v1176
    %v1183 = vadd.f32 %v1149, %v1175
    %v1184 = vadd.f32 %v1150, %v1176
    %v1185 = vadd.f32 %v1151, %v1175
    %v1186 = vadd.f32 %v1152, %v1176
    %v1187 = vadd.f32 %v1153, %v1175
    %v1188 = vadd.f32 %v1154, %v1176
    %v1189 = vadd.f32 %v1155, %v1175
    %v1190 = vadd.f32 %v1156, %v1176
    %v1191 = vadd.f32 %v1157, %v1175
    %v1192 = vadd.f32 %v1158, %v1176
    %v1193 = vadd.f32 %v1159, %v1175
    %v1194 = vadd.f32 %v1160, %v1176
    %v1195 = vadd.f32 %v1161, %v1175
    %v1196 = vadd.f32 %v1162, %v1176
    %v1197 = vadd.f32 %v1163, %v1175
    %v1198 = vadd.f32 %v1164, %v1176
    %v1199 = vadd.f32 %v1165, %v1175
    %v1200 = vadd.f32 %v1166, %v1176
    %v1201 = vadd.f32 %v1167, %v1175
    %v1202 = vadd.f32 %v1168, %v1176
    %v1203 = vadd.f32 %v1169, %v1175
    %v1204 = vadd.f32 %v1170, %v1176
    %v1205 = vadd.f32 %v1171, %v1175
    %v1206 = vadd.f32 %v1172, %v1176
    %v1207 = vmax.f32 %v1179, 0.0
    %v1208 = vmax.f32 %v1180, 0.0
    %v1209 = vmax.f32 %v1181, 0.0
    %v1210 = vmax.f32 %v1182, 0.0
    %v1211 = vmax.f32 %v1183, 0.0
    %v1212 = vmax.f32 %v1184, 0.0
    %v1213 = vmax.f32 %v1185, 0.0
    %v1214 = vmax.f32 %v1186, 0.0
    %v1215 = vmax.f32 %v1187, 0.0
    %v1216 = vmax.f32 %v1188, 0.0
    %v1217 = vmax.f32 %v1189, 0.0
    %v1218 = vmax.f32 %v1190, 0.0
    %v1219 = vmax.f32 %v1191, 0.0
    %v1220 = vmax.f32 %v1192, 0.0
    %v1221 = vmax.f32 %v1193, 0.0
    %v1222 = vmax.f32 %v1194, 0.0
    %v1223 = vmax.f32 %v1195, 0.0
    %v1224 = vmax.f32 %v1196, 0.0
    %v1225 = vmax.f32 %v1197, 0.0
    %v1226 = vmax.f32 %v1198, 0.0
    %v1227 = vmax.f32 %v1199, 0.0
    %v1228 = vmax.f32 %v1200, 0.0
    %v1229 = vmax.f32 %v1201, 0.0
    %v1230 = vmax.f32 %v1202, 0.0
    %v1231 = vmax.f32 %v1203, 0.0
    %v1232 = vmax.f32 %v1204, 0.0
    %v1233 = vmax.f32 %v1205, 0.0
    %v1234 = vmax.f32 %v1206, 0.0
    %v1235 = vpack.c.bf16 %v1208, %v1207
    %v1236 = vpack.c.bf16 %v1210, %v1209
    %v1237 = vpack.c.bf16 %v1212, %v1211
    %v1238 = vpack.c.bf16 %v1214, %v1213
    %v1239 = vpack.c.bf16 %v1216, %v1215
    %v1240 = vpack.c.bf16 %v1218, %v1217
    %v1241 = vpack.c.bf16 %v1220, %v1219
    %v1242 = vpack.c.bf16 %v1222, %v1221
    %v1243 = vpack.c.bf16 %v1224, %v1223
    %v1244 = vpack.c.bf16 %v1226, %v1225
    %v1245 = vpack.c.bf16 %v1228, %v1227
    %v1246 = vpack.c.bf16 %v1230, %v1229
    %v1247 = vpack.c.bf16 %v1232, %v1231
    %v1248 = vpack.c.bf16 %v1234, %v1233
    %1249 = vst [vmem:[#allocation3 + $0x10] sm:$0xff] %v1235
    %1250 = vst [vmem:[#allocation3 + $0x18] sm:$0xff] %v1236
    %1251 = vst [vmem:[#allocation3 + $0x20] sm:$0xff] %v1237
    %1252 = vst [vmem:[#allocation3 + $0x28] sm:$0xff] %v1238
    %1253 = vst [vmem:[#allocation3 + $0x30] sm:$0xff] %v1239
    %1254 = vst [vmem:[#allocation3 + $0x38] sm:$0xff] %v1240
    %1255 = vst [vmem:[#allocation3 + $0x40] sm:$0xff] %v1241
    %1256 = vst [vmem:[#allocation3 + $0x48] sm:$0xff] %v1242
    %1257 = vst [vmem:[#allocation3 + $0x50] sm:$0xff] %v1243
    %1258 = vst [vmem:[#allocation3 + $0x58] sm:$0xff] %v1244
    %1259 = vst [vmem:[#allocation3 + $0x60] sm:$0xff] %v1245
    %1260 = vst [vmem:[#allocation3 + $0x68] sm:$0xff] %v1246
    %1261 = vst [vmem:[#allocation3 + $0x70] sm:$0xff] %v1247
    %1262 = vst [vmem:[#allocation3 + $0x78] sm:$0xff] %v1248
    %v1263 = vld [vmem:[#allocation3] sm:$0xff]
    %v1264 = vld [vmem:[#allocation3 + $0x8] sm:$0xff]
    %v1265 = vld [vmem:[#allocation3 + $0x10] sm:$0xff]
    %v1266 = vld [vmem:[#allocation3 + $0x18] sm:$0xff]
    %v1267 = vld [vmem:[#allocation3 + $0x20] sm:$0xff]
    %v1268 = vld [vmem:[#allocation3 + $0x28] sm:$0xff]
    %v1269 = vld [vmem:[#allocation3 + $0x30] sm:$0xff]
    %v1270 = vld [vmem:[#allocation3 + $0x38] sm:$0xff]
    %v1271 = vld [vmem:[#allocation3 + $0x40] sm:$0xff]
    %v1272 = vld [vmem:[#allocation3 + $0x48] sm:$0xff]
    %v1273 = vld [vmem:[#allocation3 + $0x50] sm:$0xff]
    %v1274 = vld [vmem:[#allocation3 + $0x58] sm:$0xff]
    %v1275 = vld [vmem:[#allocation3 + $0x60] sm:$0xff]
    %v1276 = vld [vmem:[#allocation3 + $0x68] sm:$0xff]
    %v1277 = vld [vmem:[#allocation4] sm:$0xff]
    %v1278 = vld [vmem:[#allocation4 + $0x8] sm:$0xff]
    %v1279 = vld [vmem:[#allocation4 + $0x10] sm:$0xff]
    %v1280 = vld [vmem:[#allocation4 + $0x18] sm:$0xff]
    %v1281 = vld [vmem:[#allocation4 + $0x20] sm:$0xff]
    %v1282 = vld [vmem:[#allocation4 + $0x28] sm:$0xff]
    %v1283 = vld [vmem:[#allocation4 + $0x30] sm:$0xff]
    %v1284 = vld [vmem:[#allocation4 + $0x38] sm:$0xff]
    %v1285 = vld [vmem:[#allocation4 + $0x40] sm:$0xff]
    %v1286 = vld [vmem:[#allocation4 + $0x48] sm:$0xff]
    %v1287 = vld [vmem:[#allocation4 + $0x50] sm:$0xff]
    %v1288 = vld [vmem:[#allocation4 + $0x58] sm:$0xff]
    %v1289 = vld [vmem:[#allocation4 + $0x60] sm:$0xff]
    %v1290 = vld [vmem:[#allocation4 + $0x68] sm:$0xff]
    %v1291 = vld [vmem:[#allocation4 + $0x70] sm:$0xff]
    %v1292 = vld [vmem:[#allocation4 + $0x78] sm:$0xff]
    %v1293 = vld [vmem:[#allocation4 + $0x80] sm:$0xff]
    %v1294 = vld [vmem:[#allocation4 + $0x88] sm:$0xff]
    %v1295 = vld [vmem:[#allocation4 + $0x90] sm:$0xff]
    %v1296 = vld [vmem:[#allocation4 + $0x98] sm:$0xff]
    %v1297 = vld [vmem:[#allocation4 + $0xa0] sm:$0xff]
    %v1298 = vld [vmem:[#allocation4 + $0xa8] sm:$0xff]
    %v1299 = vld [vmem:[#allocation4 + $0xb0] sm:$0xff]
    %v1300 = vld [vmem:[#allocation4 + $0xb8] sm:$0xff]
    %v1301 = vld [vmem:[#allocation4 + $0xc0] sm:$0xff]
    %v1302 = vld [vmem:[#allocation4 + $0xc8] sm:$0xff]
    %v1303 = vld [vmem:[#allocation4 + $0xd0] sm:$0xff]
    %v1304 = vld [vmem:[#allocation4 + $0xd8] sm:$0xff]
    %v1305 = vld [vmem:[#allocation4 + $0xe0] sm:$0xff]
    %v1306 = vld [vmem:[#allocation4 + $0xe8] sm:$0xff]
    %v1307 = vld [vmem:[#allocation4 + $0xf0] sm:$0xff]
    %v1308 = vld [vmem:[#allocation4 + $0xf8] sm:$0xff]
    %v1309 = vld [vmem:[#allocation4 + $0x100] sm:$0xff]
    %v1310 = vld [vmem:[#allocation4 + $0x108] sm:$0xff]
    %v1311 = vld [vmem:[#allocation4 + $0x110] sm:$0xff]
    %v1312 = vld [vmem:[#allocation4 + $0x118] sm:$0xff]
    %v1313 = vld [vmem:[#allocation4 + $0x120] sm:$0xff]
    %v1314 = vld [vmem:[#allocation4 + $0x128] sm:$0xff]
    %v1315 = vld [vmem:[#allocation4 + $0x130] sm:$0xff]
    %v1316 = vld [vmem:[#allocation4 + $0x138] sm:$0xff]
    %v1317 = vld [vmem:[#allocation4 + $0x140] sm:$0xff]
    %v1318 = vld [vmem:[#allocation4 + $0x148] sm:$0xff]
    %v1319 = vld [vmem:[#allocation4 + $0x150] sm:$0xff]
    %v1320 = vld [vmem:[#allocation4 + $0x158] sm:$0xff]
    %v1321 = vld [vmem:[#allocation4 + $0x160] sm:$0xff]
    %v1322 = vld [vmem:[#allocation4 + $0x168] sm:$0xff]
    %v1323 = vld [vmem:[#allocation4 + $0x170] sm:$0xff]
    %v1324 = vld [vmem:[#allocation4 + $0x178] sm:$0xff]
    %v1325 = vld [vmem:[#allocation4 + $0x180] sm:$0xff]
    %v1326 = vld [vmem:[#allocation4 + $0x188] sm:$0xff]
    %v1327 = vld [vmem:[#allocation4 + $0x190] sm:$0xff]
    %v1328 = vld [vmem:[#allocation4 + $0x198] sm:$0xff]
    %v1329 = vld [vmem:[#allocation4 + $0x1a0] sm:$0xff]
    %v1330 = vld [vmem:[#allocation4 + $0x1a8] sm:$0xff]
    %v1331 = vld [vmem:[#allocation4 + $0x1b0] sm:$0xff]
    %v1332 = vld [vmem:[#allocation4 + $0x1b8] sm:$0xff]
    %v1333 = vld [vmem:[#allocation4 + $0x1c0] sm:$0xff]
    %v1334 = vld [vmem:[#allocation4 + $0x1c8] sm:$0xff]
    %v1335 = vld [vmem:[#allocation4 + $0x1d0] sm:$0xff]
    %v1336 = vld [vmem:[#allocation4 + $0x1d8] sm:$0xff]
    %v1337 = vld [vmem:[#allocation4 + $0x1e0] sm:$0xff]
    %v1338 = vld [vmem:[#allocation4 + $0x1e8] sm:$0xff]
    %v1339 = vld [vmem:[#allocation4 + $0x1f0] sm:$0xff]
    %v1340 = vld [vmem:[#allocation4 + $0x1f8] sm:$0xff]
    %v1341 = vld [vmem:[#allocation3 + $0x70] sm:$0xff]
    %v1342 = vld [vmem:[#allocation3 + $0x78] sm:$0xff]
    %s1343 = scalar_lea.vmem [#allocation4], 512
    %v1344 = vld [vmem:[%s1343] sm:$0xff]
    %v1345 = vld [vmem:[%s1343 + $0x8] sm:$0xff]
    %v1346 = vld [vmem:[%s1343 + $0x10] sm:$0xff]
    %v1347 = vld [vmem:[%s1343 + $0x18] sm:$0xff]
    %v1348 = vld [vmem:[%s1343 + $0x20] sm:$0xff]
    %v1349 = vld [vmem:[%s1343 + $0x28] sm:$0xff]
    %v1350 = vld [vmem:[%s1343 + $0x30] sm:$0xff]
    %v1351 = vld [vmem:[%s1343 + $0x38] sm:$0xff]
    %v1352 = vld [vmem:[%s1343 + $0x40] sm:$0xff]
    %v1353 = vld [vmem:[%s1343 + $0x48] sm:$0xff]
    %v1354 = vld [vmem:[%s1343 + $0x50] sm:$0xff]
    %v1355 = vld [vmem:[%s1343 + $0x58] sm:$0xff]
    %v1356 = vld [vmem:[%s1343 + $0x60] sm:$0xff]
    %v1357 = vld [vmem:[%s1343 + $0x68] sm:$0xff]
    %v1358 = vld [vmem:[%s1343 + $0x70] sm:$0xff]
    %v1359 = vld [vmem:[%s1343 + $0x78] sm:$0xff]
    %v1360 = vld [vmem:[%s1343 + $0x80] sm:$0xff]
    %v1361 = vld [vmem:[%s1343 + $0x88] sm:$0xff]
    %v1362 = vld [vmem:[%s1343 + $0x90] sm:$0xff]
    %v1363 = vld [vmem:[%s1343 + $0x98] sm:$0xff]
    %v1364 = vld [vmem:[%s1343 + $0xa0] sm:$0xff]
    %v1365 = vld [vmem:[%s1343 + $0xa8] sm:$0xff]
    %v1366 = vld [vmem:[%s1343 + $0xb0] sm:$0xff]
    %v1367 = vld [vmem:[%s1343 + $0xb8] sm:$0xff]
    %v1368 = vld [vmem:[%s1343 + $0xc0] sm:$0xff]
    %v1369 = vld [vmem:[%s1343 + $0xc8] sm:$0xff]
    %v1370 = vld [vmem:[%s1343 + $0xd0] sm:$0xff]
    %v1371 = vld [vmem:[%s1343 + $0xd8] sm:$0xff]
    %v1372 = vld [vmem:[%s1343 + $0xe0] sm:$0xff]
    %v1373 = vld [vmem:[%s1343 + $0xe8] sm:$0xff]
    %v1374 = vld [vmem:[%s1343 + $0xf0] sm:$0xff]
    %v1375 = vld [vmem:[%s1343 + $0xf8] sm:$0xff]
    %v1376 = vld [vmem:[%s1343 + $0x100] sm:$0xff]
    %v1377 = vld [vmem:[%s1343 + $0x108] sm:$0xff]
    %v1378 = vld [vmem:[%s1343 + $0x110] sm:$0xff]
    %v1379 = vld [vmem:[%s1343 + $0x118] sm:$0xff]
    %v1380 = vld [vmem:[%s1343 + $0x120] sm:$0xff]
    %v1381 = vld [vmem:[%s1343 + $0x128] sm:$0xff]
    %v1382 = vld [vmem:[%s1343 + $0x130] sm:$0xff]
    %v1383 = vld [vmem:[%s1343 + $0x138] sm:$0xff]
    %v1384 = vld [vmem:[%s1343 + $0x140] sm:$0xff]
    %v1385 = vld [vmem:[%s1343 + $0x148] sm:$0xff]
    %v1386 = vld [vmem:[%s1343 + $0x150] sm:$0xff]
    %v1387 = vld [vmem:[%s1343 + $0x158] sm:$0xff]
    %v1388 = vld [vmem:[%s1343 + $0x160] sm:$0xff]
    %v1389 = vld [vmem:[%s1343 + $0x168] sm:$0xff]
    %v1390 = vld [vmem:[%s1343 + $0x170] sm:$0xff]
    %v1391 = vld [vmem:[%s1343 + $0x178] sm:$0xff]
    %v1392 = vld [vmem:[%s1343 + $0x180] sm:$0xff]
    %v1393 = vld [vmem:[%s1343 + $0x188] sm:$0xff]
    %v1394 = vld [vmem:[%s1343 + $0x190] sm:$0xff]
    %v1395 = vld [vmem:[%s1343 + $0x198] sm:$0xff]
    %v1396 = vld [vmem:[%s1343 + $0x1a0] sm:$0xff]
    %v1397 = vld [vmem:[%s1343 + $0x1a8] sm:$0xff]
    %v1398 = vld [vmem:[%s1343 + $0x1b0] sm:$0xff]
    %v1399 = vld [vmem:[%s1343 + $0x1b8] sm:$0xff]
    %v1400 = vld [vmem:[%s1343 + $0x1c0] sm:$0xff]
    %v1401 = vld [vmem:[%s1343 + $0x1c8] sm:$0xff]
    %v1402 = vld [vmem:[%s1343 + $0x1d0] sm:$0xff]
    %v1403 = vld [vmem:[%s1343 + $0x1d8] sm:$0xff]
    %v1404 = vld [vmem:[%s1343 + $0x1e0] sm:$0xff]
    %v1405 = vld [vmem:[%s1343 + $0x1e8] sm:$0xff]
    %v1406 = vld [vmem:[%s1343 + $0x1f0] sm:$0xff]
    %v1407 = vld [vmem:[%s1343 + $0x1f8] sm:$0xff]
    %v1422 = vunpack.c.l.b16 %v1265
    %v1423 = vunpack.c.h.b16 %v1265
    %v1424 = vunpack.c.l.b16 %v1266
    %v1425 = vunpack.c.h.b16 %v1266
    %v1426 = vunpack.c.l.b16 %v1267
    %v1427 = vunpack.c.h.b16 %v1267
    %v1428 = vunpack.c.l.b16 %v1268
    %v1429 = vunpack.c.h.b16 %v1268
    %v1430 = vunpack.c.l.b16 %v1269
    %v1431 = vunpack.c.h.b16 %v1269
    %v1432 = vunpack.c.l.b16 %v1270
    %v1433 = vunpack.c.h.b16 %v1270
    %v1434 = vunpack.c.l.b16 %v1271
    %v1435 = vunpack.c.h.b16 %v1271
    %v1436 = vunpack.c.l.b16 %v1272
    %v1437 = vunpack.c.h.b16 %v1272
    %v1438 = vunpack.c.l.b16 %v1273
    %v1439 = vunpack.c.h.b16 %v1273
    %v1440 = vunpack.c.l.b16 %v1274
    %v1441 = vunpack.c.h.b16 %v1274
    %v1442 = vunpack.c.l.b16 %v1275
    %v1443 = vunpack.c.h.b16 %v1275
    %v1444 = vunpack.c.l.b16 %v1276
    %v1445 = vunpack.c.h.b16 %v1276
    %v1446 = vunpack.c.l.b16 %v1341
    %v1447 = vunpack.c.h.b16 %v1341
    %v1448 = vunpack.c.l.b16 %v1342
    %v1449 = vunpack.c.h.b16 %v1342
    %v1450 = vpack.c.b16 %v1424, %v1422
    %v1451 = vpack.c.b16 %v1425, %v1423
    %v1452 = vpack.c.b16 %v1428, %v1426
    %v1453 = vpack.c.b16 %v1429, %v1427
    %v1454 = vpack.c.b16 %v1432, %v1430
    %v1455 = vpack.c.b16 %v1433, %v1431
    %v1456 = vpack.c.b16 %v1436, %v1434
    %v1457 = vpack.c.b16 %v1437, %v1435
    %v1458 = vpack.c.b16 %v1440, %v1438
    %v1459 = vpack.c.b16 %v1441, %v1439
    %v1460 = vpack.c.b16 %v1444, %v1442
    %v1461 = vpack.c.b16 %v1445, %v1443
    %v1462 = vpack.c.b16 %v1448, %v1446
    %v1463 = vpack.c.b16 %v1449, %v1447
    %v1542 = vunpack.c.l.b16 %v1344
    %v1543 = vunpack.c.h.b16 %v1344
    %v1544 = vunpack.c.l.b16 %v1345
    %v1545 = vunpack.c.h.b16 %v1345
    %v1546 = vunpack.c.l.b16 %v1346
    %v1547 = vunpack.c.h.b16 %v1346
    %v1548 = vunpack.c.l.b16 %v1347
    %v1549 = vunpack.c.h.b16 %v1347
    %v1550 = vunpack.c.l.b16 %v1348
    %v1551 = vunpack.c.h.b16 %v1348
    %v1552 = vunpack.c.l.b16 %v1349
    %v1553 = vunpack.c.h.b16 %v1349
    %v1554 = vunpack.c.l.b16 %v1350
    %v1555 = vunpack.c.h.b16 %v1350
    %v1556 = vunpack.c.l.b16 %v1351
    %v1557 = vunpack.c.h.b16 %v1351
    %v1558 = vunpack.c.l.b16 %v1352
    %v1559 = vunpack.c.h.b16 %v1352
    %v1560 = vunpack.c.l.b16 %v1353
    %v1561 = vunpack.c.h.b16 %v1353
    %v1562 = vunpack.c.l.b16 %v1354
    %v1563 = vunpack.c.h.b16 %v1354
    %v1564 = vunpack.c.l.b16 %v1355
    %v1565 = vunpack.c.h.b16 %v1355
    %v1566 = vunpack.c.l.b16 %v1356
    %v1567 = vunpack.c.h.b16 %v1356
    %v1568 = vunpack.c.l.b16 %v1357
    %v1569 = vunpack.c.h.b16 %v1357
    %v1570 = vunpack.c.l.b16 %v1358
    %v1571 = vunpack.c.h.b16 %v1358
    %v1572 = vunpack.c.l.b16 %v1359
    %v1573 = vunpack.c.h.b16 %v1359
    %v1574 = vunpack.c.l.b16 %v1360
    %v1575 = vunpack.c.h.b16 %v1360
    %v1576 = vunpack.c.l.b16 %v1361
    %v1577 = vunpack.c.h.b16 %v1361
    %v1578 = vunpack.c.l.b16 %v1362
    %v1579 = vunpack.c.h.b16 %v1362
    %v1580 = vunpack.c.l.b16 %v1363
    %v1581 = vunpack.c.h.b16 %v1363
    %v1582 = vunpack.c.l.b16 %v1364
    %v1583 = vunpack.c.h.b16 %v1364
    %v1584 = vunpack.c.l.b16 %v1365
    %v1585 = vunpack.c.h.b16 %v1365
    %v1586 = vunpack.c.l.b16 %v1366
    %v1587 = vunpack.c.h.b16 %v1366
    %v1588 = vunpack.c.l.b16 %v1367
    %v1589 = vunpack.c.h.b16 %v1367
    %v1590 = vunpack.c.l.b16 %v1368
    %v1591 = vunpack.c.h.b16 %v1368
    %v1592 = vunpack.c.l.b16 %v1369
    %v1593 = vunpack.c.h.b16 %v1369
    %v1594 = vunpack.c.l.b16 %v1370
    %v1595 = vunpack.c.h.b16 %v1370
    %v1596 = vunpack.c.l.b16 %v1371
    %v1597 = vunpack.c.h.b16 %v1371
    %v1598 = vunpack.c.l.b16 %v1372
    %v1599 = vunpack.c.h.b16 %v1372
    %v1600 = vunpack.c.l.b16 %v1373
    %v1601 = vunpack.c.h.b16 %v1373
    %v1602 = vunpack.c.l.b16 %v1374
    %v1603 = vunpack.c.h.b16 %v1374
    %v1604 = vunpack.c.l.b16 %v1375
    %v1605 = vunpack.c.h.b16 %v1375
    %v1606 = vunpack.c.l.b16 %v1376
    %v1607 = vunpack.c.h.b16 %v1376
    %v1608 = vunpack.c.l.b16 %v1377
    %v1609 = vunpack.c.h.b16 %v1377
    %v1610 = vunpack.c.l.b16 %v1378
    %v1611 = vunpack.c.h.b16 %v1378
    %v1612 = vunpack.c.l.b16 %v1379
    %v1613 = vunpack.c.h.b16 %v1379
    %v1614 = vunpack.c.l.b16 %v1380
    %v1615 = vunpack.c.h.b16 %v1380
    %v1616 = vunpack.c.l.b16 %v1381
    %v1617 = vunpack.c.h.b16 %v1381
    %v1618 = vunpack.c.l.b16 %v1382
    %v1619 = vunpack.c.h.b16 %v1382
    %v1620 = vunpack.c.l.b16 %v1383
    %v1621 = vunpack.c.h.b16 %v1383
    %v1622 = vunpack.c.l.b16 %v1384
    %v1623 = vunpack.c.h.b16 %v1384
    %v1624 = vunpack.c.l.b16 %v1385
    %v1625 = vunpack.c.h.b16 %v1385
    %v1626 = vunpack.c.l.b16 %v1386
    %v1627 = vunpack.c.h.b16 %v1386
    %v1628 = vunpack.c.l.b16 %v1387
    %v1629 = vunpack.c.h.b16 %v1387
    %v1630 = vunpack.c.l.b16 %v1388
    %v1631 = vunpack.c.h.b16 %v1388
    %v1632 = vunpack.c.l.b16 %v1389
    %v1633 = vunpack.c.h.b16 %v1389
    %v1634 = vunpack.c.l.b16 %v1390
    %v1635 = vunpack.c.h.b16 %v1390
    %v1636 = vunpack.c.l.b16 %v1391
    %v1637 = vunpack.c.h.b16 %v1391
    %v1638 = vunpack.c.l.b16 %v1392
    %v1639 = vunpack.c.h.b16 %v1392
    %v1640 = vunpack.c.l.b16 %v1393
    %v1641 = vunpack.c.h.b16 %v1393
    %v1642 = vunpack.c.l.b16 %v1394
    %v1643 = vunpack.c.h.b16 %v1394
    %v1644 = vunpack.c.l.b16 %v1395
    %v1645 = vunpack.c.h.b16 %v1395
    %v1646 = vunpack.c.l.b16 %v1396
    %v1647 = vunpack.c.h.b16 %v1396
    %v1648 = vunpack.c.l.b16 %v1397
    %v1649 = vunpack.c.h.b16 %v1397
    %v1650 = vunpack.c.l.b16 %v1398
    %v1651 = vunpack.c.h.b16 %v1398
    %v1652 = vunpack.c.l.b16 %v1399
    %v1653 = vunpack.c.h.b16 %v1399
    %v1654 = vunpack.c.l.b16 %v1400
    %v1655 = vunpack.c.h.b16 %v1400
    %v1656 = vunpack.c.l.b16 %v1401
    %v1657 = vunpack.c.h.b16 %v1401
    %v1658 = vunpack.c.l.b16 %v1402
    %v1659 = vunpack.c.h.b16 %v1402
    %v1660 = vunpack.c.l.b16 %v1403
    %v1661 = vunpack.c.h.b16 %v1403
    %v1662 = vunpack.c.l.b16 %v1404
    %v1663 = vunpack.c.h.b16 %v1404
    %v1664 = vunpack.c.l.b16 %v1405
    %v1665 = vunpack.c.h.b16 %v1405
    %v1666 = vunpack.c.l.b16 %v1406
    %v1667 = vunpack.c.h.b16 %v1406
    %v1668 = vunpack.c.l.b16 %v1407
    %v1669 = vunpack.c.h.b16 %v1407
    %v1670 = vpack.c.b16 %v1546, %v1542
    %v1671 = vpack.c.b16 %v1547, %v1543
    %v1672 = vpack.c.b16 %v1548, %v1544
    %v1673 = vpack.c.b16 %v1549, %v1545
    %v1674 = vpack.c.b16 %v1554, %v1550
    %v1675 = vpack.c.b16 %v1555, %v1551
    %v1676 = vpack.c.b16 %v1556, %v1552
    %v1677 = vpack.c.b16 %v1557, %v1553
    %v1678 = vpack.c.b16 %v1562, %v1558
    %v1679 = vpack.c.b16 %v1563, %v1559
    %v1680 = vpack.c.b16 %v1564, %v1560
    %v1681 = vpack.c.b16 %v1565, %v1561
    %v1682 = vpack.c.b16 %v1570, %v1566
    %v1683 = vpack.c.b16 %v1571, %v1567
    %v1684 = vpack.c.b16 %v1572, %v1568
    %v1685 = vpack.c.b16 %v1573, %v1569
    %v1686 = vpack.c.b16 %v1578, %v1574
    %v1687 = vpack.c.b16 %v1579, %v1575
    %v1688 = vpack.c.b16 %v1580, %v1576
    %v1689 = vpack.c.b16 %v1581, %v1577
    %v1690 = vpack.c.b16 %v1586, %v1582
    %v1691 = vpack.c.b16 %v1587, %v1583
    %v1692 = vpack.c.b16 %v1588, %v1584
    %v1693 = vpack.c.b16 %v1589, %v1585
    %v1694 = vpack.c.b16 %v1594, %v1590
    %v1695 = vpack.c.b16 %v1595, %v1591
    %v1696 = vpack.c.b16 %v1596, %v1592
    %v1697 = vpack.c.b16 %v1597, %v1593
    %v1698 = vpack.c.b16 %v1602, %v1598
    %v1699 = vpack.c.b16 %v1603, %v1599
    %v1700 = vpack.c.b16 %v1604, %v1600
    %v1701 = vpack.c.b16 %v1605, %v1601
    %v1702 = vpack.c.b16 %v1610, %v1606
    %v1703 = vpack.c.b16 %v1611, %v1607
    %v1704 = vpack.c.b16 %v1612, %v1608
    %v1705 = vpack.c.b16 %v1613, %v1609
    %v1706 = vpack.c.b16 %v1618, %v1614
    %v1707 = vpack.c.b16 %v1619, %v1615
    %v1708 = vpack.c.b16 %v1620, %v1616
    %v1709 = vpack.c.b16 %v1621, %v1617
    %v1710 = vpack.c.b16 %v1626, %v1622
    %v1711 = vpack.c.b16 %v1627, %v1623
    %v1712 = vpack.c.b16 %v1628, %v1624
    %v1713 = vpack.c.b16 %v1629, %v1625
    %v1714 = vpack.c.b16 %v1634, %v1630
    %v1715 = vpack.c.b16 %v1635, %v1631
    %v1716 = vpack.c.b16 %v1636, %v1632
    %v1717 = vpack.c.b16 %v1637, %v1633
    %v1718 = vpack.c.b16 %v1642, %v1638
    %v1719 = vpack.c.b16 %v1643, %v1639
    %v1720 = vpack.c.b16 %v1644, %v1640
    %v1721 = vpack.c.b16 %v1645, %v1641
    %v1722 = vpack.c.b16 %v1650, %v1646
    %v1723 = vpack.c.b16 %v1651, %v1647
    %v1724 = vpack.c.b16 %v1652, %v1648
    %v1725 = vpack.c.b16 %v1653, %v1649
    %v1726 = vpack.c.b16 %v1658, %v1654
    %v1727 = vpack.c.b16 %v1659, %v1655
    %v1728 = vpack.c.b16 %v1660, %v1656
    %v1729 = vpack.c.b16 %v1661, %v1657
    %v1730 = vpack.c.b16 %v1666, %v1662
    %v1731 = vpack.c.b16 %v1667, %v1663
    %v1732 = vpack.c.b16 %v1668, %v1664
    %v1733 = vpack.c.b16 %v1669, %v1665
    %1798 = vmatpush.bf16.msra.mxu0 %v1698
    %1799 = vmatpush.bf16.msra.mxu0 %v1694
    %1800 = vmatpush.bf16.msra.mxu0 %v1690
    %1801 = vmatpush.bf16.msra.mxu0 %v1686
    %1802 = vmatpush.bf16.msra.mxu0 %v1682
    %1803 = vmatpush.bf16.msra.mxu0 %v1678
    %1804 = vmatpush.bf16.msra.mxu0 %v1674
    %1805 = vmatpush.bf16.msra.mxu0 %v1670
    %1806 = vmatmul.bf16.gmra.mxu0 %v1450
    %v1807 = vpop.f32.mrf.mxu0
    %v1808 = vadd.f32 0.0, %v1807
    %v1809 = vpop.f32.mrf.mxu0
    %v1810 = vadd.f32 0.0, %v1809
    %1811 = vmatmul.bf16.gmra.mxu0 %v1452
    %v1812 = vpop.f32.mrf.mxu0
    %v1813 = vadd.f32 0.0, %v1812
    %v1814 = vpop.f32.mrf.mxu0
    %v1815 = vadd.f32 0.0, %v1814
    %1816 = vmatmul.bf16.gmra.mxu0 %v1454
    %v1817 = vpop.f32.mrf.mxu0
    %v1818 = vadd.f32 0.0, %v1817
    %v1819 = vpop.f32.mrf.mxu0
    %v1820 = vadd.f32 0.0, %v1819
    %1821 = vmatmul.bf16.gmra.mxu0 %v1456
    %v1822 = vpop.f32.mrf.mxu0
    %v1823 = vadd.f32 0.0, %v1822
    %v1824 = vpop.f32.mrf.mxu0
    %v1825 = vadd.f32 0.0, %v1824
    %1826 = vmatmul.bf16.gmra.mxu0 %v1458
    %v1827 = vpop.f32.mrf.mxu0
    %v1828 = vadd.f32 0.0, %v1827
    %v1829 = vpop.f32.mrf.mxu0
    %v1830 = vadd.f32 0.0, %v1829
    %1831 = vmatmul.bf16.gmra.mxu0 %v1460
    %v1832 = vpop.f32.mrf.mxu0
    %v1833 = vadd.f32 0.0, %v1832
    %v1834 = vpop.f32.mrf.mxu0
    %v1835 = vadd.f32 0.0, %v1834
    %1836 = vmatmul.bf16.gmra.mxu0 %v1462
    %v1837 = vpop.f32.mrf.mxu0
    %v1838 = vadd.f32 0.0, %v1837
    %v1839 = vpop.f32.mrf.mxu0
    %v1840 = vadd.f32 0.0, %v1839
    %1841 = vdwg.mxu0
    %1842 = vmatpush.bf16.msra.mxu0 %v1730
    %1843 = vmatpush.bf16.msra.mxu0 %v1726
    %1844 = vmatpush.bf16.msra.mxu0 %v1722
    %1845 = vmatpush.bf16.msra.mxu0 %v1718
    %1846 = vmatpush.bf16.msra.mxu0 %v1714
    %1847 = vmatpush.bf16.msra.mxu0 %v1710
    %1848 = vmatpush.bf16.msra.mxu0 %v1706
    %1849 = vmatpush.bf16.msra.mxu0 %v1702
    %1850 = vmatmul.bf16.gmra.mxu0 %v1451
    %v1851 = vpop.f32.mrf.mxu0
    %v1852 = vadd.f32 %v1808, %v1851
    %v1853 = vpop.f32.mrf.mxu0
    %v1854 = vadd.f32 %v1810, %v1853
    %1855 = vmatmul.bf16.gmra.mxu0 %v1453
    %v1856 = vpop.f32.mrf.mxu0
    %v1857 = vadd.f32 %v1813, %v1856
    %v1858 = vpop.f32.mrf.mxu0
    %v1859 = vadd.f32 %v1815, %v1858
    %1860 = vmatmul.bf16.gmra.mxu0 %v1455
    %v1861 = vpop.f32.mrf.mxu0
    %v1862 = vadd.f32 %v1818, %v1861
    %v1863 = vpop.f32.mrf.mxu0
    %v1864 = vadd.f32 %v1820, %v1863
    %1865 = vmatmul.bf16.gmra.mxu0 %v1457
    %v1866 = vpop.f32.mrf.mxu0
    %v1867 = vadd.f32 %v1823, %v1866
    %v1868 = vpop.f32.mrf.mxu0
    %v1869 = vadd.f32 %v1825, %v1868
    %1870 = vmatmul.bf16.gmra.mxu0 %v1459
    %v1871 = vpop.f32.mrf.mxu0
    %v1872 = vadd.f32 %v1828, %v1871
    %v1873 = vpop.f32.mrf.mxu0
    %v1874 = vadd.f32 %v1830, %v1873
    %1875 = vmatmul.bf16.gmra.mxu0 %v1461
    %v1876 = vpop.f32.mrf.mxu0
    %v1877 = vadd.f32 %v1833, %v1876
    %v1878 = vpop.f32.mrf.mxu0
    %v1879 = vadd.f32 %v1835, %v1878
    %1880 = vmatmul.bf16.gmra.mxu0 %v1463
    %v1881 = vpop.f32.mrf.mxu0
    %v1882 = vadd.f32 %v1838, %v1881
    %v1883 = vpop.f32.mrf.mxu0
    %v1884 = vadd.f32 %v1840, %v1883
    %1885 = vdwg.mxu0
    %1886 = vmatpush.bf16.msra.mxu0 %v1699
    %1887 = vmatpush.bf16.msra.mxu0 %v1695
    %1888 = vmatpush.bf16.msra.mxu0 %v1691
    %1889 = vmatpush.bf16.msra.mxu0 %v1687
    %1890 = vmatpush.bf16.msra.mxu0 %v1683
    %1891 = vmatpush.bf16.msra.mxu0 %v1679
    %1892 = vmatpush.bf16.msra.mxu0 %v1675
    %1893 = vmatpush.bf16.msra.mxu0 %v1671
    %1894 = vmatmul.bf16.gmra.mxu0 %v1450
    %v1895 = vpop.f32.mrf.mxu0
    %v1896 = vadd.f32 0.0, %v1895
    %v1897 = vpop.f32.mrf.mxu0
    %v1898 = vadd.f32 0.0, %v1897
    %1899 = vmatmul.bf16.gmra.mxu0 %v1452
    %v1900 = vpop.f32.mrf.mxu0
    %v1901 = vadd.f32 0.0, %v1900
    %v1902 = vpop.f32.mrf.mxu0
    %v1903 = vadd.f32 0.0, %v1902
    %1904 = vmatmul.bf16.gmra.mxu0 %v1454
    %v1905 = vpop.f32.mrf.mxu0
    %v1906 = vadd.f32 0.0, %v1905
    %v1907 = vpop.f32.mrf.mxu0
    %v1908 = vadd.f32 0.0, %v1907
    %1909 = vmatmul.bf16.gmra.mxu0 %v1456
    %v1910 = vpop.f32.mrf.mxu0
    %v1911 = vadd.f32 0.0, %v1910
    %v1912 = vpop.f32.mrf.mxu0
    %v1913 = vadd.f32 0.0, %v1912
    %1914 = vmatmul.bf16.gmra.mxu0 %v1458
    %v1915 = vpop.f32.mrf.mxu0
    %v1916 = vadd.f32 0.0, %v1915
    %v1917 = vpop.f32.mrf.mxu0
    %v1918 = vadd.f32 0.0, %v1917
    %1919 = vmatmul.bf16.gmra.mxu0 %v1460
    %v1920 = vpop.f32.mrf.mxu0
    %v1921 = vadd.f32 0.0, %v1920
    %v1922 = vpop.f32.mrf.mxu0
    %v1923 = vadd.f32 0.0, %v1922
    %1924 = vmatmul.bf16.gmra.mxu0 %v1462
    %v1925 = vpop.f32.mrf.mxu0
    %v1926 = vadd.f32 0.0, %v1925
    %v1927 = vpop.f32.mrf.mxu0
    %v1928 = vadd.f32 0.0, %v1927
    %1929 = vdwg.mxu0
    %1930 = vmatpush.bf16.msra.mxu0 %v1731
    %1931 = vmatpush.bf16.msra.mxu0 %v1727
    %1932 = vmatpush.bf16.msra.mxu0 %v1723
    %1933 = vmatpush.bf16.msra.mxu0 %v1719
    %1934 = vmatpush.bf16.msra.mxu0 %v1715
    %1935 = vmatpush.bf16.msra.mxu0 %v1711
    %1936 = vmatpush.bf16.msra.mxu0 %v1707
    %1937 = vmatpush.bf16.msra.mxu0 %v1703
    %1938 = vmatmul.bf16.gmra.mxu0 %v1451
    %v1939 = vpop.f32.mrf.mxu0
    %v1940 = vadd.f32 %v1896, %v1939
    %v1941 = vpop.f32.mrf.mxu0
    %v1942 = vadd.f32 %v1898, %v1941
    %1943 = vmatmul.bf16.gmra.mxu0 %v1453
    %v1944 = vpop.f32.mrf.mxu0
    %v1945 = vadd.f32 %v1901, %v1944
    %v1946 = vpop.f32.mrf.mxu0
    %v1947 = vadd.f32 %v1903, %v1946
    %1948 = vmatmul.bf16.gmra.mxu0 %v1455
    %v1949 = vpop.f32.mrf.mxu0
    %v1950 = vadd.f32 %v1906, %v1949
    %v1951 = vpop.f32.mrf.mxu0
    %v1952 = vadd.f32 %v1908, %v1951
    %1953 = vmatmul.bf16.gmra.mxu0 %v1457
    %v1954 = vpop.f32.mrf.mxu0
    %v1955 = vadd.f32 %v1911, %v1954
    %v1956 = vpop.f32.mrf.mxu0
    %v1957 = vadd.f32 %v1913, %v1956
    %1958 = vmatmul.bf16.gmra.mxu0 %v1459
    %v1959 = vpop.f32.mrf.mxu0
    %v1960 = vadd.f32 %v1916, %v1959
    %v1961 = vpop.f32.mrf.mxu0
    %v1962 = vadd.f32 %v1918, %v1961
    %1963 = vmatmul.bf16.gmra.mxu0 %v1461
    %v1964 = vpop.f32.mrf.mxu0
    %v1965 = vadd.f32 %v1921, %v1964
    %v1966 = vpop.f32.mrf.mxu0
    %v1967 = vadd.f32 %v1923, %v1966
    %1968 = vmatmul.bf16.gmra.mxu0 %v1463
    %v1969 = vpop.f32.mrf.mxu0
    %v1970 = vadd.f32 %v1926, %v1969
    %v1971 = vpop.f32.mrf.mxu0
    %v1972 = vadd.f32 %v1928, %v1971
    %1973 = vdwg.mxu0
    %1974 = vmatpush.bf16.msra.mxu0 %v1700
    %1975 = vmatpush.bf16.msra.mxu0 %v1696
    %1976 = vmatpush.bf16.msra.mxu0 %v1692
    %1977 = vmatpush.bf16.msra.mxu0 %v1688
    %1978 = vmatpush.bf16.msra.mxu0 %v1684
    %1979 = vmatpush.bf16.msra.mxu0 %v1680
    %1980 = vmatpush.bf16.msra.mxu0 %v1676
    %1981 = vmatpush.bf16.msra.mxu0 %v1672
    %1982 = vmatmul.bf16.gmra.mxu0 %v1450
    %v1983 = vpop.f32.mrf.mxu0
    %v1984 = vadd.f32 0.0, %v1983
    %v1985 = vpop.f32.mrf.mxu0
    %v1986 = vadd.f32 0.0, %v1985
    %1987 = vmatmul.bf16.gmra.mxu0 %v1452
    %v1988 = vpop.f32.mrf.mxu0
    %v1989 = vadd.f32 0.0, %v1988
    %v1990 = vpop.f32.mrf.mxu0
    %v1991 = vadd.f32 0.0, %v1990
    %1992 = vmatmul.bf16.gmra.mxu0 %v1454
    %v1993 = vpop.f32.mrf.mxu0
    %v1994 = vadd.f32 0.0, %v1993
    %v1995 = vpop.f32.mrf.mxu0
    %v1996 = vadd.f32 0.0, %v1995
    %1997 = vmatmul.bf16.gmra.mxu0 %v1456
    %v1998 = vpop.f32.mrf.mxu0
    %v1999 = vadd.f32 0.0, %v1998
    %v2000 = vpop.f32.mrf.mxu0
    %v2001 = vadd.f32 0.0, %v2000
    %2002 = vmatmul.bf16.gmra.mxu0 %v1458
    %v2003 = vpop.f32.mrf.mxu0
    %v2004 = vadd.f32 0.0, %v2003
    %v2005 = vpop.f32.mrf.mxu0
    %v2006 = vadd.f32 0.0, %v2005
    %2007 = vmatmul.bf16.gmra.mxu0 %v1460
    %v2008 = vpop.f32.mrf.mxu0
    %v2009 = vadd.f32 0.0, %v2008
    %v2010 = vpop.f32.mrf.mxu0
    %v2011 = vadd.f32 0.0, %v2010
    %2012 = vmatmul.bf16.gmra.mxu0 %v1462
    %v2013 = vpop.f32.mrf.mxu0
    %v2014 = vadd.f32 0.0, %v2013
    %v2015 = vpop.f32.mrf.mxu0
    %v2016 = vadd.f32 0.0, %v2015
    %2017 = vdwg.mxu0
    %2018 = vmatpush.bf16.msra.mxu0 %v1732
    %2019 = vmatpush.bf16.msra.mxu0 %v1728
    %2020 = vmatpush.bf16.msra.mxu0 %v1724
    %2021 = vmatpush.bf16.msra.mxu0 %v1720
    %2022 = vmatpush.bf16.msra.mxu0 %v1716
    %2023 = vmatpush.bf16.msra.mxu0 %v1712
    %2024 = vmatpush.bf16.msra.mxu0 %v1708
    %2025 = vmatpush.bf16.msra.mxu0 %v1704
    %2026 = vmatmul.bf16.gmra.mxu0 %v1451
    %v2027 = vpop.f32.mrf.mxu0
    %v2028 = vadd.f32 %v1984, %v2027
    %v2029 = vpop.f32.mrf.mxu0
    %v2030 = vadd.f32 %v1986, %v2029
    %2031 = vmatmul.bf16.gmra.mxu0 %v1453
    %v2032 = vpop.f32.mrf.mxu0
    %v2033 = vadd.f32 %v1989, %v2032
    %v2034 = vpop.f32.mrf.mxu0
    %v2035 = vadd.f32 %v1991, %v2034
    %2036 = vmatmul.bf16.gmra.mxu0 %v1455
    %v2037 = vpop.f32.mrf.mxu0
    %v2038 = vadd.f32 %v1994, %v2037
    %v2039 = vpop.f32.mrf.mxu0
    %v2040 = vadd.f32 %v1996, %v2039
    %2041 = vmatmul.bf16.gmra.mxu0 %v1457
    %v2042 = vpop.f32.mrf.mxu0
    %v2043 = vadd.f32 %v1999, %v2042
    %v2044 = vpop.f32.mrf.mxu0
    %v2045 = vadd.f32 %v2001, %v2044
    %2046 = vmatmul.bf16.gmra.mxu0 %v1459
    %v2047 = vpop.f32.mrf.mxu0
    %v2048 = vadd.f32 %v2004, %v2047
    %v2049 = vpop.f32.mrf.mxu0
    %v2050 = vadd.f32 %v2006, %v2049
    %2051 = vmatmul.bf16.gmra.mxu0 %v1461
    %v2052 = vpop.f32.mrf.mxu0
    %v2053 = vadd.f32 %v2009, %v2052
    %v2054 = vpop.f32.mrf.mxu0
    %v2055 = vadd.f32 %v2011, %v2054
    %2056 = vmatmul.bf16.gmra.mxu0 %v1463
    %v2057 = vpop.f32.mrf.mxu0
    %v2058 = vadd.f32 %v2014, %v2057
    %v2059 = vpop.f32.mrf.mxu0
    %v2060 = vadd.f32 %v2016, %v2059
    %2061 = vdwg.mxu0
    %2062 = vmatpush.bf16.msra.mxu0 %v1701
    %2063 = vmatpush.bf16.msra.mxu0 %v1697
    %2064 = vmatpush.bf16.msra.mxu0 %v1693
    %2065 = vmatpush.bf16.msra.mxu0 %v1689
    %2066 = vmatpush.bf16.msra.mxu0 %v1685
    %2067 = vmatpush.bf16.msra.mxu0 %v1681
    %2068 = vmatpush.bf16.msra.mxu0 %v1677
    %2069 = vmatpush.bf16.msra.mxu0 %v1673
    %2070 = vmatmul.bf16.gmra.mxu0 %v1450
    %v2071 = vpop.f32.mrf.mxu0
    %v2072 = vadd.f32 0.0, %v2071
    %v2073 = vpop.f32.mrf.mxu0
    %v2074 = vadd.f32 0.0, %v2073
    %2075 = vmatmul.bf16.gmra.mxu0 %v1452
    %v2076 = vpop.f32.mrf.mxu0
    %v2077 = vadd.f32 0.0, %v2076
    %v2078 = vpop.f32.mrf.mxu0
    %v2079 = vadd.f32 0.0, %v2078
    %2080 = vmatmul.bf16.gmra.mxu0 %v1454
    %v2081 = vpop.f32.mrf.mxu0
    %v2082 = vadd.f32 0.0, %v2081
    %v2083 = vpop.f32.mrf.mxu0
    %v2084 = vadd.f32 0.0, %v2083
    %2085 = vmatmul.bf16.gmra.mxu0 %v1456
    %v2086 = vpop.f32.mrf.mxu0
    %v2087 = vadd.f32 0.0, %v2086
    %v2088 = vpop.f32.mrf.mxu0
    %v2089 = vadd.f32 0.0, %v2088
    %2090 = vmatmul.bf16.gmra.mxu0 %v1458
    %v2091 = vpop.f32.mrf.mxu0
    %v2092 = vadd.f32 0.0, %v2091
    %v2093 = vpop.f32.mrf.mxu0
    %v2094 = vadd.f32 0.0, %v2093
    %2095 = vmatmul.bf16.gmra.mxu0 %v1460
    %v2096 = vpop.f32.mrf.mxu0
    %v2097 = vadd.f32 0.0, %v2096
    %v2098 = vpop.f32.mrf.mxu0
    %v2099 = vadd.f32 0.0, %v2098
    %2100 = vmatmul.bf16.gmra.mxu0 %v1462
    %v2101 = vpop.f32.mrf.mxu0
    %v2102 = vadd.f32 0.0, %v2101
    %v2103 = vpop.f32.mrf.mxu0
    %v2104 = vadd.f32 0.0, %v2103
    %2105 = vdwg.mxu0
    %2106 = vmatpush.bf16.msra.mxu0 %v1733
    %2107 = vmatpush.bf16.msra.mxu0 %v1729
    %2108 = vmatpush.bf16.msra.mxu0 %v1725
    %2109 = vmatpush.bf16.msra.mxu0 %v1721
    %2110 = vmatpush.bf16.msra.mxu0 %v1717
    %2111 = vmatpush.bf16.msra.mxu0 %v1713
    %2112 = vmatpush.bf16.msra.mxu0 %v1709
    %2113 = vmatpush.bf16.msra.mxu0 %v1705
    %2114 = vmatmul.bf16.gmra.mxu0 %v1451
    %v2115 = vpop.f32.mrf.mxu0
    %v2116 = vadd.f32 %v2072, %v2115
    %v2117 = vpop.f32.mrf.mxu0
    %v2118 = vadd.f32 %v2074, %v2117
    %2119 = vmatmul.bf16.gmra.mxu0 %v1453
    %v2120 = vpop.f32.mrf.mxu0
    %v2121 = vadd.f32 %v2077, %v2120
    %v2122 = vpop.f32.mrf.mxu0
    %v2123 = vadd.f32 %v2079, %v2122
    %2124 = vmatmul.bf16.gmra.mxu0 %v1455
    %v2125 = vpop.f32.mrf.mxu0
    %v2126 = vadd.f32 %v2082, %v2125
    %v2127 = vpop.f32.mrf.mxu0
    %v2128 = vadd.f32 %v2084, %v2127
    %2129 = vmatmul.bf16.gmra.mxu0 %v1457
    %v2130 = vpop.f32.mrf.mxu0
    %v2131 = vadd.f32 %v2087, %v2130
    %v2132 = vpop.f32.mrf.mxu0
    %v2133 = vadd.f32 %v2089, %v2132
    %2134 = vmatmul.bf16.gmra.mxu0 %v1459
    %v2135 = vpop.f32.mrf.mxu0
    %v2136 = vadd.f32 %v2092, %v2135
    %v2137 = vpop.f32.mrf.mxu0
    %v2138 = vadd.f32 %v2094, %v2137
    %2139 = vmatmul.bf16.gmra.mxu0 %v1461
    %v2140 = vpop.f32.mrf.mxu0
    %v2141 = vadd.f32 %v2097, %v2140
    %v2142 = vpop.f32.mrf.mxu0
    %v2143 = vadd.f32 %v2099, %v2142
    %2144 = vmatmul.bf16.gmra.mxu0 %v1463
    %v2145 = vpop.f32.mrf.mxu0
    %v2146 = vadd.f32 %v2102, %v2145
    %v2147 = vpop.f32.mrf.mxu0
    %v2148 = vadd.f32 %v2104, %v2147
    %2149 = vdwg.mxu0
    %v2152 = vunpack.c.l.b16 %v1263
    %v2153 = vunpack.c.h.b16 %v1263
    %v2154 = vunpack.c.l.b16 %v1264
    %v2155 = vunpack.c.h.b16 %v1264
    %v2156 = vpack.c.b16 %v2154, %v2152
    %v2157 = vpack.c.b16 %v2155, %v2153
    %v2224 = vunpack.c.l.b16 %v1277
    %v2225 = vunpack.c.h.b16 %v1277
    %v2226 = vunpack.c.l.b16 %v1278
    %v2227 = vunpack.c.h.b16 %v1278
    %v2228 = vunpack.c.l.b16 %v1279
    %v2229 = vunpack.c.h.b16 %v1279
    %v2230 = vunpack.c.l.b16 %v1280
    %v2231 = vunpack.c.h.b16 %v1280
    %v2232 = vunpack.c.l.b16 %v1281
    %v2233 = vunpack.c.h.b16 %v1281
    %v2234 = vunpack.c.l.b16 %v1282
    %v2235 = vunpack.c.h.b16 %v1282
    %v2236 = vunpack.c.l.b16 %v1283
    %v2237 = vunpack.c.h.b16 %v1283
    %v2238 = vunpack.c.l.b16 %v1284
    %v2239 = vunpack.c.h.b16 %v1284
    %v2240 = vunpack.c.l.b16 %v1285
    %v2241 = vunpack.c.h.b16 %v1285
    %v2242 = vunpack.c.l.b16 %v1286
    %v2243 = vunpack.c.h.b16 %v1286
    %v2244 = vunpack.c.l.b16 %v1287
    %v2245 = vunpack.c.h.b16 %v1287
    %v2246 = vunpack.c.l.b16 %v1288
    %v2247 = vunpack.c.h.b16 %v1288
    %v2248 = vunpack.c.l.b16 %v1289
    %v2249 = vunpack.c.h.b16 %v1289
    %v2250 = vunpack.c.l.b16 %v1290
    %v2251 = vunpack.c.h.b16 %v1290
    %v2252 = vunpack.c.l.b16 %v1291
    %v2253 = vunpack.c.h.b16 %v1291
    %v2254 = vunpack.c.l.b16 %v1292
    %v2255 = vunpack.c.h.b16 %v1292
    %v2256 = vunpack.c.l.b16 %v1293
    %v2257 = vunpack.c.h.b16 %v1293
    %v2258 = vunpack.c.l.b16 %v1294
    %v2259 = vunpack.c.h.b16 %v1294
    %v2260 = vunpack.c.l.b16 %v1295
    %v2261 = vunpack.c.h.b16 %v1295
    %v2262 = vunpack.c.l.b16 %v1296
    %v2263 = vunpack.c.h.b16 %v1296
    %v2264 = vunpack.c.l.b16 %v1297
    %v2265 = vunpack.c.h.b16 %v1297
    %v2266 = vunpack.c.l.b16 %v1298
    %v2267 = vunpack.c.h.b16 %v1298
    %v2268 = vunpack.c.l.b16 %v1299
    %v2269 = vunpack.c.h.b16 %v1299
    %v2270 = vunpack.c.l.b16 %v1300
    %v2271 = vunpack.c.h.b16 %v1300
    %v2272 = vunpack.c.l.b16 %v1301
    %v2273 = vunpack.c.h.b16 %v1301
    %v2274 = vunpack.c.l.b16 %v1302
    %v2275 = vunpack.c.h.b16 %v1302
    %v2276 = vunpack.c.l.b16 %v1303
    %v2277 = vunpack.c.h.b16 %v1303
    %v2278 = vunpack.c.l.b16 %v1304
    %v2279 = vunpack.c.h.b16 %v1304
    %v2280 = vunpack.c.l.b16 %v1305
    %v2281 = vunpack.c.h.b16 %v1305
    %v2282 = vunpack.c.l.b16 %v1306
    %v2283 = vunpack.c.h.b16 %v1306
    %v2284 = vunpack.c.l.b16 %v1307
    %v2285 = vunpack.c.h.b16 %v1307
    %v2286 = vunpack.c.l.b16 %v1308
    %v2287 = vunpack.c.h.b16 %v1308
    %v2288 = vunpack.c.l.b16 %v1309
    %v2289 = vunpack.c.h.b16 %v1309
    %v2290 = vunpack.c.l.b16 %v1310
    %v2291 = vunpack.c.h.b16 %v1310
    %v2292 = vunpack.c.l.b16 %v1311
    %v2293 = vunpack.c.h.b16 %v1311
    %v2294 = vunpack.c.l.b16 %v1312
    %v2295 = vunpack.c.h.b16 %v1312
    %v2296 = vunpack.c.l.b16 %v1313
    %v2297 = vunpack.c.h.b16 %v1313
    %v2298 = vunpack.c.l.b16 %v1314
    %v2299 = vunpack.c.h.b16 %v1314
    %v2300 = vunpack.c.l.b16 %v1315
    %v2301 = vunpack.c.h.b16 %v1315
    %v2302 = vunpack.c.l.b16 %v1316
    %v2303 = vunpack.c.h.b16 %v1316
    %v2304 = vunpack.c.l.b16 %v1317
    %v2305 = vunpack.c.h.b16 %v1317
    %v2306 = vunpack.c.l.b16 %v1318
    %v2307 = vunpack.c.h.b16 %v1318
    %v2308 = vunpack.c.l.b16 %v1319
    %v2309 = vunpack.c.h.b16 %v1319
    %v2310 = vunpack.c.l.b16 %v1320
    %v2311 = vunpack.c.h.b16 %v1320
    %v2312 = vunpack.c.l.b16 %v1321
    %v2313 = vunpack.c.h.b16 %v1321
    %v2314 = vunpack.c.l.b16 %v1322
    %v2315 = vunpack.c.h.b16 %v1322
    %v2316 = vunpack.c.l.b16 %v1323
    %v2317 = vunpack.c.h.b16 %v1323
    %v2318 = vunpack.c.l.b16 %v1324
    %v2319 = vunpack.c.h.b16 %v1324
    %v2320 = vunpack.c.l.b16 %v1325
    %v2321 = vunpack.c.h.b16 %v1325
    %v2322 = vunpack.c.l.b16 %v1326
    %v2323 = vunpack.c.h.b16 %v1326
    %v2324 = vunpack.c.l.b16 %v1327
    %v2325 = vunpack.c.h.b16 %v1327
    %v2326 = vunpack.c.l.b16 %v1328
    %v2327 = vunpack.c.h.b16 %v1328
    %v2328 = vunpack.c.l.b16 %v1329
    %v2329 = vunpack.c.h.b16 %v1329
    %v2330 = vunpack.c.l.b16 %v1330
    %v2331 = vunpack.c.h.b16 %v1330
    %v2332 = vunpack.c.l.b16 %v1331
    %v2333 = vunpack.c.h.b16 %v1331
    %v2334 = vunpack.c.l.b16 %v1332
    %v2335 = vunpack.c.h.b16 %v1332
    %v2336 = vunpack.c.l.b16 %v1333
    %v2337 = vunpack.c.h.b16 %v1333
    %v2338 = vunpack.c.l.b16 %v1334
    %v2339 = vunpack.c.h.b16 %v1334
    %v2340 = vunpack.c.l.b16 %v1335
    %v2341 = vunpack.c.h.b16 %v1335
    %v2342 = vunpack.c.l.b16 %v1336
    %v2343 = vunpack.c.h.b16 %v1336
    %v2344 = vunpack.c.l.b16 %v1337
    %v2345 = vunpack.c.h.b16 %v1337
    %v2346 = vunpack.c.l.b16 %v1338
    %v2347 = vunpack.c.h.b16 %v1338
    %v2348 = vunpack.c.l.b16 %v1339
    %v2349 = vunpack.c.h.b16 %v1339
    %v2350 = vunpack.c.l.b16 %v1340
    %v2351 = vunpack.c.h.b16 %v1340
    %v2352 = vpack.c.b16 %v2228, %v2224
    %v2353 = vpack.c.b16 %v2229, %v2225
    %v2354 = vpack.c.b16 %v2230, %v2226
    %v2355 = vpack.c.b16 %v2231, %v2227
    %v2356 = vpack.c.b16 %v2236, %v2232
    %v2357 = vpack.c.b16 %v2237, %v2233
    %v2358 = vpack.c.b16 %v2238, %v2234
    %v2359 = vpack.c.b16 %v2239, %v2235
    %v2360 = vpack.c.b16 %v2244, %v2240
    %v2361 = vpack.c.b16 %v2245, %v2241
    %v2362 = vpack.c.b16 %v2246, %v2242
    %v2363 = vpack.c.b16 %v2247, %v2243
    %v2364 = vpack.c.b16 %v2252, %v2248
    %v2365 = vpack.c.b16 %v2253, %v2249
    %v2366 = vpack.c.b16 %v2254, %v2250
    %v2367 = vpack.c.b16 %v2255, %v2251
    %v2368 = vpack.c.b16 %v2260, %v2256
    %v2369 = vpack.c.b16 %v2261, %v2257
    %v2370 = vpack.c.b16 %v2262, %v2258
    %v2371 = vpack.c.b16 %v2263, %v2259
    %v2372 = vpack.c.b16 %v2268, %v2264
    %v2373 = vpack.c.b16 %v2269, %v2265
    %v2374 = vpack.c.b16 %v2270, %v2266
    %v2375 = vpack.c.b16 %v2271, %v2267
    %v2376 = vpack.c.b16 %v2276, %v2272
    %v2377 = vpack.c.b16 %v2277, %v2273
    %v2378 = vpack.c.b16 %v2278, %v2274
    %v2379 = vpack.c.b16 %v2279, %v2275
    %v2380 = vpack.c.b16 %v2284, %v2280
    %v2381 = vpack.c.b16 %v2285, %v2281
    %v2382 = vpack.c.b16 %v2286, %v2282
    %v2383 = vpack.c.b16 %v2287, %v2283
    %v2384 = vpack.c.b16 %v2292, %v2288
    %v2385 = vpack.c.b16 %v2293, %v2289
    %v2386 = vpack.c.b16 %v2294, %v2290
    %v2387 = vpack.c.b16 %v2295, %v2291
    %v2388 = vpack.c.b16 %v2300, %v2296
    %v2389 = vpack.c.b16 %v2301, %v2297
    %v2390 = vpack.c.b16 %v2302, %v2298
    %v2391 = vpack.c.b16 %v2303, %v2299
    %v2392 = vpack.c.b16 %v2308, %v2304
    %v2393 = vpack.c.b16 %v2309, %v2305
    %v2394 = vpack.c.b16 %v2310, %v2306
    %v2395 = vpack.c.b16 %v2311, %v2307
    %v2396 = vpack.c.b16 %v2316, %v2312
    %v2397 = vpack.c.b16 %v2317, %v2313
    %v2398 = vpack.c.b16 %v2318, %v2314
    %v2399 = vpack.c.b16 %v2319, %v2315
    %v2400 = vpack.c.b16 %v2324, %v2320
    %v2401 = vpack.c.b16 %v2325, %v2321
    %v2402 = vpack.c.b16 %v2326, %v2322
    %v2403 = vpack.c.b16 %v2327, %v2323
    %v2404 = vpack.c.b16 %v2332, %v2328
    %v2405 = vpack.c.b16 %v2333, %v2329
    %v2406 = vpack.c.b16 %v2334, %v2330
    %v2407 = vpack.c.b16 %v2335, %v2331
    %v2408 = vpack.c.b16 %v2340, %v2336
    %v2409 = vpack.c.b16 %v2341, %v2337
    %v2410 = vpack.c.b16 %v2342, %v2338
    %v2411 = vpack.c.b16 %v2343, %v2339
    %v2412 = vpack.c.b16 %v2348, %v2344
    %v2413 = vpack.c.b16 %v2349, %v2345
    %v2414 = vpack.c.b16 %v2350, %v2346
    %v2415 = vpack.c.b16 %v2351, %v2347
    %2480 = vmatpush.bf16.msra.mxu0 %v2380
    %2481 = vmatpush.bf16.msra.mxu0 %v2376
    %2482 = vmatpush.bf16.msra.mxu0 %v2372
    %2483 = vmatpush.bf16.msra.mxu0 %v2368
    %2484 = vmatpush.bf16.msra.mxu0 %v2364
    %2485 = vmatpush.bf16.msra.mxu0 %v2360
    %2486 = vmatpush.bf16.msra.mxu0 %v2356
    %2487 = vmatpush.bf16.msra.mxu0 %v2352
    %2488 = vmatmul.bf16.gmra.mxu0 %v2156
    %v2489 = vpop.f32.mrf.mxu0
    %v2490 = vadd.f32 %v1852, %v2489
    %v2491 = vpop.f32.mrf.mxu0
    %v2492 = vadd.f32 %v1854, %v2491
    %2493 = vmatmul.bf16.gmra.mxu0 %v1450
    %v2494 = vpop.f32.mrf.mxu0
    %v2495 = vadd.f32 %v1857, %v2494
    %v2496 = vpop.f32.mrf.mxu0
    %v2497 = vadd.f32 %v1859, %v2496
    %2498 = vmatmul.bf16.gmra.mxu0 %v1452
    %v2499 = vpop.f32.mrf.mxu0
    %v2500 = vadd.f32 %v1862, %v2499
    %v2501 = vpop.f32.mrf.mxu0
    %v2502 = vadd.f32 %v1864, %v2501
    %2503 = vmatmul.bf16.gmra.mxu0 %v1454
    %v2504 = vpop.f32.mrf.mxu0
    %v2505 = vadd.f32 %v1867, %v2504
    %v2506 = vpop.f32.mrf.mxu0
    %v2507 = vadd.f32 %v1869, %v2506
    %2508 = vmatmul.bf16.gmra.mxu0 %v1456
    %v2509 = vpop.f32.mrf.mxu0
    %v2510 = vadd.f32 %v1872, %v2509
    %v2511 = vpop.f32.mrf.mxu0
    %v2512 = vadd.f32 %v1874, %v2511
    %2513 = vmatmul.bf16.gmra.mxu0 %v1458
    %v2514 = vpop.f32.mrf.mxu0
    %v2515 = vadd.f32 %v1877, %v2514
    %v2516 = vpop.f32.mrf.mxu0
    %v2517 = vadd.f32 %v1879, %v2516
    %2518 = vmatmul.bf16.gmra.mxu0 %v1460
    %v2519 = vpop.f32.mrf.mxu0
    %v2520 = vadd.f32 %v1882, %v2519
    %v2521 = vpop.f32.mrf.mxu0
    %v2522 = vadd.f32 %v1884, %v2521
    %2523 = vdwg.mxu0
    %2524 = vmatpush.bf16.msra.mxu0 %v2412
    %2525 = vmatpush.bf16.msra.mxu0 %v2408
    %2526 = vmatpush.bf16.msra.mxu0 %v2404
    %2527 = vmatpush.bf16.msra.mxu0 %v2400
    %2528 = vmatpush.bf16.msra.mxu0 %v2396
    %2529 = vmatpush.bf16.msra.mxu0 %v2392
    %2530 = vmatpush.bf16.msra.mxu0 %v2388
    %2531 = vmatpush.bf16.msra.mxu0 %v2384
    %2532 = vmatmul.bf16.gmra.mxu0 %v2157
    %v2533 = vpop.f32.mrf.mxu0
    %v2534 = vadd.f32 %v2490, %v2533
    %v2535 = vpop.f32.mrf.mxu0
    %v2536 = vadd.f32 %v2492, %v2535
    %2537 = vmatmul.bf16.gmra.mxu0 %v1451
    %v2538 = vpop.f32.mrf.mxu0
    %v2539 = vadd.f32 %v2495, %v2538
    %v2540 = vpop.f32.mrf.mxu0
    %v2541 = vadd.f32 %v2497, %v2540
    %2542 = vmatmul.bf16.gmra.mxu0 %v1453
    %v2543 = vpop.f32.mrf.mxu0
    %v2544 = vadd.f32 %v2500, %v2543
    %v2545 = vpop.f32.mrf.mxu0
    %v2546 = vadd.f32 %v2502, %v2545
    %2547 = vmatmul.bf16.gmra.mxu0 %v1455
    %v2548 = vpop.f32.mrf.mxu0
    %v2549 = vadd.f32 %v2505, %v2548
    %v2550 = vpop.f32.mrf.mxu0
    %v2551 = vadd.f32 %v2507, %v2550
    %2552 = vmatmul.bf16.gmra.mxu0 %v1457
    %v2553 = vpop.f32.mrf.mxu0
    %v2554 = vadd.f32 %v2510, %v2553
    %v2555 = vpop.f32.mrf.mxu0
    %v2556 = vadd.f32 %v2512, %v2555
    %2557 = vmatmul.bf16.gmra.mxu0 %v1459
    %v2558 = vpop.f32.mrf.mxu0
    %v2559 = vadd.f32 %v2515, %v2558
    %v2560 = vpop.f32.mrf.mxu0
    %v2561 = vadd.f32 %v2517, %v2560
    %2562 = vmatmul.bf16.gmra.mxu0 %v1461
    %v2563 = vpop.f32.mrf.mxu0
    %v2564 = vadd.f32 %v2520, %v2563
    %v2565 = vpop.f32.mrf.mxu0
    %v2566 = vadd.f32 %v2522, %v2565
    %2567 = vdwg.mxu0
    %2568 = vmatpush.bf16.msra.mxu0 %v2381
    %2569 = vmatpush.bf16.msra.mxu0 %v2377
    %2570 = vmatpush.bf16.msra.mxu0 %v2373
    %2571 = vmatpush.bf16.msra.mxu0 %v2369
    %2572 = vmatpush.bf16.msra.mxu0 %v2365
    %2573 = vmatpush.bf16.msra.mxu0 %v2361
    %2574 = vmatpush.bf16.msra.mxu0 %v2357
    %2575 = vmatpush.bf16.msra.mxu0 %v2353
    %2576 = vmatmul.bf16.gmra.mxu0 %v2156
    %v2577 = vpop.f32.mrf.mxu0
    %v2578 = vadd.f32 %v1940, %v2577
    %v2579 = vpop.f32.mrf.mxu0
    %v2580 = vadd.f32 %v1942, %v2579
    %2581 = vmatmul.bf16.gmra.mxu0 %v1450
    %v2582 = vpop.f32.mrf.mxu0
    %v2583 = vadd.f32 %v1945, %v2582
    %v2584 = vpop.f32.mrf.mxu0
    %v2585 = vadd.f32 %v1947, %v2584
    %2586 = vmatmul.bf16.gmra.mxu0 %v1452
    %v2587 = vpop.f32.mrf.mxu0
    %v2588 = vadd.f32 %v1950, %v2587
    %v2589 = vpop.f32.mrf.mxu0
    %v2590 = vadd.f32 %v1952, %v2589
    %2591 = vmatmul.bf16.gmra.mxu0 %v1454
    %v2592 = vpop.f32.mrf.mxu0
    %v2593 = vadd.f32 %v1955, %v2592
    %v2594 = vpop.f32.mrf.mxu0
    %v2595 = vadd.f32 %v1957, %v2594
    %2596 = vmatmul.bf16.gmra.mxu0 %v1456
    %v2597 = vpop.f32.mrf.mxu0
    %v2598 = vadd.f32 %v1960, %v2597
    %v2599 = vpop.f32.mrf.mxu0
    %v2600 = vadd.f32 %v1962, %v2599
    %2601 = vmatmul.bf16.gmra.mxu0 %v1458
    %v2602 = vpop.f32.mrf.mxu0
    %v2603 = vadd.f32 %v1965, %v2602
    %v2604 = vpop.f32.mrf.mxu0
    %v2605 = vadd.f32 %v1967, %v2604
    %2606 = vmatmul.bf16.gmra.mxu0 %v1460
    %v2607 = vpop.f32.mrf.mxu0
    %v2608 = vadd.f32 %v1970, %v2607
    %v2609 = vpop.f32.mrf.mxu0
    %v2610 = vadd.f32 %v1972, %v2609
    %2611 = vdwg.mxu0
    %2612 = vmatpush.bf16.msra.mxu0 %v2413
    %2613 = vmatpush.bf16.msra.mxu0 %v2409
    %2614 = vmatpush.bf16.msra.mxu0 %v2405
    %2615 = vmatpush.bf16.msra.mxu0 %v2401
    %2616 = vmatpush.bf16.msra.mxu0 %v2397
    %2617 = vmatpush.bf16.msra.mxu0 %v2393
    %2618 = vmatpush.bf16.msra.mxu0 %v2389
    %2619 = vmatpush.bf16.msra.mxu0 %v2385
    %2620 = vmatmul.bf16.gmra.mxu0 %v2157
    %v2621 = vpop.f32.mrf.mxu0
    %v2622 = vadd.f32 %v2578, %v2621
    %v2623 = vpop.f32.mrf.mxu0
    %v2624 = vadd.f32 %v2580, %v2623
    %2625 = vmatmul.bf16.gmra.mxu0 %v1451
    %v2626 = vpop.f32.mrf.mxu0
    %v2627 = vadd.f32 %v2583, %v2626
    %v2628 = vpop.f32.mrf.mxu0
    %v2629 = vadd.f32 %v2585, %v2628
    %2630 = vmatmul.bf16.gmra.mxu0 %v1453
    %v2631 = vpop.f32.mrf.mxu0
    %v2632 = vadd.f32 %v2588, %v2631
    %v2633 = vpop.f32.mrf.mxu0
    %v2634 = vadd.f32 %v2590, %v2633
    %2635 = vmatmul.bf16.gmra.mxu0 %v1455
    %v2636 = vpop.f32.mrf.mxu0
    %v2637 = vadd.f32 %v2593, %v2636
    %v2638 = vpop.f32.mrf.mxu0
    %v2639 = vadd.f32 %v2595, %v2638
    %2640 = vmatmul.bf16.gmra.mxu0 %v1457
    %v2641 = vpop.f32.mrf.mxu0
    %v2642 = vadd.f32 %v2598, %v2641
    %v2643 = vpop.f32.mrf.mxu0
    %v2644 = vadd.f32 %v2600, %v2643
    %2645 = vmatmul.bf16.gmra.mxu0 %v1459
    %v2646 = vpop.f32.mrf.mxu0
    %v2647 = vadd.f32 %v2603, %v2646
    %v2648 = vpop.f32.mrf.mxu0
    %v2649 = vadd.f32 %v2605, %v2648
    %2650 = vmatmul.bf16.gmra.mxu0 %v1461
    %v2651 = vpop.f32.mrf.mxu0
    %v2652 = vadd.f32 %v2608, %v2651
    %v2653 = vpop.f32.mrf.mxu0
    %v2654 = vadd.f32 %v2610, %v2653
    %2655 = vdwg.mxu0
    %2656 = vmatpush.bf16.msra.mxu0 %v2382
    %2657 = vmatpush.bf16.msra.mxu0 %v2378
    %2658 = vmatpush.bf16.msra.mxu0 %v2374
    %2659 = vmatpush.bf16.msra.mxu0 %v2370
    %2660 = vmatpush.bf16.msra.mxu0 %v2366
    %2661 = vmatpush.bf16.msra.mxu0 %v2362
    %2662 = vmatpush.bf16.msra.mxu0 %v2358
    %2663 = vmatpush.bf16.msra.mxu0 %v2354
    %2664 = vmatmul.bf16.gmra.mxu0 %v2156
    %v2665 = vpop.f32.mrf.mxu0
    %v2666 = vadd.f32 %v2028, %v2665
    %v2667 = vpop.f32.mrf.mxu0
    %v2668 = vadd.f32 %v2030, %v2667
    %2669 = vmatmul.bf16.gmra.mxu0 %v1450
    %v2670 = vpop.f32.mrf.mxu0
    %v2671 = vadd.f32 %v2033, %v2670
    %v2672 = vpop.f32.mrf.mxu0
    %v2673 = vadd.f32 %v2035, %v2672
    %2674 = vmatmul.bf16.gmra.mxu0 %v1452
    %v2675 = vpop.f32.mrf.mxu0
    %v2676 = vadd.f32 %v2038, %v2675
    %v2677 = vpop.f32.mrf.mxu0
    %v2678 = vadd.f32 %v2040, %v2677
    %2679 = vmatmul.bf16.gmra.mxu0 %v1454
    %v2680 = vpop.f32.mrf.mxu0
    %v2681 = vadd.f32 %v2043, %v2680
    %v2682 = vpop.f32.mrf.mxu0
    %v2683 = vadd.f32 %v2045, %v2682
    %2684 = vmatmul.bf16.gmra.mxu0 %v1456
    %v2685 = vpop.f32.mrf.mxu0
    %v2686 = vadd.f32 %v2048, %v2685
    %v2687 = vpop.f32.mrf.mxu0
    %v2688 = vadd.f32 %v2050, %v2687
    %2689 = vmatmul.bf16.gmra.mxu0 %v1458
    %v2690 = vpop.f32.mrf.mxu0
    %v2691 = vadd.f32 %v2053, %v2690
    %v2692 = vpop.f32.mrf.mxu0
    %v2693 = vadd.f32 %v2055, %v2692
    %2694 = vmatmul.bf16.gmra.mxu0 %v1460
    %v2695 = vpop.f32.mrf.mxu0
    %v2696 = vadd.f32 %v2058, %v2695
    %v2697 = vpop.f32.mrf.mxu0
    %v2698 = vadd.f32 %v2060, %v2697
    %2699 = vdwg.mxu0
    %2700 = vmatpush.bf16.msra.mxu0 %v2414
    %2701 = vmatpush.bf16.msra.mxu0 %v2410
    %2702 = vmatpush.bf16.msra.mxu0 %v2406
    %2703 = vmatpush.bf16.msra.mxu0 %v2402
    %2704 = vmatpush.bf16.msra.mxu0 %v2398
    %2705 = vmatpush.bf16.msra.mxu0 %v2394
    %2706 = vmatpush.bf16.msra.mxu0 %v2390
    %2707 = vmatpush.bf16.msra.mxu0 %v2386
    %2708 = vmatmul.bf16.gmra.mxu0 %v2157
    %v2709 = vpop.f32.mrf.mxu0
    %v2710 = vadd.f32 %v2666, %v2709
    %v2711 = vpop.f32.mrf.mxu0
    %v2712 = vadd.f32 %v2668, %v2711
    %2713 = vmatmul.bf16.gmra.mxu0 %v1451
    %v2714 = vpop.f32.mrf.mxu0
    %v2715 = vadd.f32 %v2671, %v2714
    %v2716 = vpop.f32.mrf.mxu0
    %v2717 = vadd.f32 %v2673, %v2716
    %2718 = vmatmul.bf16.gmra.mxu0 %v1453
    %v2719 = vpop.f32.mrf.mxu0
    %v2720 = vadd.f32 %v2676, %v2719
    %v2721 = vpop.f32.mrf.mxu0
    %v2722 = vadd.f32 %v2678, %v2721
    %2723 = vmatmul.bf16.gmra.mxu0 %v1455
    %v2724 = vpop.f32.mrf.mxu0
    %v2725 = vadd.f32 %v2681, %v2724
    %v2726 = vpop.f32.mrf.mxu0
    %v2727 = vadd.f32 %v2683, %v2726
    %2728 = vmatmul.bf16.gmra.mxu0 %v1457
    %v2729 = vpop.f32.mrf.mxu0
    %v2730 = vadd.f32 %v2686, %v2729
    %v2731 = vpop.f32.mrf.mxu0
    %v2732 = vadd.f32 %v2688, %v2731
    %2733 = vmatmul.bf16.gmra.mxu0 %v1459
    %v2734 = vpop.f32.mrf.mxu0
    %v2735 = vadd.f32 %v2691, %v2734
    %v2736 = vpop.f32.mrf.mxu0
    %v2737 = vadd.f32 %v2693, %v2736
    %2738 = vmatmul.bf16.gmra.mxu0 %v1461
    %v2739 = vpop.f32.mrf.mxu0
    %v2740 = vadd.f32 %v2696, %v2739
    %v2741 = vpop.f32.mrf.mxu0
    %v2742 = vadd.f32 %v2698, %v2741
    %2743 = vdwg.mxu0
    %2744 = vmatpush.bf16.msra.mxu0 %v2383
    %2745 = vmatpush.bf16.msra.mxu0 %v2379
    %2746 = vmatpush.bf16.msra.mxu0 %v2375
    %2747 = vmatpush.bf16.msra.mxu0 %v2371
    %2748 = vmatpush.bf16.msra.mxu0 %v2367
    %2749 = vmatpush.bf16.msra.mxu0 %v2363
    %2750 = vmatpush.bf16.msra.mxu0 %v2359
    %2751 = vmatpush.bf16.msra.mxu0 %v2355
    %2752 = vmatmul.bf16.gmra.mxu0 %v2156
    %v2753 = vpop.f32.mrf.mxu0
    %v2754 = vadd.f32 %v2116, %v2753
    %v2755 = vpop.f32.mrf.mxu0
    %v2756 = vadd.f32 %v2118, %v2755
    %2757 = vmatmul.bf16.gmra.mxu0 %v1450
    %v2758 = vpop.f32.mrf.mxu0
    %v2759 = vadd.f32 %v2121, %v2758
    %v2760 = vpop.f32.mrf.mxu0
    %v2761 = vadd.f32 %v2123, %v2760
    %2762 = vmatmul.bf16.gmra.mxu0 %v1452
    %v2763 = vpop.f32.mrf.mxu0
    %v2764 = vadd.f32 %v2126, %v2763
    %v2765 = vpop.f32.mrf.mxu0
    %v2766 = vadd.f32 %v2128, %v2765
    %2767 = vmatmul.bf16.gmra.mxu0 %v1454
    %v2768 = vpop.f32.mrf.mxu0
    %v2769 = vadd.f32 %v2131, %v2768
    %v2770 = vpop.f32.mrf.mxu0
    %v2771 = vadd.f32 %v2133, %v2770
    %2772 = vmatmul.bf16.gmra.mxu0 %v1456
    %v2773 = vpop.f32.mrf.mxu0
    %v2774 = vadd.f32 %v2136, %v2773
    %v2775 = vpop.f32.mrf.mxu0
    %v2776 = vadd.f32 %v2138, %v2775
    %2777 = vmatmul.bf16.gmra.mxu0 %v1458
    %v2778 = vpop.f32.mrf.mxu0
    %v2779 = vadd.f32 %v2141, %v2778
    %v2780 = vpop.f32.mrf.mxu0
    %v2781 = vadd.f32 %v2143, %v2780
    %2782 = vmatmul.bf16.gmra.mxu0 %v1460
    %v2783 = vpop.f32.mrf.mxu0
    %v2784 = vadd.f32 %v2146, %v2783
    %v2785 = vpop.f32.mrf.mxu0
    %v2786 = vadd.f32 %v2148, %v2785
    %2787 = vdwg.mxu0
    %2788 = vmatpush.bf16.msra.mxu0 %v2415
    %2789 = vmatpush.bf16.msra.mxu0 %v2411
    %2790 = vmatpush.bf16.msra.mxu0 %v2407
    %2791 = vmatpush.bf16.msra.mxu0 %v2403
    %2792 = vmatpush.bf16.msra.mxu0 %v2399
    %2793 = vmatpush.bf16.msra.mxu0 %v2395
    %2794 = vmatpush.bf16.msra.mxu0 %v2391
    %2795 = vmatpush.bf16.msra.mxu0 %v2387
    %2796 = vmatmul.bf16.gmra.mxu0 %v2157
    %v2797 = vpop.f32.mrf.mxu0
    %v2798 = vadd.f32 %v2754, %v2797
    %v2799 = vpop.f32.mrf.mxu0
    %v2800 = vadd.f32 %v2756, %v2799
    %2801 = vmatmul.bf16.gmra.mxu0 %v1451
    %v2802 = vpop.f32.mrf.mxu0
    %v2803 = vadd.f32 %v2759, %v2802
    %v2804 = vpop.f32.mrf.mxu0
    %v2805 = vadd.f32 %v2761, %v2804
    %2806 = vmatmul.bf16.gmra.mxu0 %v1453
    %v2807 = vpop.f32.mrf.mxu0
    %v2808 = vadd.f32 %v2764, %v2807
    %v2809 = vpop.f32.mrf.mxu0
    %v2810 = vadd.f32 %v2766, %v2809
    %2811 = vmatmul.bf16.gmra.mxu0 %v1455
    %v2812 = vpop.f32.mrf.mxu0
    %v2813 = vadd.f32 %v2769, %v2812
    %v2814 = vpop.f32.mrf.mxu0
    %v2815 = vadd.f32 %v2771, %v2814
    %2816 = vmatmul.bf16.gmra.mxu0 %v1457
    %v2817 = vpop.f32.mrf.mxu0
    %v2818 = vadd.f32 %v2774, %v2817
    %v2819 = vpop.f32.mrf.mxu0
    %v2820 = vadd.f32 %v2776, %v2819
    %2821 = vmatmul.bf16.gmra.mxu0 %v1459
    %v2822 = vpop.f32.mrf.mxu0
    %v2823 = vadd.f32 %v2779, %v2822
    %v2824 = vpop.f32.mrf.mxu0
    %v2825 = vadd.f32 %v2781, %v2824
    %2826 = vmatmul.bf16.gmra.mxu0 %v1461
    %v2827 = vpop.f32.mrf.mxu0
    %v2828 = vadd.f32 %v2784, %v2827
    %v2829 = vpop.f32.mrf.mxu0
    %v2830 = vadd.f32 %v2786, %v2829
    %2831 = vdwg.mxu0
    %v2832 = vld [vmem:[#allocation3 + $0x20] sm:$0xff]
    %v2833 = vld [vmem:[#allocation3 + $0x28] sm:$0xff]
    %v2834 = vld [vmem:[#allocation3 + $0x30] sm:$0xff]
    %v2835 = vld [vmem:[#allocation3 + $0x38] sm:$0xff]
    %v2836 = vld [vmem:[#allocation3 + $0x40] sm:$0xff]
    %v2837 = vld [vmem:[#allocation3 + $0x48] sm:$0xff]
    %v2838 = vld [vmem:[#allocation3 + $0x50] sm:$0xff]
    %v2839 = vld [vmem:[#allocation3 + $0x58] sm:$0xff]
    %v2840 = vld [vmem:[#allocation3 + $0x60] sm:$0xff]
    %v2841 = vld [vmem:[#allocation3 + $0x68] sm:$0xff]
    %v2842 = vld [vmem:[#allocation3 + $0x70] sm:$0xff]
    %v2843 = vld [vmem:[#allocation3 + $0x78] sm:$0xff]
    %v2844 = vld [vmem:[#allocation3 + $0x80] sm:$0xff]
    %v2845 = vld [vmem:[#allocation3 + $0x88] sm:$0xff]
    %s2846 = scalar_lea.vmem [#allocation4], 1024
    %v2847 = vld [vmem:[%s2846] sm:$0xff]
    %v2848 = vld [vmem:[%s2846 + $0x8] sm:$0xff]
    %v2849 = vld [vmem:[%s2846 + $0x10] sm:$0xff]
    %v2850 = vld [vmem:[%s2846 + $0x18] sm:$0xff]
    %v2851 = vld [vmem:[%s2846 + $0x20] sm:$0xff]
    %v2852 = vld [vmem:[%s2846 + $0x28] sm:$0xff]
    %v2853 = vld [vmem:[%s2846 + $0x30] sm:$0xff]
    %v2854 = vld [vmem:[%s2846 + $0x38] sm:$0xff]
    %v2855 = vld [vmem:[%s2846 + $0x40] sm:$0xff]
    %v2856 = vld [vmem:[%s2846 + $0x48] sm:$0xff]
    %v2857 = vld [vmem:[%s2846 + $0x50] sm:$0xff]
    %v2858 = vld [vmem:[%s2846 + $0x58] sm:$0xff]
    %v2859 = vld [vmem:[%s2846 + $0x60] sm:$0xff]
    %v2860 = vld [vmem:[%s2846 + $0x68] sm:$0xff]
    %v2861 = vld [vmem:[%s2846 + $0x70] sm:$0xff]
    %v2862 = vld [vmem:[%s2846 + $0x78] sm:$0xff]
    %v2863 = vld [vmem:[%s2846 + $0x80] sm:$0xff]
    %v2864 = vld [vmem:[%s2846 + $0x88] sm:$0xff]
    %v2865 = vld [vmem:[%s2846 + $0x90] sm:$0xff]
    %v2866 = vld [vmem:[%s2846 + $0x98] sm:$0xff]
    %v2867 = vld [vmem:[%s2846 + $0xa0] sm:$0xff]
    %v2868 = vld [vmem:[%s2846 + $0xa8] sm:$0xff]
    %v2869 = vld [vmem:[%s2846 + $0xb0] sm:$0xff]
    %v2870 = vld [vmem:[%s2846 + $0xb8] sm:$0xff]
    %v2871 = vld [vmem:[%s2846 + $0xc0] sm:$0xff]
    %v2872 = vld [vmem:[%s2846 + $0xc8] sm:$0xff]
    %v2873 = vld [vmem:[%s2846 + $0xd0] sm:$0xff]
    %v2874 = vld [vmem:[%s2846 + $0xd8] sm:$0xff]
    %v2875 = vld [vmem:[%s2846 + $0xe0] sm:$0xff]
    %v2876 = vld [vmem:[%s2846 + $0xe8] sm:$0xff]
    %v2877 = vld [vmem:[%s2846 + $0xf0] sm:$0xff]
    %v2878 = vld [vmem:[%s2846 + $0xf8] sm:$0xff]
    %v2879 = vld [vmem:[%s2846 + $0x100] sm:$0xff]
    %v2880 = vld [vmem:[%s2846 + $0x108] sm:$0xff]
    %v2881 = vld [vmem:[%s2846 + $0x110] sm:$0xff]
    %v2882 = vld [vmem:[%s2846 + $0x118] sm:$0xff]
    %v2883 = vld [vmem:[%s2846 + $0x120] sm:$0xff]
    %v2884 = vld [vmem:[%s2846 + $0x128] sm:$0xff]
    %v2885 = vld [vmem:[%s2846 + $0x130] sm:$0xff]
    %v2886 = vld [vmem:[%s2846 + $0x138] sm:$0xff]
    %v2887 = vld [vmem:[%s2846 + $0x140] sm:$0xff]
    %v2888 = vld [vmem:[%s2846 + $0x148] sm:$0xff]
    %v2889 = vld [vmem:[%s2846 + $0x150] sm:$0xff]
    %v2890 = vld [vmem:[%s2846 + $0x158] sm:$0xff]
    %v2891 = vld [vmem:[%s2846 + $0x160] sm:$0xff]
    %v2892 = vld [vmem:[%s2846 + $0x168] sm:$0xff]
    %v2893 = vld [vmem:[%s2846 + $0x170] sm:$0xff]
    %v2894 = vld [vmem:[%s2846 + $0x178] sm:$0xff]
    %v2895 = vld [vmem:[%s2846 + $0x180] sm:$0xff]
    %v2896 = vld [vmem:[%s2846 + $0x188] sm:$0xff]
    %v2897 = vld [vmem:[%s2846 + $0x190] sm:$0xff]
    %v2898 = vld [vmem:[%s2846 + $0x198] sm:$0xff]
    %v2899 = vld [vmem:[%s2846 + $0x1a0] sm:$0xff]
    %v2900 = vld [vmem:[%s2846 + $0x1a8] sm:$0xff]
    %v2901 = vld [vmem:[%s2846 + $0x1b0] sm:$0xff]
    %v2902 = vld [vmem:[%s2846 + $0x1b8] sm:$0xff]
    %v2903 = vld [vmem:[%s2846 + $0x1c0] sm:$0xff]
    %v2904 = vld [vmem:[%s2846 + $0x1c8] sm:$0xff]
    %v2905 = vld [vmem:[%s2846 + $0x1d0] sm:$0xff]
    %v2906 = vld [vmem:[%s2846 + $0x1d8] sm:$0xff]
    %v2907 = vld [vmem:[%s2846 + $0x1e0] sm:$0xff]
    %v2908 = vld [vmem:[%s2846 + $0x1e8] sm:$0xff]
    %v2909 = vld [vmem:[%s2846 + $0x1f0] sm:$0xff]
    %v2910 = vld [vmem:[%s2846 + $0x1f8] sm:$0xff]
    %v2925 = vunpack.c.l.b16 %v2832
    %v2926 = vunpack.c.h.b16 %v2832
    %v2927 = vunpack.c.l.b16 %v2833
    %v2928 = vunpack.c.h.b16 %v2833
    %v2929 = vunpack.c.l.b16 %v2834
    %v2930 = vunpack.c.h.b16 %v2834
    %v2931 = vunpack.c.l.b16 %v2835
    %v2932 = vunpack.c.h.b16 %v2835
    %v2933 = vunpack.c.l.b16 %v2836
    %v2934 = vunpack.c.h.b16 %v2836
    %v2935 = vunpack.c.l.b16 %v2837
    %v2936 = vunpack.c.h.b16 %v2837
    %v2937 = vunpack.c.l.b16 %v2838
    %v2938 = vunpack.c.h.b16 %v2838
    %v2939 = vunpack.c.l.b16 %v2839
    %v2940 = vunpack.c.h.b16 %v2839
    %v2941 = vunpack.c.l.b16 %v2840
    %v2942 = vunpack.c.h.b16 %v2840
    %v2943 = vunpack.c.l.b16 %v2841
    %v2944 = vunpack.c.h.b16 %v2841
    %v2945 = vunpack.c.l.b16 %v2842
    %v2946 = vunpack.c.h.b16 %v2842
    %v2947 = vunpack.c.l.b16 %v2843
    %v2948 = vunpack.c.h.b16 %v2843
    %v2949 = vunpack.c.l.b16 %v2844
    %v2950 = vunpack.c.h.b16 %v2844
    %v2951 = vunpack.c.l.b16 %v2845
    %v2952 = vunpack.c.h.b16 %v2845
    %v2953 = vpack.c.b16 %v2927, %v2925
    %v2954 = vpack.c.b16 %v2928, %v2926
    %v2955 = vpack.c.b16 %v2931, %v2929
    %v2956 = vpack.c.b16 %v2932, %v2930
    %v2957 = vpack.c.b16 %v2935, %v2933
    %v2958 = vpack.c.b16 %v2936, %v2934
    %v2959 = vpack.c.b16 %v2939, %v2937
    %v2960 = vpack.c.b16 %v2940, %v2938
    %v2961 = vpack.c.b16 %v2943, %v2941
    %v2962 = vpack.c.b16 %v2944, %v2942
    %v2963 = vpack.c.b16 %v2947, %v2945
    %v2964 = vpack.c.b16 %v2948, %v2946
    %v2965 = vpack.c.b16 %v2951, %v2949
    %v2966 = vpack.c.b16 %v2952, %v2950
    %v3045 = vunpack.c.l.b16 %v2847
    %v3046 = vunpack.c.h.b16 %v2847
    %v3047 = vunpack.c.l.b16 %v2848
    %v3048 = vunpack.c.h.b16 %v2848
    %v3049 = vunpack.c.l.b16 %v2849
    %v3050 = vunpack.c.h.b16 %v2849
    %v3051 = vunpack.c.l.b16 %v2850
    %v3052 = vunpack.c.h.b16 %v2850
    %v3053 = vunpack.c.l.b16 %v2851
    %v3054 = vunpack.c.h.b16 %v2851
    %v3055 = vunpack.c.l.b16 %v2852
    %v3056 = vunpack.c.h.b16 %v2852
    %v3057 = vunpack.c.l.b16 %v2853
    %v3058 = vunpack.c.h.b16 %v2853
    %v3059 = vunpack.c.l.b16 %v2854
    %v3060 = vunpack.c.h.b16 %v2854
    %v3061 = vunpack.c.l.b16 %v2855
    %v3062 = vunpack.c.h.b16 %v2855
    %v3063 = vunpack.c.l.b16 %v2856
    %v3064 = vunpack.c.h.b16 %v2856
    %v3065 = vunpack.c.l.b16 %v2857
    %v3066 = vunpack.c.h.b16 %v2857
    %v3067 = vunpack.c.l.b16 %v2858
    %v3068 = vunpack.c.h.b16 %v2858
    %v3069 = vunpack.c.l.b16 %v2859
    %v3070 = vunpack.c.h.b16 %v2859
    %v3071 = vunpack.c.l.b16 %v2860
    %v3072 = vunpack.c.h.b16 %v2860
    %v3073 = vunpack.c.l.b16 %v2861
    %v3074 = vunpack.c.h.b16 %v2861
    %v3075 = vunpack.c.l.b16 %v2862
    %v3076 = vunpack.c.h.b16 %v2862
    %v3077 = vunpack.c.l.b16 %v2863
    %v3078 = vunpack.c.h.b16 %v2863
    %v3079 = vunpack.c.l.b16 %v2864
    %v3080 = vunpack.c.h.b16 %v2864
    %v3081 = vunpack.c.l.b16 %v2865
    %v3082 = vunpack.c.h.b16 %v2865
    %v3083 = vunpack.c.l.b16 %v2866
    %v3084 = vunpack.c.h.b16 %v2866
    %v3085 = vunpack.c.l.b16 %v2867
    %v3086 = vunpack.c.h.b16 %v2867
    %v3087 = vunpack.c.l.b16 %v2868
    %v3088 = vunpack.c.h.b16 %v2868
    %v3089 = vunpack.c.l.b16 %v2869
    %v3090 = vunpack.c.h.b16 %v2869
    %v3091 = vunpack.c.l.b16 %v2870
    %v3092 = vunpack.c.h.b16 %v2870
    %v3093 = vunpack.c.l.b16 %v2871
    %v3094 = vunpack.c.h.b16 %v2871
    %v3095 = vunpack.c.l.b16 %v2872
    %v3096 = vunpack.c.h.b16 %v2872
    %v3097 = vunpack.c.l.b16 %v2873
    %v3098 = vunpack.c.h.b16 %v2873
    %v3099 = vunpack.c.l.b16 %v2874
    %v3100 = vunpack.c.h.b16 %v2874
    %v3101 = vunpack.c.l.b16 %v2875
    %v3102 = vunpack.c.h.b16 %v2875
    %v3103 = vunpack.c.l.b16 %v2876
    %v3104 = vunpack.c.h.b16 %v2876
    %v3105 = vunpack.c.l.b16 %v2877
    %v3106 = vunpack.c.h.b16 %v2877
    %v3107 = vunpack.c.l.b16 %v2878
    %v3108 = vunpack.c.h.b16 %v2878
    %v3109 = vunpack.c.l.b16 %v2879
    %v3110 = vunpack.c.h.b16 %v2879
    %v3111 = vunpack.c.l.b16 %v2880
    %v3112 = vunpack.c.h.b16 %v2880
    %v3113 = vunpack.c.l.b16 %v2881
    %v3114 = vunpack.c.h.b16 %v2881
    %v3115 = vunpack.c.l.b16 %v2882
    %v3116 = vunpack.c.h.b16 %v2882
    %v3117 = vunpack.c.l.b16 %v2883
    %v3118 = vunpack.c.h.b16 %v2883
    %v3119 = vunpack.c.l.b16 %v2884
    %v3120 = vunpack.c.h.b16 %v2884
    %v3121 = vunpack.c.l.b16 %v2885
    %v3122 = vunpack.c.h.b16 %v2885
    %v3123 = vunpack.c.l.b16 %v2886
    %v3124 = vunpack.c.h.b16 %v2886
    %v3125 = vunpack.c.l.b16 %v2887
    %v3126 = vunpack.c.h.b16 %v2887
    %v3127 = vunpack.c.l.b16 %v2888
    %v3128 = vunpack.c.h.b16 %v2888
    %v3129 = vunpack.c.l.b16 %v2889
    %v3130 = vunpack.c.h.b16 %v2889
    %v3131 = vunpack.c.l.b16 %v2890
    %v3132 = vunpack.c.h.b16 %v2890
    %v3133 = vunpack.c.l.b16 %v2891
    %v3134 = vunpack.c.h.b16 %v2891
    %v3135 = vunpack.c.l.b16 %v2892
    %v3136 = vunpack.c.h.b16 %v2892
    %v3137 = vunpack.c.l.b16 %v2893
    %v3138 = vunpack.c.h.b16 %v2893
    %v3139 = vunpack.c.l.b16 %v2894
    %v3140 = vunpack.c.h.b16 %v2894
    %v3141 = vunpack.c.l.b16 %v2895
    %v3142 = vunpack.c.h.b16 %v2895
    %v3143 = vunpack.c.l.b16 %v2896
    %v3144 = vunpack.c.h.b16 %v2896
    %v3145 = vunpack.c.l.b16 %v2897
    %v3146 = vunpack.c.h.b16 %v2897
    %v3147 = vunpack.c.l.b16 %v2898
    %v3148 = vunpack.c.h.b16 %v2898
    %v3149 = vunpack.c.l.b16 %v2899
    %v3150 = vunpack.c.h.b16 %v2899
    %v3151 = vunpack.c.l.b16 %v2900
    %v3152 = vunpack.c.h.b16 %v2900
    %v3153 = vunpack.c.l.b16 %v2901
    %v3154 = vunpack.c.h.b16 %v2901
    %v3155 = vunpack.c.l.b16 %v2902
    %v3156 = vunpack.c.h.b16 %v2902
    %v3157 = vunpack.c.l.b16 %v2903
    %v3158 = vunpack.c.h.b16 %v2903
    %v3159 = vunpack.c.l.b16 %v2904
    %v3160 = vunpack.c.h.b16 %v2904
    %v3161 = vunpack.c.l.b16 %v2905
    %v3162 = vunpack.c.h.b16 %v2905
    %v3163 = vunpack.c.l.b16 %v2906
    %v3164 = vunpack.c.h.b16 %v2906
    %v3165 = vunpack.c.l.b16 %v2907
    %v3166 = vunpack.c.h.b16 %v2907
    %v3167 = vunpack.c.l.b16 %v2908
    %v3168 = vunpack.c.h.b16 %v2908
    %v3169 = vunpack.c.l.b16 %v2909
    %v3170 = vunpack.c.h.b16 %v2909
    %v3171 = vunpack.c.l.b16 %v2910
    %v3172 = vunpack.c.h.b16 %v2910
    %v3173 = vpack.c.b16 %v3049, %v3045
    %v3174 = vpack.c.b16 %v3050, %v3046
    %v3175 = vpack.c.b16 %v3051, %v3047
    %v3176 = vpack.c.b16 %v3052, %v3048
    %v3177 = vpack.c.b16 %v3057, %v3053
    %v3178 = vpack.c.b16 %v3058, %v3054
    %v3179 = vpack.c.b16 %v3059, %v3055
    %v3180 = vpack.c.b16 %v3060, %v3056
    %v3181 = vpack.c.b16 %v3065, %v3061
    %v3182 = vpack.c.b16 %v3066, %v3062
    %v3183 = vpack.c.b16 %v3067, %v3063
    %v3184 = vpack.c.b16 %v3068, %v3064
    %v3185 = vpack.c.b16 %v3073, %v3069
    %v3186 = vpack.c.b16 %v3074, %v3070
    %v3187 = vpack.c.b16 %v3075, %v3071
    %v3188 = vpack.c.b16 %v3076, %v3072
    %v3189 = vpack.c.b16 %v3081, %v3077
    %v3190 = vpack.c.b16 %v3082, %v3078
    %v3191 = vpack.c.b16 %v3083, %v3079
    %v3192 = vpack.c.b16 %v3084, %v3080
    %v3193 = vpack.c.b16 %v3089, %v3085
    %v3194 = vpack.c.b16 %v3090, %v3086
    %v3195 = vpack.c.b16 %v3091, %v3087
    %v3196 = vpack.c.b16 %v3092, %v3088
    %v3197 = vpack.c.b16 %v3097, %v3093
    %v3198 = vpack.c.b16 %v3098, %v3094
    %v3199 = vpack.c.b16 %v3099, %v3095
    %v3200 = vpack.c.b16 %v3100, %v3096
    %v3201 = vpack.c.b16 %v3105, %v3101
    %v3202 = vpack.c.b16 %v3106, %v3102
    %v3203 = vpack.c.b16 %v3107, %v3103
    %v3204 = vpack.c.b16 %v3108, %v3104
    %v3205 = vpack.c.b16 %v3113, %v3109
    %v3206 = vpack.c.b16 %v3114, %v3110
    %v3207 = vpack.c.b16 %v3115, %v3111
    %v3208 = vpack.c.b16 %v3116, %v3112
    %v3209 = vpack.c.b16 %v3121, %v3117
    %v3210 = vpack.c.b16 %v3122, %v3118
    %v3211 = vpack.c.b16 %v3123, %v3119
    %v3212 = vpack.c.b16 %v3124, %v3120
    %v3213 = vpack.c.b16 %v3129, %v3125
    %v3214 = vpack.c.b16 %v3130, %v3126
    %v3215 = vpack.c.b16 %v3131, %v3127
    %v3216 = vpack.c.b16 %v3132, %v3128
    %v3217 = vpack.c.b16 %v3137, %v3133
    %v3218 = vpack.c.b16 %v3138, %v3134
    %v3219 = vpack.c.b16 %v3139, %v3135
    %v3220 = vpack.c.b16 %v3140, %v3136
    %v3221 = vpack.c.b16 %v3145, %v3141
    %v3222 = vpack.c.b16 %v3146, %v3142
    %v3223 = vpack.c.b16 %v3147, %v3143
    %v3224 = vpack.c.b16 %v3148, %v3144
    %v3225 = vpack.c.b16 %v3153, %v3149
    %v3226 = vpack.c.b16 %v3154, %v3150
    %v3227 = vpack.c.b16 %v3155, %v3151
    %v3228 = vpack.c.b16 %v3156, %v3152
    %v3229 = vpack.c.b16 %v3161, %v3157
    %v3230 = vpack.c.b16 %v3162, %v3158
    %v3231 = vpack.c.b16 %v3163, %v3159
    %v3232 = vpack.c.b16 %v3164, %v3160
    %v3233 = vpack.c.b16 %v3169, %v3165
    %v3234 = vpack.c.b16 %v3170, %v3166
    %v3235 = vpack.c.b16 %v3171, %v3167
    %v3236 = vpack.c.b16 %v3172, %v3168
    %3301 = vmatpush.bf16.msra.mxu0 %v3201
    %3302 = vmatpush.bf16.msra.mxu0 %v3197
    %3303 = vmatpush.bf16.msra.mxu0 %v3193
    %3304 = vmatpush.bf16.msra.mxu0 %v3189
    %3305 = vmatpush.bf16.msra.mxu0 %v3185
    %3306 = vmatpush.bf16.msra.mxu0 %v3181
    %3307 = vmatpush.bf16.msra.mxu0 %v3177
    %3308 = vmatpush.bf16.msra.mxu0 %v3173
    %3309 = vmatmul.bf16.gmra.mxu0 %v2953
    %v3310 = vpop.f32.mrf.mxu0
    %v3311 = vadd.f32 0.0, %v3310
    %v3312 = vpop.f32.mrf.mxu0
    %v3313 = vadd.f32 0.0, %v3312
    %3314 = vmatmul.bf16.gmra.mxu0 %v2955
    %v3315 = vpop.f32.mrf.mxu0
    %v3316 = vadd.f32 0.0, %v3315
    %v3317 = vpop.f32.mrf.mxu0
    %v3318 = vadd.f32 0.0, %v3317
    %3319 = vmatmul.bf16.gmra.mxu0 %v2957
    %v3320 = vpop.f32.mrf.mxu0
    %v3321 = vadd.f32 0.0, %v3320
    %v3322 = vpop.f32.mrf.mxu0
    %v3323 = vadd.f32 0.0, %v3322
    %3324 = vmatmul.bf16.gmra.mxu0 %v2959
    %v3325 = vpop.f32.mrf.mxu0
    %v3326 = vadd.f32 0.0, %v3325
    %v3327 = vpop.f32.mrf.mxu0
    %v3328 = vadd.f32 0.0, %v3327
    %3329 = vmatmul.bf16.gmra.mxu0 %v2961
    %v3330 = vpop.f32.mrf.mxu0
    %v3331 = vadd.f32 0.0, %v3330
    %v3332 = vpop.f32.mrf.mxu0
    %v3333 = vadd.f32 0.0, %v3332
    %3334 = vmatmul.bf16.gmra.mxu0 %v2963
    %v3335 = vpop.f32.mrf.mxu0
    %v3336 = vadd.f32 0.0, %v3335
    %v3337 = vpop.f32.mrf.mxu0
    %v3338 = vadd.f32 0.0, %v3337
    %3339 = vmatmul.bf16.gmra.mxu0 %v2965
    %v3340 = vpop.f32.mrf.mxu0
    %v3341 = vadd.f32 0.0, %v3340
    %v3342 = vpop.f32.mrf.mxu0
    %v3343 = vadd.f32 0.0, %v3342
    %3344 = vdwg.mxu0
    %3345 = vmatpush.bf16.msra.mxu0 %v3233
    %3346 = vmatpush.bf16.msra.mxu0 %v3229
    %3347 = vmatpush.bf16.msra.mxu0 %v3225
    %3348 = vmatpush.bf16.msra.mxu0 %v3221
    %3349 = vmatpush.bf16.msra.mxu0 %v3217
    %3350 = vmatpush.bf16.msra.mxu0 %v3213
    %3351 = vmatpush.bf16.msra.mxu0 %v3209
    %3352 = vmatpush.bf16.msra.mxu0 %v3205
    %3353 = vmatmul.bf16.gmra.mxu0 %v2954
    %v3354 = vpop.f32.mrf.mxu0
    %v3355 = vadd.f32 %v3311, %v3354
    %v3356 = vpop.f32.mrf.mxu0
    %v3357 = vadd.f32 %v3313, %v3356
    %3358 = vmatmul.bf16.gmra.mxu0 %v2956
    %v3359 = vpop.f32.mrf.mxu0
    %v3360 = vadd.f32 %v3316, %v3359
    %v3361 = vpop.f32.mrf.mxu0
    %v3362 = vadd.f32 %v3318, %v3361
    %3363 = vmatmul.bf16.gmra.mxu0 %v2958
    %v3364 = vpop.f32.mrf.mxu0
    %v3365 = vadd.f32 %v3321, %v3364
    %v3366 = vpop.f32.mrf.mxu0
    %v3367 = vadd.f32 %v3323, %v3366
    %3368 = vmatmul.bf16.gmra.mxu0 %v2960
    %v3369 = vpop.f32.mrf.mxu0
    %v3370 = vadd.f32 %v3326, %v3369
    %v3371 = vpop.f32.mrf.mxu0
    %v3372 = vadd.f32 %v3328, %v3371
    %3373 = vmatmul.bf16.gmra.mxu0 %v2962
    %v3374 = vpop.f32.mrf.mxu0
    %v3375 = vadd.f32 %v3331, %v3374
    %v3376 = vpop.f32.mrf.mxu0
    %v3377 = vadd.f32 %v3333, %v3376
    %3378 = vmatmul.bf16.gmra.mxu0 %v2964
    %v3379 = vpop.f32.mrf.mxu0
    %v3380 = vadd.f32 %v3336, %v3379
    %v3381 = vpop.f32.mrf.mxu0
    %v3382 = vadd.f32 %v3338, %v3381
    %3383 = vmatmul.bf16.gmra.mxu0 %v2966
    %v3384 = vpop.f32.mrf.mxu0
    %v3385 = vadd.f32 %v3341, %v3384
    %v3386 = vpop.f32.mrf.mxu0
    %v3387 = vadd.f32 %v3343, %v3386
    %3388 = vdwg.mxu0
    %3389 = vmatpush.bf16.msra.mxu0 %v3202
    %3390 = vmatpush.bf16.msra.mxu0 %v3198
    %3391 = vmatpush.bf16.msra.mxu0 %v3194
    %3392 = vmatpush.bf16.msra.mxu0 %v3190
    %3393 = vmatpush.bf16.msra.mxu0 %v3186
    %3394 = vmatpush.bf16.msra.mxu0 %v3182
    %3395 = vmatpush.bf16.msra.mxu0 %v3178
    %3396 = vmatpush.bf16.msra.mxu0 %v3174
    %3397 = vmatmul.bf16.gmra.mxu0 %v2953
    %v3398 = vpop.f32.mrf.mxu0
    %v3399 = vadd.f32 0.0, %v3398
    %v3400 = vpop.f32.mrf.mxu0
    %v3401 = vadd.f32 0.0, %v3400
    %3402 = vmatmul.bf16.gmra.mxu0 %v2955
    %v3403 = vpop.f32.mrf.mxu0
    %v3404 = vadd.f32 0.0, %v3403
    %v3405 = vpop.f32.mrf.mxu0
    %v3406 = vadd.f32 0.0, %v3405
    %3407 = vmatmul.bf16.gmra.mxu0 %v2957
    %v3408 = vpop.f32.mrf.mxu0
    %v3409 = vadd.f32 0.0, %v3408
    %v3410 = vpop.f32.mrf.mxu0
    %v3411 = vadd.f32 0.0, %v3410
    %3412 = vmatmul.bf16.gmra.mxu0 %v2959
    %v3413 = vpop.f32.mrf.mxu0
    %v3414 = vadd.f32 0.0, %v3413
    %v3415 = vpop.f32.mrf.mxu0
    %v3416 = vadd.f32 0.0, %v3415
    %3417 = vmatmul.bf16.gmra.mxu0 %v2961
    %v3418 = vpop.f32.mrf.mxu0
    %v3419 = vadd.f32 0.0, %v3418
    %v3420 = vpop.f32.mrf.mxu0
    %v3421 = vadd.f32 0.0, %v3420
    %3422 = vmatmul.bf16.gmra.mxu0 %v2963
    %v3423 = vpop.f32.mrf.mxu0
    %v3424 = vadd.f32 0.0, %v3423
    %v3425 = vpop.f32.mrf.mxu0
    %v3426 = vadd.f32 0.0, %v3425
    %3427 = vmatmul.bf16.gmra.mxu0 %v2965
    %v3428 = vpop.f32.mrf.mxu0
    %v3429 = vadd.f32 0.0, %v3428
    %v3430 = vpop.f32.mrf.mxu0
    %v3431 = vadd.f32 0.0, %v3430
    %3432 = vdwg.mxu0
    %3433 = vmatpush.bf16.msra.mxu0 %v3234
    %3434 = vmatpush.bf16.msra.mxu0 %v3230
    %3435 = vmatpush.bf16.msra.mxu0 %v3226
    %3436 = vmatpush.bf16.msra.mxu0 %v3222
    %3437 = vmatpush.bf16.msra.mxu0 %v3218
    %3438 = vmatpush.bf16.msra.mxu0 %v3214
    %3439 = vmatpush.bf16.msra.mxu0 %v3210
    %3440 = vmatpush.bf16.msra.mxu0 %v3206
    %3441 = vmatmul.bf16.gmra.mxu0 %v2954
    %v3442 = vpop.f32.mrf.mxu0
    %v3443 = vadd.f32 %v3399, %v3442
    %v3444 = vpop.f32.mrf.mxu0
    %v3445 = vadd.f32 %v3401, %v3444
    %3446 = vmatmul.bf16.gmra.mxu0 %v2956
    %v3447 = vpop.f32.mrf.mxu0
    %v3448 = vadd.f32 %v3404, %v3447
    %v3449 = vpop.f32.mrf.mxu0
    %v3450 = vadd.f32 %v3406, %v3449
    %3451 = vmatmul.bf16.gmra.mxu0 %v2958
    %v3452 = vpop.f32.mrf.mxu0
    %v3453 = vadd.f32 %v3409, %v3452
    %v3454 = vpop.f32.mrf.mxu0
    %v3455 = vadd.f32 %v3411, %v3454
    %3456 = vmatmul.bf16.gmra.mxu0 %v2960
    %v3457 = vpop.f32.mrf.mxu0
    %v3458 = vadd.f32 %v3414, %v3457
    %v3459 = vpop.f32.mrf.mxu0
    %v3460 = vadd.f32 %v3416, %v3459
    %3461 = vmatmul.bf16.gmra.mxu0 %v2962
    %v3462 = vpop.f32.mrf.mxu0
    %v3463 = vadd.f32 %v3419, %v3462
    %v3464 = vpop.f32.mrf.mxu0
    %v3465 = vadd.f32 %v3421, %v3464
    %3466 = vmatmul.bf16.gmra.mxu0 %v2964
    %v3467 = vpop.f32.mrf.mxu0
    %v3468 = vadd.f32 %v3424, %v3467
    %v3469 = vpop.f32.mrf.mxu0
    %v3470 = vadd.f32 %v3426, %v3469
    %3471 = vmatmul.bf16.gmra.mxu0 %v2966
    %v3472 = vpop.f32.mrf.mxu0
    %v3473 = vadd.f32 %v3429, %v3472
    %v3474 = vpop.f32.mrf.mxu0
    %v3475 = vadd.f32 %v3431, %v3474
    %3476 = vdwg.mxu0
    %3477 = vmatpush.bf16.msra.mxu0 %v3203
    %3478 = vmatpush.bf16.msra.mxu0 %v3199
    %3479 = vmatpush.bf16.msra.mxu0 %v3195
    %3480 = vmatpush.bf16.msra.mxu0 %v3191
    %3481 = vmatpush.bf16.msra.mxu0 %v3187
    %3482 = vmatpush.bf16.msra.mxu0 %v3183
    %3483 = vmatpush.bf16.msra.mxu0 %v3179
    %3484 = vmatpush.bf16.msra.mxu0 %v3175
    %3485 = vmatmul.bf16.gmra.mxu0 %v2953
    %v3486 = vpop.f32.mrf.mxu0
    %v3487 = vadd.f32 0.0, %v3486
    %v3488 = vpop.f32.mrf.mxu0
    %v3489 = vadd.f32 0.0, %v3488
    %3490 = vmatmul.bf16.gmra.mxu0 %v2955
    %v3491 = vpop.f32.mrf.mxu0
    %v3492 = vadd.f32 0.0, %v3491
    %v3493 = vpop.f32.mrf.mxu0
    %v3494 = vadd.f32 0.0, %v3493
    %3495 = vmatmul.bf16.gmra.mxu0 %v2957
    %v3496 = vpop.f32.mrf.mxu0
    %v3497 = vadd.f32 0.0, %v3496
    %v3498 = vpop.f32.mrf.mxu0
    %v3499 = vadd.f32 0.0, %v3498
    %3500 = vmatmul.bf16.gmra.mxu0 %v2959
    %v3501 = vpop.f32.mrf.mxu0
    %v3502 = vadd.f32 0.0, %v3501
    %v3503 = vpop.f32.mrf.mxu0
    %v3504 = vadd.f32 0.0, %v3503
    %3505 = vmatmul.bf16.gmra.mxu0 %v2961
    %v3506 = vpop.f32.mrf.mxu0
    %v3507 = vadd.f32 0.0, %v3506
    %v3508 = vpop.f32.mrf.mxu0
    %v3509 = vadd.f32 0.0, %v3508
    %3510 = vmatmul.bf16.gmra.mxu0 %v2963
    %v3511 = vpop.f32.mrf.mxu0
    %v3512 = vadd.f32 0.0, %v3511
    %v3513 = vpop.f32.mrf.mxu0
    %v3514 = vadd.f32 0.0, %v3513
    %3515 = vmatmul.bf16.gmra.mxu0 %v2965
    %v3516 = vpop.f32.mrf.mxu0
    %v3517 = vadd.f32 0.0, %v3516
    %v3518 = vpop.f32.mrf.mxu0
    %v3519 = vadd.f32 0.0, %v3518
    %3520 = vdwg.mxu0
    %3521 = vmatpush.bf16.msra.mxu0 %v3235
    %3522 = vmatpush.bf16.msra.mxu0 %v3231
    %3523 = vmatpush.bf16.msra.mxu0 %v3227
    %3524 = vmatpush.bf16.msra.mxu0 %v3223
    %3525 = vmatpush.bf16.msra.mxu0 %v3219
    %3526 = vmatpush.bf16.msra.mxu0 %v3215
    %3527 = vmatpush.bf16.msra.mxu0 %v3211
    %3528 = vmatpush.bf16.msra.mxu0 %v3207
    %3529 = vmatmul.bf16.gmra.mxu0 %v2954
    %v3530 = vpop.f32.mrf.mxu0
    %v3531 = vadd.f32 %v3487, %v3530
    %v3532 = vpop.f32.mrf.mxu0
    %v3533 = vadd.f32 %v3489, %v3532
    %3534 = vmatmul.bf16.gmra.mxu0 %v2956
    %v3535 = vpop.f32.mrf.mxu0
    %v3536 = vadd.f32 %v3492, %v3535
    %v3537 = vpop.f32.mrf.mxu0
    %v3538 = vadd.f32 %v3494, %v3537
    %3539 = vmatmul.bf16.gmra.mxu0 %v2958
    %v3540 = vpop.f32.mrf.mxu0
    %v3541 = vadd.f32 %v3497, %v3540
    %v3542 = vpop.f32.mrf.mxu0
    %v3543 = vadd.f32 %v3499, %v3542
    %3544 = vmatmul.bf16.gmra.mxu0 %v2960
    %v3545 = vpop.f32.mrf.mxu0
    %v3546 = vadd.f32 %v3502, %v3545
    %v3547 = vpop.f32.mrf.mxu0
    %v3548 = vadd.f32 %v3504, %v3547
    %3549 = vmatmul.bf16.gmra.mxu0 %v2962
    %v3550 = vpop.f32.mrf.mxu0
    %v3551 = vadd.f32 %v3507, %v3550
    %v3552 = vpop.f32.mrf.mxu0
    %v3553 = vadd.f32 %v3509, %v3552
    %3554 = vmatmul.bf16.gmra.mxu0 %v2964
    %v3555 = vpop.f32.mrf.mxu0
    %v3556 = vadd.f32 %v3512, %v3555
    %v3557 = vpop.f32.mrf.mxu0
    %v3558 = vadd.f32 %v3514, %v3557
    %3559 = vmatmul.bf16.gmra.mxu0 %v2966
    %v3560 = vpop.f32.mrf.mxu0
    %v3561 = vadd.f32 %v3517, %v3560
    %v3562 = vpop.f32.mrf.mxu0
    %v3563 = vadd.f32 %v3519, %v3562
    %3564 = vdwg.mxu0
    %3565 = vmatpush.bf16.msra.mxu0 %v3204
    %3566 = vmatpush.bf16.msra.mxu0 %v3200
    %3567 = vmatpush.bf16.msra.mxu0 %v3196
    %3568 = vmatpush.bf16.msra.mxu0 %v3192
    %3569 = vmatpush.bf16.msra.mxu0 %v3188
    %3570 = vmatpush.bf16.msra.mxu0 %v3184
    %3571 = vmatpush.bf16.msra.mxu0 %v3180
    %3572 = vmatpush.bf16.msra.mxu0 %v3176
    %3573 = vmatmul.bf16.gmra.mxu0 %v2953
    %v3574 = vpop.f32.mrf.mxu0
    %v3575 = vadd.f32 0.0, %v3574
    %v3576 = vpop.f32.mrf.mxu0
    %v3577 = vadd.f32 0.0, %v3576
    %3578 = vmatmul.bf16.gmra.mxu0 %v2955
    %v3579 = vpop.f32.mrf.mxu0
    %v3580 = vadd.f32 0.0, %v3579
    %v3581 = vpop.f32.mrf.mxu0
    %v3582 = vadd.f32 0.0, %v3581
    %3583 = vmatmul.bf16.gmra.mxu0 %v2957
    %v3584 = vpop.f32.mrf.mxu0
    %v3585 = vadd.f32 0.0, %v3584
    %v3586 = vpop.f32.mrf.mxu0
    %v3587 = vadd.f32 0.0, %v3586
    %3588 = vmatmul.bf16.gmra.mxu0 %v2959
    %v3589 = vpop.f32.mrf.mxu0
    %v3590 = vadd.f32 0.0, %v3589
    %v3591 = vpop.f32.mrf.mxu0
    %v3592 = vadd.f32 0.0, %v3591
    %3593 = vmatmul.bf16.gmra.mxu0 %v2961
    %v3594 = vpop.f32.mrf.mxu0
    %v3595 = vadd.f32 0.0, %v3594
    %v3596 = vpop.f32.mrf.mxu0
    %v3597 = vadd.f32 0.0, %v3596
    %3598 = vmatmul.bf16.gmra.mxu0 %v2963
    %v3599 = vpop.f32.mrf.mxu0
    %v3600 = vadd.f32 0.0, %v3599
    %v3601 = vpop.f32.mrf.mxu0
    %v3602 = vadd.f32 0.0, %v3601
    %3603 = vmatmul.bf16.gmra.mxu0 %v2965
    %v3604 = vpop.f32.mrf.mxu0
    %v3605 = vadd.f32 0.0, %v3604
    %v3606 = vpop.f32.mrf.mxu0
    %v3607 = vadd.f32 0.0, %v3606
    %3608 = vdwg.mxu0
    %3609 = vmatpush.bf16.msra.mxu0 %v3236
    %3610 = vmatpush.bf16.msra.mxu0 %v3232
    %3611 = vmatpush.bf16.msra.mxu0 %v3228
    %3612 = vmatpush.bf16.msra.mxu0 %v3224
    %3613 = vmatpush.bf16.msra.mxu0 %v3220
    %3614 = vmatpush.bf16.msra.mxu0 %v3216
    %3615 = vmatpush.bf16.msra.mxu0 %v3212
    %3616 = vmatpush.bf16.msra.mxu0 %v3208
    %3617 = vmatmul.bf16.gmra.mxu0 %v2954
    %v3618 = vpop.f32.mrf.mxu0
    %v3619 = vadd.f32 %v3575, %v3618
    %v3620 = vpop.f32.mrf.mxu0
    %v3621 = vadd.f32 %v3577, %v3620
    %3622 = vmatmul.bf16.gmra.mxu0 %v2956
    %v3623 = vpop.f32.mrf.mxu0
    %v3624 = vadd.f32 %v3580, %v3623
    %v3625 = vpop.f32.mrf.mxu0
    %v3626 = vadd.f32 %v3582, %v3625
    %3627 = vmatmul.bf16.gmra.mxu0 %v2958
    %v3628 = vpop.f32.mrf.mxu0
    %v3629 = vadd.f32 %v3585, %v3628
    %v3630 = vpop.f32.mrf.mxu0
    %v3631 = vadd.f32 %v3587, %v3630
    %3632 = vmatmul.bf16.gmra.mxu0 %v2960
    %v3633 = vpop.f32.mrf.mxu0
    %v3634 = vadd.f32 %v3590, %v3633
    %v3635 = vpop.f32.mrf.mxu0
    %v3636 = vadd.f32 %v3592, %v3635
    %3637 = vmatmul.bf16.gmra.mxu0 %v2962
    %v3638 = vpop.f32.mrf.mxu0
    %v3639 = vadd.f32 %v3595, %v3638
    %v3640 = vpop.f32.mrf.mxu0
    %v3641 = vadd.f32 %v3597, %v3640
    %3642 = vmatmul.bf16.gmra.mxu0 %v2964
    %v3643 = vpop.f32.mrf.mxu0
    %v3644 = vadd.f32 %v3600, %v3643
    %v3645 = vpop.f32.mrf.mxu0
    %v3646 = vadd.f32 %v3602, %v3645
    %3647 = vmatmul.bf16.gmra.mxu0 %v2966
    %v3648 = vpop.f32.mrf.mxu0
    %v3649 = vadd.f32 %v3605, %v3648
    %v3650 = vpop.f32.mrf.mxu0
    %v3651 = vadd.f32 %v3607, %v3650
    %3652 = vdwg.mxu0
    %v3653 = vadd.f32 %v2534, %v3355
    %v3654 = vadd.f32 %v2622, %v3443
    %v3655 = vadd.f32 %v2710, %v3531
    %v3656 = vadd.f32 %v2798, %v3619
    %v3657 = vadd.f32 %v2536, %v3357
    %v3658 = vadd.f32 %v2624, %v3445
    %v3659 = vadd.f32 %v2712, %v3533
    %v3660 = vadd.f32 %v2800, %v3621
    %v3661 = vadd.f32 %v2539, %v3360
    %v3662 = vadd.f32 %v2627, %v3448
    %v3663 = vadd.f32 %v2715, %v3536
    %v3664 = vadd.f32 %v2803, %v3624
    %v3665 = vadd.f32 %v2541, %v3362
    %v3666 = vadd.f32 %v2629, %v3450
    %v3667 = vadd.f32 %v2717, %v3538
    %v3668 = vadd.f32 %v2805, %v3626
    %v3669 = vadd.f32 %v2544, %v3365
    %v3670 = vadd.f32 %v2632, %v3453
    %v3671 = vadd.f32 %v2720, %v3541
    %v3672 = vadd.f32 %v2808, %v3629
    %v3673 = vadd.f32 %v2546, %v3367
    %v3674 = vadd.f32 %v2634, %v3455
    %v3675 = vadd.f32 %v2722, %v3543
    %v3676 = vadd.f32 %v2810, %v3631
    %v3677 = vadd.f32 %v2549, %v3370
    %v3678 = vadd.f32 %v2637, %v3458
    %v3679 = vadd.f32 %v2725, %v3546
    %v3680 = vadd.f32 %v2813, %v3634
    %v3681 = vadd.f32 %v2551, %v3372
    %v3682 = vadd.f32 %v2639, %v3460
    %v3683 = vadd.f32 %v2727, %v3548
    %v3684 = vadd.f32 %v2815, %v3636
    %v3685 = vadd.f32 %v2554, %v3375
    %v3686 = vadd.f32 %v2642, %v3463
    %v3687 = vadd.f32 %v2730, %v3551
    %v3688 = vadd.f32 %v2818, %v3639
    %v3689 = vadd.f32 %v2556, %v3377
    %v3690 = vadd.f32 %v2644, %v3465
    %v3691 = vadd.f32 %v2732, %v3553
    %v3692 = vadd.f32 %v2820, %v3641
    %v3693 = vadd.f32 %v2559, %v3380
    %v3694 = vadd.f32 %v2647, %v3468
    %v3695 = vadd.f32 %v2735, %v3556
    %v3696 = vadd.f32 %v2823, %v3644
    %v3697 = vadd.f32 %v2561, %v3382
    %v3698 = vadd.f32 %v2649, %v3470
    %v3699 = vadd.f32 %v2737, %v3558
    %v3700 = vadd.f32 %v2825, %v3646
    %v3701 = vadd.f32 %v2564, %v3385
    %v3702 = vadd.f32 %v2652, %v3473
    %v3703 = vadd.f32 %v2740, %v3561
    %v3704 = vadd.f32 %v2828, %v3649
    %v3705 = vadd.f32 %v2566, %v3387
    %v3706 = vadd.f32 %v2654, %v3475
    %v3707 = vadd.f32 %v2742, %v3563
    %v3708 = vadd.f32 %v2830, %v3651
    %v3709 = vld [vmem:[%s6] sm:$0xf]
    %v3711 = vperm.slane %v3709, 0
    %v3712 = vperm.slane %v3709, 1
    %v3713 = vperm.slane %v3709, 2
    %v3714 = vperm.slane %v3709, 3
    %v3719 = vadd.f32 %v3653, %v3711
    %v3720 = vadd.f32 %v3654, %v3712
    %v3721 = vadd.f32 %v3655, %v3713
    %v3722 = vadd.f32 %v3656, %v3714
    %v3723 = vadd.f32 %v3657, %v3711
    %v3724 = vadd.f32 %v3658, %v3712
    %v3725 = vadd.f32 %v3659, %v3713
    %v3726 = vadd.f32 %v3660, %v3714
    %v3727 = vadd.f32 %v3661, %v3711
    %v3728 = vadd.f32 %v3662, %v3712
    %v3729 = vadd.f32 %v3663, %v3713
    %v3730 = vadd.f32 %v3664, %v3714
    %v3731 = vadd.f32 %v3665, %v3711
    %v3732 = vadd.f32 %v3666, %v3712
    %v3733 = vadd.f32 %v3667, %v3713
    %v3734 = vadd.f32 %v3668, %v3714
    %v3735 = vadd.f32 %v3669, %v3711
    %v3736 = vadd.f32 %v3670, %v3712
    %v3737 = vadd.f32 %v3671, %v3713
    %v3738 = vadd.f32 %v3672, %v3714
    %v3739 = vadd.f32 %v3673, %v3711
    %v3740 = vadd.f32 %v3674, %v3712
    %v3741 = vadd.f32 %v3675, %v3713
    %v3742 = vadd.f32 %v3676, %v3714
    %v3743 = vadd.f32 %v3677, %v3711
    %v3744 = vadd.f32 %v3678, %v3712
    %v3745 = vadd.f32 %v3679, %v3713
    %v3746 = vadd.f32 %v3680, %v3714
    %v3747 = vadd.f32 %v3681, %v3711
    %v3748 = vadd.f32 %v3682, %v3712
    %v3749 = vadd.f32 %v3683, %v3713
    %v3750 = vadd.f32 %v3684, %v3714
    %v3751 = vadd.f32 %v3685, %v3711
    %v3752 = vadd.f32 %v3686, %v3712
    %v3753 = vadd.f32 %v3687, %v3713
    %v3754 = vadd.f32 %v3688, %v3714
    %v3755 = vadd.f32 %v3689, %v3711
    %v3756 = vadd.f32 %v3690, %v3712
    %v3757 = vadd.f32 %v3691, %v3713
    %v3758 = vadd.f32 %v3692, %v3714
    %v3759 = vadd.f32 %v3693, %v3711
    %v3760 = vadd.f32 %v3694, %v3712
    %v3761 = vadd.f32 %v3695, %v3713
    %v3762 = vadd.f32 %v3696, %v3714
    %v3763 = vadd.f32 %v3697, %v3711
    %v3764 = vadd.f32 %v3698, %v3712
    %v3765 = vadd.f32 %v3699, %v3713
    %v3766 = vadd.f32 %v3700, %v3714
    %v3767 = vadd.f32 %v3701, %v3711
    %v3768 = vadd.f32 %v3702, %v3712
    %v3769 = vadd.f32 %v3703, %v3713
    %v3770 = vadd.f32 %v3704, %v3714
    %v3771 = vadd.f32 %v3705, %v3711
    %v3772 = vadd.f32 %v3706, %v3712
    %v3773 = vadd.f32 %v3707, %v3713
    %v3774 = vadd.f32 %v3708, %v3714
    %v3775 = vmax.f32 %v3719, 0.0
    %v3776 = vmax.f32 %v3720, 0.0
    %v3777 = vmax.f32 %v3721, 0.0
    %v3778 = vmax.f32 %v3722, 0.0
    %v3779 = vmax.f32 %v3723, 0.0
    %v3780 = vmax.f32 %v3724, 0.0
    %v3781 = vmax.f32 %v3725, 0.0
    %v3782 = vmax.f32 %v3726, 0.0
    %v3783 = vmax.f32 %v3727, 0.0
    %v3784 = vmax.f32 %v3728, 0.0
    %v3785 = vmax.f32 %v3729, 0.0
    %v3786 = vmax.f32 %v3730, 0.0
    %v3787 = vmax.f32 %v3731, 0.0
    %v3788 = vmax.f32 %v3732, 0.0
    %v3789 = vmax.f32 %v3733, 0.0
    %v3790 = vmax.f32 %v3734, 0.0
    %v3791 = vmax.f32 %v3735, 0.0
    %v3792 = vmax.f32 %v3736, 0.0
    %v3793 = vmax.f32 %v3737, 0.0
    %v3794 = vmax.f32 %v3738, 0.0
    %v3795 = vmax.f32 %v3739, 0.0
    %v3796 = vmax.f32 %v3740, 0.0
    %v3797 = vmax.f32 %v3741, 0.0
    %v3798 = vmax.f32 %v3742, 0.0
    %v3799 = vmax.f32 %v3743, 0.0
    %v3800 = vmax.f32 %v3744, 0.0
    %v3801 = vmax.f32 %v3745, 0.0
    %v3802 = vmax.f32 %v3746, 0.0
    %v3803 = vmax.f32 %v3747, 0.0
    %v3804 = vmax.f32 %v3748, 0.0
    %v3805 = vmax.f32 %v3749, 0.0
    %v3806 = vmax.f32 %v3750, 0.0
    %v3807 = vmax.f32 %v3751, 0.0
    %v3808 = vmax.f32 %v3752, 0.0
    %v3809 = vmax.f32 %v3753, 0.0
    %v3810 = vmax.f32 %v3754, 0.0
    %v3811 = vmax.f32 %v3755, 0.0
    %v3812 = vmax.f32 %v3756, 0.0
    %v3813 = vmax.f32 %v3757, 0.0
    %v3814 = vmax.f32 %v3758, 0.0
    %v3815 = vmax.f32 %v3759, 0.0
    %v3816 = vmax.f32 %v3760, 0.0
    %v3817 = vmax.f32 %v3761, 0.0
    %v3818 = vmax.f32 %v3762, 0.0
    %v3819 = vmax.f32 %v3763, 0.0
    %v3820 = vmax.f32 %v3764, 0.0
    %v3821 = vmax.f32 %v3765, 0.0
    %v3822 = vmax.f32 %v3766, 0.0
    %v3823 = vmax.f32 %v3767, 0.0
    %v3824 = vmax.f32 %v3768, 0.0
    %v3825 = vmax.f32 %v3769, 0.0
    %v3826 = vmax.f32 %v3770, 0.0
    %v3827 = vmax.f32 %v3771, 0.0
    %v3828 = vmax.f32 %v3772, 0.0
    %v3829 = vmax.f32 %v3773, 0.0
    %v3830 = vmax.f32 %v3774, 0.0
    %v3831 = vpack.c.bf16 %v3776, %v3775
    %v3832 = vpack.c.bf16 %v3778, %v3777
    %v3833 = vpack.c.bf16 %v3780, %v3779
    %v3834 = vpack.c.bf16 %v3782, %v3781
    %v3835 = vpack.c.bf16 %v3784, %v3783
    %v3836 = vpack.c.bf16 %v3786, %v3785
    %v3837 = vpack.c.bf16 %v3788, %v3787
    %v3838 = vpack.c.bf16 %v3790, %v3789
    %v3839 = vpack.c.bf16 %v3792, %v3791
    %v3840 = vpack.c.bf16 %v3794, %v3793
    %v3841 = vpack.c.bf16 %v3796, %v3795
    %v3842 = vpack.c.bf16 %v3798, %v3797
    %v3843 = vpack.c.bf16 %v3800, %v3799
    %v3844 = vpack.c.bf16 %v3802, %v3801
    %v3845 = vpack.c.bf16 %v3804, %v3803
    %v3846 = vpack.c.bf16 %v3806, %v3805
    %v3847 = vpack.c.bf16 %v3808, %v3807
    %v3848 = vpack.c.bf16 %v3810, %v3809
    %v3849 = vpack.c.bf16 %v3812, %v3811
    %v3850 = vpack.c.bf16 %v3814, %v3813
    %v3851 = vpack.c.bf16 %v3816, %v3815
    %v3852 = vpack.c.bf16 %v3818, %v3817
    %v3853 = vpack.c.bf16 %v3820, %v3819
    %v3854 = vpack.c.bf16 %v3822, %v3821
    %v3855 = vpack.c.bf16 %v3824, %v3823
    %v3856 = vpack.c.bf16 %v3826, %v3825
    %v3857 = vpack.c.bf16 %v3828, %v3827
    %v3858 = vpack.c.bf16 %v3830, %v3829
    %3859 = vst [vmem:[#allocation2 + $0x20] sm:$0xff] %v3831
    %3860 = vst [vmem:[#allocation2 + $0x28] sm:$0xff] %v3832
    %3861 = vst [vmem:[#allocation2 + $0x30] sm:$0xff] %v3833
    %3862 = vst [vmem:[#allocation2 + $0x38] sm:$0xff] %v3834
    %3863 = vst [vmem:[#allocation2 + $0x40] sm:$0xff] %v3835
    %3864 = vst [vmem:[#allocation2 + $0x48] sm:$0xff] %v3836
    %3865 = vst [vmem:[#allocation2 + $0x50] sm:$0xff] %v3837
    %3866 = vst [vmem:[#allocation2 + $0x58] sm:$0xff] %v3838
    %3867 = vst [vmem:[#allocation2 + $0x60] sm:$0xff] %v3839
    %3868 = vst [vmem:[#allocation2 + $0x68] sm:$0xff] %v3840
    %3869 = vst [vmem:[#allocation2 + $0x70] sm:$0xff] %v3841
    %3870 = vst [vmem:[#allocation2 + $0x78] sm:$0xff] %v3842
    %3871 = vst [vmem:[#allocation2 + $0x80] sm:$0xff] %v3843
    %3872 = vst [vmem:[#allocation2 + $0x88] sm:$0xff] %v3844
    %3873 = vst [vmem:[#allocation2 + $0x90] sm:$0xff] %v3845
    %3874 = vst [vmem:[#allocation2 + $0x98] sm:$0xff] %v3846
    %3875 = vst [vmem:[#allocation2 + $0xa0] sm:$0xff] %v3847
    %3876 = vst [vmem:[#allocation2 + $0xa8] sm:$0xff] %v3848
    %3877 = vst [vmem:[#allocation2 + $0xb0] sm:$0xff] %v3849
    %3878 = vst [vmem:[#allocation2 + $0xb8] sm:$0xff] %v3850
    %3879 = vst [vmem:[#allocation2 + $0xc0] sm:$0xff] %v3851
    %3880 = vst [vmem:[#allocation2 + $0xc8] sm:$0xff] %v3852
    %3881 = vst [vmem:[#allocation2 + $0xd0] sm:$0xff] %v3853
    %3882 = vst [vmem:[#allocation2 + $0xd8] sm:$0xff] %v3854
    %3883 = vst [vmem:[#allocation2 + $0xe0] sm:$0xff] %v3855
    %3884 = vst [vmem:[#allocation2 + $0xe8] sm:$0xff] %v3856
    %3885 = vst [vmem:[#allocation2 + $0xf0] sm:$0xff] %v3857
    %3886 = vst [vmem:[#allocation2 + $0xf8] sm:$0xff] %v3858
    %v3887 = vld [vmem:[%s0 + $0x8] sm:$0xf]
    %v3888 = vld [vmem:[%s0 + $0xc] sm:$0xf]
    %v3889 = vld [vmem:[%s8] sm:$0x3]
    %v3890 = vld [vmem:[#allocation2 + $0x20] sm:$0xff]
    %v3891 = vld [vmem:[#allocation2 + $0x28] sm:$0xff]
    %v3892 = vld [vmem:[#allocation2 + $0x30] sm:$0xff]
    %v3893 = vld [vmem:[#allocation2 + $0x38] sm:$0xff]
    %v3894 = vld [vmem:[#allocation6] sm:$0xf]
    %v3895 = vld [vmem:[#allocation6 + $0x4] sm:$0xf]
    %v3896 = vld [vmem:[#allocation6 + $0x8] sm:$0xf]
    %v3897 = vld [vmem:[#allocation6 + $0xc] sm:$0xf]
    %v3898 = vld [vmem:[#allocation6 + $0x10] sm:$0xf]
    %v3899 = vld [vmem:[#allocation6 + $0x14] sm:$0xf]
    %v3900 = vld [vmem:[#allocation6 + $0x18] sm:$0xf]
    %v3901 = vld [vmem:[#allocation6 + $0x1c] sm:$0xf]
    %v3902 = vld [vmem:[#allocation6 + $0x20] sm:$0xf]
    %v3903 = vld [vmem:[#allocation6 + $0x24] sm:$0xf]
    %v3904 = vld [vmem:[#allocation6 + $0x28] sm:$0xf]
    %v3905 = vld [vmem:[#allocation6 + $0x2c] sm:$0xf]
    %v3906 = vld [vmem:[#allocation6 + $0x30] sm:$0xf]
    %v3907 = vld [vmem:[#allocation6 + $0x34] sm:$0xf]
    %v3908 = vld [vmem:[#allocation6 + $0x38] sm:$0xf]
    %v3909 = vld [vmem:[#allocation6 + $0x3c] sm:$0xf]
    %v3910 = vld [vmem:[#allocation6 + $0x40] sm:$0xf]
    %v3911 = vld [vmem:[#allocation6 + $0x44] sm:$0xf]
    %v3912 = vld [vmem:[#allocation6 + $0x48] sm:$0xf]
    %v3913 = vld [vmem:[#allocation6 + $0x4c] sm:$0xf]
    %v3914 = vld [vmem:[#allocation6 + $0x50] sm:$0xf]
    %v3915 = vld [vmem:[#allocation6 + $0x54] sm:$0xf]
    %v3916 = vld [vmem:[#allocation6 + $0x58] sm:$0xf]
    %v3917 = vld [vmem:[#allocation6 + $0x5c] sm:$0xf]
    %v3918 = vld [vmem:[#allocation6 + $0x60] sm:$0xf]
    %v3919 = vld [vmem:[#allocation6 + $0x64] sm:$0xf]
    %v3920 = vld [vmem:[#allocation6 + $0x68] sm:$0xf]
    %v3921 = vld [vmem:[#allocation6 + $0x6c] sm:$0xf]
    %v3922 = vld [vmem:[#allocation6 + $0x70] sm:$0xf]
    %v3923 = vld [vmem:[#allocation6 + $0x74] sm:$0xf]
    %v3924 = vld [vmem:[#allocation6 + $0x78] sm:$0xf]
    %v3925 = vld [vmem:[#allocation6 + $0x7c] sm:$0xf]
    %v3926 = vld [vmem:[#allocation6 + $0x80] sm:$0xf]
    %v3927 = vld [vmem:[#allocation6 + $0x84] sm:$0xf]
    %v3928 = vld [vmem:[#allocation6 + $0x88] sm:$0xf]
    %v3929 = vld [vmem:[#allocation6 + $0x8c] sm:$0xf]
    %v3930 = vld [vmem:[#allocation6 + $0x90] sm:$0xf]
    %v3931 = vld [vmem:[#allocation6 + $0x94] sm:$0xf]
    %v3932 = vld [vmem:[#allocation6 + $0x98] sm:$0xf]
    %v3933 = vld [vmem:[#allocation6 + $0x9c] sm:$0xf]
    %v3934 = vld [vmem:[#allocation6 + $0xa0] sm:$0xf]
    %v3935 = vld [vmem:[#allocation6 + $0xa4] sm:$0xf]
    %v3936 = vld [vmem:[#allocation6 + $0xa8] sm:$0xf]
    %v3937 = vld [vmem:[#allocation6 + $0xac] sm:$0xf]
    %v3938 = vld [vmem:[#allocation6 + $0xb0] sm:$0xf]
    %v3939 = vld [vmem:[#allocation6 + $0xb4] sm:$0xf]
    %v3940 = vld [vmem:[#allocation6 + $0xb8] sm:$0xf]
    %v3941 = vld [vmem:[#allocation6 + $0xbc] sm:$0xf]
    %v3942 = vld [vmem:[#allocation6 + $0xc0] sm:$0xf]
    %v3943 = vld [vmem:[#allocation6 + $0xc4] sm:$0xf]
    %v3944 = vld [vmem:[#allocation6 + $0xc8] sm:$0xf]
    %v3945 = vld [vmem:[#allocation6 + $0xcc] sm:$0xf]
    %v3946 = vld [vmem:[#allocation6 + $0xd0] sm:$0xf]
    %v3947 = vld [vmem:[#allocation6 + $0xd4] sm:$0xf]
    %v3948 = vld [vmem:[#allocation6 + $0xd8] sm:$0xf]
    %v3949 = vld [vmem:[#allocation6 + $0xdc] sm:$0xf]
    %v3950 = vld [vmem:[#allocation6 + $0xe0] sm:$0xf]
    %v3951 = vld [vmem:[#allocation6 + $0xe4] sm:$0xf]
    %v3952 = vld [vmem:[#allocation6 + $0xe8] sm:$0xf]
    %v3953 = vld [vmem:[#allocation6 + $0xec] sm:$0xf]
    %v3954 = vld [vmem:[#allocation6 + $0xf0] sm:$0xf]
    %v3955 = vld [vmem:[#allocation6 + $0xf4] sm:$0xf]
    %v3956 = vld [vmem:[#allocation6 + $0xf8] sm:$0xf]
    %v3957 = vld [vmem:[#allocation6 + $0xfc] sm:$0xf]
    %v3962 = vunpack.c.l.b16 %v3890
    %v3963 = vunpack.c.h.b16 %v3890
    %v3964 = vunpack.c.l.b16 %v3891
    %v3965 = vunpack.c.h.b16 %v3891
    %v3966 = vunpack.c.l.b16 %v3892
    %v3967 = vunpack.c.h.b16 %v3892
    %v3968 = vunpack.c.l.b16 %v3893
    %v3969 = vunpack.c.h.b16 %v3893
    %v3970 = vpack.c.b16 %v3966, %v3962
    %v3971 = vpack.c.b16 %v3967, %v3963
    %v3972 = vpack.c.b16 %v3968, %v3964
    %v3973 = vpack.c.b16 %v3969, %v3965
    %v4042 = vunpack.c.l.b16 %v3894
    %v4043 = vunpack.c.l.b16 %v3895
    %v4044 = vunpack.c.l.b16 %v3896
    %v4045 = vunpack.c.l.b16 %v3897
    %v4046 = vunpack.c.l.b16 %v3898
    %v4047 = vunpack.c.l.b16 %v3899
    %v4048 = vunpack.c.l.b16 %v3900
    %v4049 = vunpack.c.l.b16 %v3901
    %v4050 = vunpack.c.l.b16 %v3902
    %v4051 = vunpack.c.l.b16 %v3903
    %v4052 = vunpack.c.l.b16 %v3904
    %v4053 = vunpack.c.l.b16 %v3905
    %v4054 = vunpack.c.l.b16 %v3906
    %v4055 = vunpack.c.l.b16 %v3907
    %v4056 = vunpack.c.l.b16 %v3908
    %v4057 = vunpack.c.l.b16 %v3909
    %v4058 = vunpack.c.l.b16 %v3910
    %v4059 = vunpack.c.l.b16 %v3911
    %v4060 = vunpack.c.l.b16 %v3912
    %v4061 = vunpack.c.l.b16 %v3913
    %v4062 = vunpack.c.l.b16 %v3914
    %v4063 = vunpack.c.l.b16 %v3915
    %v4064 = vunpack.c.l.b16 %v3916
    %v4065 = vunpack.c.l.b16 %v3917
    %v4066 = vunpack.c.l.b16 %v3918
    %v4067 = vunpack.c.l.b16 %v3919
    %v4068 = vunpack.c.l.b16 %v3920
    %v4069 = vunpack.c.l.b16 %v3921
    %v4070 = vunpack.c.l.b16 %v3922
    %v4071 = vunpack.c.l.b16 %v3923
    %v4072 = vunpack.c.l.b16 %v3924
    %v4073 = vunpack.c.l.b16 %v3925
    %v4074 = vunpack.c.l.b16 %v3926
    %v4075 = vunpack.c.l.b16 %v3927
    %v4076 = vunpack.c.l.b16 %v3928
    %v4077 = vunpack.c.l.b16 %v3929
    %v4078 = vunpack.c.l.b16 %v3930
    %v4079 = vunpack.c.l.b16 %v3931
    %v4080 = vunpack.c.l.b16 %v3932
    %v4081 = vunpack.c.l.b16 %v3933
    %v4082 = vunpack.c.l.b16 %v3934
    %v4083 = vunpack.c.l.b16 %v3935
    %v4084 = vunpack.c.l.b16 %v3936
    %v4085 = vunpack.c.l.b16 %v3937
    %v4086 = vunpack.c.l.b16 %v3938
    %v4087 = vunpack.c.l.b16 %v3939
    %v4088 = vunpack.c.l.b16 %v3940
    %v4089 = vunpack.c.l.b16 %v3941
    %v4090 = vunpack.c.l.b16 %v3942
    %v4091 = vunpack.c.l.b16 %v3943
    %v4092 = vunpack.c.l.b16 %v3944
    %v4093 = vunpack.c.l.b16 %v3945
    %v4094 = vunpack.c.l.b16 %v3946
    %v4095 = vunpack.c.l.b16 %v3947
    %v4096 = vunpack.c.l.b16 %v3948
    %v4097 = vunpack.c.l.b16 %v3949
    %v4098 = vunpack.c.l.b16 %v3950
    %v4099 = vunpack.c.l.b16 %v3951
    %v4100 = vunpack.c.l.b16 %v3952
    %v4101 = vunpack.c.l.b16 %v3953
    %v4102 = vunpack.c.l.b16 %v3954
    %v4103 = vunpack.c.l.b16 %v3955
    %v4104 = vunpack.c.l.b16 %v3956
    %v4105 = vunpack.c.l.b16 %v3957
    %v4106 = vpack.c.b16 %v4043, %v4042
    %v4107 = vpack.c.b16 %v4045, %v4044
    %v4108 = vpack.c.b16 %v4047, %v4046
    %v4109 = vpack.c.b16 %v4049, %v4048
    %v4110 = vpack.c.b16 %v4051, %v4050
    %v4111 = vpack.c.b16 %v4053, %v4052
    %v4112 = vpack.c.b16 %v4055, %v4054
    %v4113 = vpack.c.b16 %v4057, %v4056
    %v4114 = vpack.c.b16 %v4059, %v4058
    %v4115 = vpack.c.b16 %v4061, %v4060
    %v4116 = vpack.c.b16 %v4063, %v4062
    %v4117 = vpack.c.b16 %v4065, %v4064
    %v4118 = vpack.c.b16 %v4067, %v4066
    %v4119 = vpack.c.b16 %v4069, %v4068
    %v4120 = vpack.c.b16 %v4071, %v4070
    %v4121 = vpack.c.b16 %v4073, %v4072
    %v4122 = vpack.c.b16 %v4075, %v4074
    %v4123 = vpack.c.b16 %v4077, %v4076
    %v4124 = vpack.c.b16 %v4079, %v4078
    %v4125 = vpack.c.b16 %v4081, %v4080
    %v4126 = vpack.c.b16 %v4083, %v4082
    %v4127 = vpack.c.b16 %v4085, %v4084
    %v4128 = vpack.c.b16 %v4087, %v4086
    %v4129 = vpack.c.b16 %v4089, %v4088
    %v4130 = vpack.c.b16 %v4091, %v4090
    %v4131 = vpack.c.b16 %v4093, %v4092
    %v4132 = vpack.c.b16 %v4095, %v4094
    %v4133 = vpack.c.b16 %v4097, %v4096
    %v4134 = vpack.c.b16 %v4099, %v4098
    %v4135 = vpack.c.b16 %v4101, %v4100
    %v4136 = vpack.c.b16 %v4103, %v4102
    %v4137 = vpack.c.b16 %v4105, %v4104
    %4170 = vmatpush.bf16.msra.mxu0 %v4113
    %4171 = vmatpush.bf16.msra.mxu0 %v4112
    %4172 = vmatpush.bf16.msra.mxu0 %v4111
    %4173 = vmatpush.bf16.msra.mxu0 %v4110
    %4174 = vmatpush.bf16.msra.mxu0 %v4109
    %4175 = vmatpush.bf16.msra.mxu0 %v4108
    %4176 = vmatpush.bf16.msra.mxu0 %v4107
    %4177 = vmatpush.bf16.msra.mxu0 %v4106
    %4178 = vmatmul.bf16.gmra.mxu0 %v3970
    %v4179 = vpop.f32.mrf.mxu0
    %v4180 = vadd.f32 0.0, %v4179
    %v4181 = vpop.f32.mrf.mxu0
    %v4182 = vadd.f32 0.0, %v4181
    %4183 = vdwg.mxu0
    %4184 = vmatpush.bf16.msra.mxu0 %v4121
    %4185 = vmatpush.bf16.msra.mxu0 %v4120
    %4186 = vmatpush.bf16.msra.mxu0 %v4119
    %4187 = vmatpush.bf16.msra.mxu0 %v4118
    %4188 = vmatpush.bf16.msra.mxu0 %v4117
    %4189 = vmatpush.bf16.msra.mxu0 %v4116
    %4190 = vmatpush.bf16.msra.mxu0 %v4115
    %4191 = vmatpush.bf16.msra.mxu0 %v4114
    %4192 = vmatmul.bf16.gmra.mxu0 %v3971
    %v4193 = vpop.f32.mrf.mxu0
    %v4194 = vadd.f32 %v4180, %v4193
    %v4195 = vpop.f32.mrf.mxu0
    %v4196 = vadd.f32 %v4182, %v4195
    %4197 = vdwg.mxu0
    %4198 = vmatpush.bf16.msra.mxu0 %v4129
    %4199 = vmatpush.bf16.msra.mxu0 %v4128
    %4200 = vmatpush.bf16.msra.mxu0 %v4127
    %4201 = vmatpush.bf16.msra.mxu0 %v4126
    %4202 = vmatpush.bf16.msra.mxu0 %v4125
    %4203 = vmatpush.bf16.msra.mxu0 %v4124
    %4204 = vmatpush.bf16.msra.mxu0 %v4123
    %4205 = vmatpush.bf16.msra.mxu0 %v4122
    %4206 = vmatmul.bf16.gmra.mxu0 %v3972
    %v4207 = vpop.f32.mrf.mxu0
    %v4208 = vadd.f32 %v4194, %v4207
    %v4209 = vpop.f32.mrf.mxu0
    %v4210 = vadd.f32 %v4196, %v4209
    %4211 = vdwg.mxu0
    %4212 = vmatpush.bf16.msra.mxu0 %v4137
    %4213 = vmatpush.bf16.msra.mxu0 %v4136
    %4214 = vmatpush.bf16.msra.mxu0 %v4135
    %4215 = vmatpush.bf16.msra.mxu0 %v4134
    %4216 = vmatpush.bf16.msra.mxu0 %v4133
    %4217 = vmatpush.bf16.msra.mxu0 %v4132
    %4218 = vmatpush.bf16.msra.mxu0 %v4131
    %4219 = vmatpush.bf16.msra.mxu0 %v4130
    %4220 = vmatmul.bf16.gmra.mxu0 %v3973
    %v4221 = vpop.f32.mrf.mxu0
    %v4222 = vadd.f32 %v4208, %v4221
    %v4223 = vpop.f32.mrf.mxu0
    %v4224 = vadd.f32 %v4210, %v4223
    %4225 = vdwg.mxu0
    %v4228 = vunpack.c.l.b16 %v3887
    %v4229 = vunpack.c.l.b16 %v3888
    %v4230 = vpack.c.b16 %v4229, %v4228
    %4231 = vrot.lane.b32.xlu0 %v4230, 112
    %v4232 = vpop.permute.xlu0 %4231
    %vm4233 = vcmask 31744
    %v4235 = vsel %vm4233, %v4232, 0
    %vm4237 = vcmask 1041408
    %v4239 = vsel %vm4237, %v3889, 0
    %4241 = vmatpush.bf16.msra.mxu0 0
    %4242 = vmatpush.bf16.msra.mxu0 0
    %4243 = vmatpush.bf16.msra.mxu0 0
    %4244 = vmatpush.bf16.msra.mxu0 0
    %4245 = vmatpush.bf16.msra.mxu0 0
    %4246 = vmatpush.bf16.msra.mxu0 0
    %4247 = vmatpush.bf16.msra.mxu0 0
    %4248 = vmatpush.bf16.msra.mxu0 %v4239
    %4249 = vmatmul.bf16.gmra.mxu0 %v4235
    %v4250 = vpop.f32.mrf.mxu0
    %v4251 = vadd.f32 %v4222, %v4250
    %v4252 = vpop.f32.mrf.mxu0
    %v4253 = vadd.f32 %v4224, %v4252
    %4254 = vdwg.mxu0
    %v4255 = vld [vmem:[#allocation2 + $0x40] sm:$0xff]
    %v4256 = vld [vmem:[#allocation2 + $0x48] sm:$0xff]
    %v4257 = vld [vmem:[#allocation2 + $0x50] sm:$0xff]
    %v4258 = vld [vmem:[#allocation2 + $0x58] sm:$0xff]
    %s4259 = scalar_lea.vmem [#allocation6], 256
    %v4260 = vld [vmem:[%s4259] sm:$0xf]
    %v4261 = vld [vmem:[%s4259 + $0x4] sm:$0xf]
    %v4262 = vld [vmem:[%s4259 + $0x8] sm:$0xf]
    %v4263 = vld [vmem:[%s4259 + $0xc] sm:$0xf]
    %v4264 = vld [vmem:[%s4259 + $0x10] sm:$0xf]
    %v4265 = vld [vmem:[%s4259 + $0x14] sm:$0xf]
    %v4266 = vld [vmem:[%s4259 + $0x18] sm:$0xf]
    %v4267 = vld [vmem:[%s4259 + $0x1c] sm:$0xf]
    %v4268 = vld [vmem:[%s4259 + $0x20] sm:$0xf]
    %v4269 = vld [vmem:[%s4259 + $0x24] sm:$0xf]
    %v4270 = vld [vmem:[%s4259 + $0x28] sm:$0xf]
    %v4271 = vld [vmem:[%s4259 + $0x2c] sm:$0xf]
    %v4272 = vld [vmem:[%s4259 + $0x30] sm:$0xf]
    %v4273 = vld [vmem:[%s4259 + $0x34] sm:$0xf]
    %v4274 = vld [vmem:[%s4259 + $0x38] sm:$0xf]
    %v4275 = vld [vmem:[%s4259 + $0x3c] sm:$0xf]
    %v4276 = vld [vmem:[%s4259 + $0x40] sm:$0xf]
    %v4277 = vld [vmem:[%s4259 + $0x44] sm:$0xf]
    %v4278 = vld [vmem:[%s4259 + $0x48] sm:$0xf]
    %v4279 = vld [vmem:[%s4259 + $0x4c] sm:$0xf]
    %v4280 = vld [vmem:[%s4259 + $0x50] sm:$0xf]
    %v4281 = vld [vmem:[%s4259 + $0x54] sm:$0xf]
    %v4282 = vld [vmem:[%s4259 + $0x58] sm:$0xf]
    %v4283 = vld [vmem:[%s4259 + $0x5c] sm:$0xf]
    %v4284 = vld [vmem:[%s4259 + $0x60] sm:$0xf]
    %v4285 = vld [vmem:[%s4259 + $0x64] sm:$0xf]
    %v4286 = vld [vmem:[%s4259 + $0x68] sm:$0xf]
    %v4287 = vld [vmem:[%s4259 + $0x6c] sm:$0xf]
    %v4288 = vld [vmem:[%s4259 + $0x70] sm:$0xf]
    %v4289 = vld [vmem:[%s4259 + $0x74] sm:$0xf]
    %v4290 = vld [vmem:[%s4259 + $0x78] sm:$0xf]
    %v4291 = vld [vmem:[%s4259 + $0x7c] sm:$0xf]
    %v4292 = vld [vmem:[%s4259 + $0x80] sm:$0xf]
    %v4293 = vld [vmem:[%s4259 + $0x84] sm:$0xf]
    %v4294 = vld [vmem:[%s4259 + $0x88] sm:$0xf]
    %v4295 = vld [vmem:[%s4259 + $0x8c] sm:$0xf]
    %v4296 = vld [vmem:[%s4259 + $0x90] sm:$0xf]
    %v4297 = vld [vmem:[%s4259 + $0x94] sm:$0xf]
    %v4298 = vld [vmem:[%s4259 + $0x98] sm:$0xf]
    %v4299 = vld [vmem:[%s4259 + $0x9c] sm:$0xf]
    %v4300 = vld [vmem:[%s4259 + $0xa0] sm:$0xf]
    %v4301 = vld [vmem:[%s4259 + $0xa4] sm:$0xf]
    %v4302 = vld [vmem:[%s4259 + $0xa8] sm:$0xf]
    %v4303 = vld [vmem:[%s4259 + $0xac] sm:$0xf]
    %v4304 = vld [vmem:[%s4259 + $0xb0] sm:$0xf]
    %v4305 = vld [vmem:[%s4259 + $0xb4] sm:$0xf]
    %v4306 = vld [vmem:[%s4259 + $0xb8] sm:$0xf]
    %v4307 = vld [vmem:[%s4259 + $0xbc] sm:$0xf]
    %v4308 = vld [vmem:[%s4259 + $0xc0] sm:$0xf]
    %v4309 = vld [vmem:[%s4259 + $0xc4] sm:$0xf]
    %v4310 = vld [vmem:[%s4259 + $0xc8] sm:$0xf]
    %v4311 = vld [vmem:[%s4259 + $0xcc] sm:$0xf]
    %v4312 = vld [vmem:[%s4259 + $0xd0] sm:$0xf]
    %v4313 = vld [vmem:[%s4259 + $0xd4] sm:$0xf]
    %v4314 = vld [vmem:[%s4259 + $0xd8] sm:$0xf]
    %v4315 = vld [vmem:[%s4259 + $0xdc] sm:$0xf]
    %v4316 = vld [vmem:[%s4259 + $0xe0] sm:$0xf]
    %v4317 = vld [vmem:[%s4259 + $0xe4] sm:$0xf]
    %v4318 = vld [vmem:[%s4259 + $0xe8] sm:$0xf]
    %v4319 = vld [vmem:[%s4259 + $0xec] sm:$0xf]
    %v4320 = vld [vmem:[%s4259 + $0xf0] sm:$0xf]
    %v4321 = vld [vmem:[%s4259 + $0xf4] sm:$0xf]
    %v4322 = vld [vmem:[%s4259 + $0xf8] sm:$0xf]
    %v4323 = vld [vmem:[%s4259 + $0xfc] sm:$0xf]
    %v4328 = vunpack.c.l.b16 %v4255
    %v4329 = vunpack.c.h.b16 %v4255
    %v4330 = vunpack.c.l.b16 %v4256
    %v4331 = vunpack.c.h.b16 %v4256
    %v4332 = vunpack.c.l.b16 %v4257
    %v4333 = vunpack.c.h.b16 %v4257
    %v4334 = vunpack.c.l.b16 %v4258
    %v4335 = vunpack.c.h.b16 %v4258
    %v4336 = vpack.c.b16 %v4332, %v4328
    %v4337 = vpack.c.b16 %v4333, %v4329
    %v4338 = vpack.c.b16 %v4334, %v4330
    %v4339 = vpack.c.b16 %v4335, %v4331
    %v4408 = vunpack.c.l.b16 %v4260
    %v4409 = vunpack.c.l.b16 %v4261
    %v4410 = vunpack.c.l.b16 %v4262
    %v4411 = vunpack.c.l.b16 %v4263
    %v4412 = vunpack.c.l.b16 %v4264
    %v4413 = vunpack.c.l.b16 %v4265
    %v4414 = vunpack.c.l.b16 %v4266
    %v4415 = vunpack.c.l.b16 %v4267
    %v4416 = vunpack.c.l.b16 %v4268
    %v4417 = vunpack.c.l.b16 %v4269
    %v4418 = vunpack.c.l.b16 %v4270
    %v4419 = vunpack.c.l.b16 %v4271
    %v4420 = vunpack.c.l.b16 %v4272
    %v4421 = vunpack.c.l.b16 %v4273
    %v4422 = vunpack.c.l.b16 %v4274
    %v4423 = vunpack.c.l.b16 %v4275
    %v4424 = vunpack.c.l.b16 %v4276
    %v4425 = vunpack.c.l.b16 %v4277
    %v4426 = vunpack.c.l.b16 %v4278
    %v4427 = vunpack.c.l.b16 %v4279
    %v4428 = vunpack.c.l.b16 %v4280
    %v4429 = vunpack.c.l.b16 %v4281
    %v4430 = vunpack.c.l.b16 %v4282
    %v4431 = vunpack.c.l.b16 %v4283
    %v4432 = vunpack.c.l.b16 %v4284
    %v4433 = vunpack.c.l.b16 %v4285
    %v4434 = vunpack.c.l.b16 %v4286
    %v4435 = vunpack.c.l.b16 %v4287
    %v4436 = vunpack.c.l.b16 %v4288
    %v4437 = vunpack.c.l.b16 %v4289
    %v4438 = vunpack.c.l.b16 %v4290
    %v4439 = vunpack.c.l.b16 %v4291
    %v4440 = vunpack.c.l.b16 %v4292
    %v4441 = vunpack.c.l.b16 %v4293
    %v4442 = vunpack.c.l.b16 %v4294
    %v4443 = vunpack.c.l.b16 %v4295
    %v4444 = vunpack.c.l.b16 %v4296
    %v4445 = vunpack.c.l.b16 %v4297
    %v4446 = vunpack.c.l.b16 %v4298
    %v4447 = vunpack.c.l.b16 %v4299
    %v4448 = vunpack.c.l.b16 %v4300
    %v4449 = vunpack.c.l.b16 %v4301
    %v4450 = vunpack.c.l.b16 %v4302
    %v4451 = vunpack.c.l.b16 %v4303
    %v4452 = vunpack.c.l.b16 %v4304
    %v4453 = vunpack.c.l.b16 %v4305
    %v4454 = vunpack.c.l.b16 %v4306
    %v4455 = vunpack.c.l.b16 %v4307
    %v4456 = vunpack.c.l.b16 %v4308
    %v4457 = vunpack.c.l.b16 %v4309
    %v4458 = vunpack.c.l.b16 %v4310
    %v4459 = vunpack.c.l.b16 %v4311
    %v4460 = vunpack.c.l.b16 %v4312
    %v4461 = vunpack.c.l.b16 %v4313
    %v4462 = vunpack.c.l.b16 %v4314
    %v4463 = vunpack.c.l.b16 %v4315
    %v4464 = vunpack.c.l.b16 %v4316
    %v4465 = vunpack.c.l.b16 %v4317
    %v4466 = vunpack.c.l.b16 %v4318
    %v4467 = vunpack.c.l.b16 %v4319
    %v4468 = vunpack.c.l.b16 %v4320
    %v4469 = vunpack.c.l.b16 %v4321
    %v4470 = vunpack.c.l.b16 %v4322
    %v4471 = vunpack.c.l.b16 %v4323
    %v4472 = vpack.c.b16 %v4409, %v4408
    %v4473 = vpack.c.b16 %v4411, %v4410
    %v4474 = vpack.c.b16 %v4413, %v4412
    %v4475 = vpack.c.b16 %v4415, %v4414
    %v4476 = vpack.c.b16 %v4417, %v4416
    %v4477 = vpack.c.b16 %v4419, %v4418
    %v4478 = vpack.c.b16 %v4421, %v4420
    %v4479 = vpack.c.b16 %v4423, %v4422
    %v4480 = vpack.c.b16 %v4425, %v4424
    %v4481 = vpack.c.b16 %v4427, %v4426
    %v4482 = vpack.c.b16 %v4429, %v4428
    %v4483 = vpack.c.b16 %v4431, %v4430
    %v4484 = vpack.c.b16 %v4433, %v4432
    %v4485 = vpack.c.b16 %v4435, %v4434
    %v4486 = vpack.c.b16 %v4437, %v4436
    %v4487 = vpack.c.b16 %v4439, %v4438
    %v4488 = vpack.c.b16 %v4441, %v4440
    %v4489 = vpack.c.b16 %v4443, %v4442
    %v4490 = vpack.c.b16 %v4445, %v4444
    %v4491 = vpack.c.b16 %v4447, %v4446
    %v4492 = vpack.c.b16 %v4449, %v4448
    %v4493 = vpack.c.b16 %v4451, %v4450
    %v4494 = vpack.c.b16 %v4453, %v4452
    %v4495 = vpack.c.b16 %v4455, %v4454
    %v4496 = vpack.c.b16 %v4457, %v4456
    %v4497 = vpack.c.b16 %v4459, %v4458
    %v4498 = vpack.c.b16 %v4461, %v4460
    %v4499 = vpack.c.b16 %v4463, %v4462
    %v4500 = vpack.c.b16 %v4465, %v4464
    %v4501 = vpack.c.b16 %v4467, %v4466
    %v4502 = vpack.c.b16 %v4469, %v4468
    %v4503 = vpack.c.b16 %v4471, %v4470
    %4536 = vmatpush.bf16.msra.mxu0 %v4479
    %4537 = vmatpush.bf16.msra.mxu0 %v4478
    %4538 = vmatpush.bf16.msra.mxu0 %v4477
    %4539 = vmatpush.bf16.msra.mxu0 %v4476
    %4540 = vmatpush.bf16.msra.mxu0 %v4475
    %4541 = vmatpush.bf16.msra.mxu0 %v4474
    %4542 = vmatpush.bf16.msra.mxu0 %v4473
    %4543 = vmatpush.bf16.msra.mxu0 %v4472
    %4544 = vmatmul.bf16.gmra.mxu0 %v4336
    %v4545 = vpop.f32.mrf.mxu0
    %v4546 = vadd.f32 0.0, %v4545
    %v4547 = vpop.f32.mrf.mxu0
    %v4548 = vadd.f32 0.0, %v4547
    %4549 = vdwg.mxu0
    %4550 = vmatpush.bf16.msra.mxu0 %v4487
    %4551 = vmatpush.bf16.msra.mxu0 %v4486
    %4552 = vmatpush.bf16.msra.mxu0 %v4485
    %4553 = vmatpush.bf16.msra.mxu0 %v4484
    %4554 = vmatpush.bf16.msra.mxu0 %v4483
    %4555 = vmatpush.bf16.msra.mxu0 %v4482
    %4556 = vmatpush.bf16.msra.mxu0 %v4481
    %4557 = vmatpush.bf16.msra.mxu0 %v4480
    %4558 = vmatmul.bf16.gmra.mxu0 %v4337
    %v4559 = vpop.f32.mrf.mxu0
    %v4560 = vadd.f32 %v4546, %v4559
    %v4561 = vpop.f32.mrf.mxu0
    %v4562 = vadd.f32 %v4548, %v4561
    %4563 = vdwg.mxu0
    %4564 = vmatpush.bf16.msra.mxu0 %v4495
    %4565 = vmatpush.bf16.msra.mxu0 %v4494
    %4566 = vmatpush.bf16.msra.mxu0 %v4493
    %4567 = vmatpush.bf16.msra.mxu0 %v4492
    %4568 = vmatpush.bf16.msra.mxu0 %v4491
    %4569 = vmatpush.bf16.msra.mxu0 %v4490
    %4570 = vmatpush.bf16.msra.mxu0 %v4489
    %4571 = vmatpush.bf16.msra.mxu0 %v4488
    %4572 = vmatmul.bf16.gmra.mxu0 %v4338
    %v4573 = vpop.f32.mrf.mxu0
    %v4574 = vadd.f32 %v4560, %v4573
    %v4575 = vpop.f32.mrf.mxu0
    %v4576 = vadd.f32 %v4562, %v4575
    %4577 = vdwg.mxu0
    %4578 = vmatpush.bf16.msra.mxu0 %v4503
    %4579 = vmatpush.bf16.msra.mxu0 %v4502
    %4580 = vmatpush.bf16.msra.mxu0 %v4501
    %4581 = vmatpush.bf16.msra.mxu0 %v4500
    %4582 = vmatpush.bf16.msra.mxu0 %v4499
    %4583 = vmatpush.bf16.msra.mxu0 %v4498
    %4584 = vmatpush.bf16.msra.mxu0 %v4497
    %4585 = vmatpush.bf16.msra.mxu0 %v4496
    %4586 = vmatmul.bf16.gmra.mxu0 %v4339
    %v4587 = vpop.f32.mrf.mxu0
    %v4588 = vadd.f32 %v4574, %v4587
    %v4589 = vpop.f32.mrf.mxu0
    %v4590 = vadd.f32 %v4576, %v4589
    %4591 = vdwg.mxu0
    %v4592 = vadd.f32 %v4251, %v4588
    %v4593 = vadd.f32 %v4253, %v4590
    %v4594 = vld [vmem:[#allocation2 + $0x60] sm:$0xff]
    %v4595 = vld [vmem:[#allocation2 + $0x68] sm:$0xff]
    %v4596 = vld [vmem:[#allocation2 + $0x70] sm:$0xff]
    %v4597 = vld [vmem:[#allocation2 + $0x78] sm:$0xff]
    %s4598 = scalar_lea.vmem [#allocation6], 512
    %v4599 = vld [vmem:[%s4598] sm:$0xf]
    %v4600 = vld [vmem:[%s4598 + $0x4] sm:$0xf]
    %v4601 = vld [vmem:[%s4598 + $0x8] sm:$0xf]
    %v4602 = vld [vmem:[%s4598 + $0xc] sm:$0xf]
    %v4603 = vld [vmem:[%s4598 + $0x10] sm:$0xf]
    %v4604 = vld [vmem:[%s4598 + $0x14] sm:$0xf]
    %v4605 = vld [vmem:[%s4598 + $0x18] sm:$0xf]
    %v4606 = vld [vmem:[%s4598 + $0x1c] sm:$0xf]
    %v4607 = vld [vmem:[%s4598 + $0x20] sm:$0xf]
    %v4608 = vld [vmem:[%s4598 + $0x24] sm:$0xf]
    %v4609 = vld [vmem:[%s4598 + $0x28] sm:$0xf]
    %v4610 = vld [vmem:[%s4598 + $0x2c] sm:$0xf]
    %v4611 = vld [vmem:[%s4598 + $0x30] sm:$0xf]
    %v4612 = vld [vmem:[%s4598 + $0x34] sm:$0xf]
    %v4613 = vld [vmem:[%s4598 + $0x38] sm:$0xf]
    %v4614 = vld [vmem:[%s4598 + $0x3c] sm:$0xf]
    %v4615 = vld [vmem:[%s4598 + $0x40] sm:$0xf]
    %v4616 = vld [vmem:[%s4598 + $0x44] sm:$0xf]
    %v4617 = vld [vmem:[%s4598 + $0x48] sm:$0xf]
    %v4618 = vld [vmem:[%s4598 + $0x4c] sm:$0xf]
    %v4619 = vld [vmem:[%s4598 + $0x50] sm:$0xf]
    %v4620 = vld [vmem:[%s4598 + $0x54] sm:$0xf]
    %v4621 = vld [vmem:[%s4598 + $0x58] sm:$0xf]
    %v4622 = vld [vmem:[%s4598 + $0x5c] sm:$0xf]
    %v4623 = vld [vmem:[%s4598 + $0x60] sm:$0xf]
    %v4624 = vld [vmem:[%s4598 + $0x64] sm:$0xf]
    %v4625 = vld [vmem:[%s4598 + $0x68] sm:$0xf]
    %v4626 = vld [vmem:[%s4598 + $0x6c] sm:$0xf]
    %v4627 = vld [vmem:[%s4598 + $0x70] sm:$0xf]
    %v4628 = vld [vmem:[%s4598 + $0x74] sm:$0xf]
    %v4629 = vld [vmem:[%s4598 + $0x78] sm:$0xf]
    %v4630 = vld [vmem:[%s4598 + $0x7c] sm:$0xf]
    %v4631 = vld [vmem:[%s4598 + $0x80] sm:$0xf]
    %v4632 = vld [vmem:[%s4598 + $0x84] sm:$0xf]
    %v4633 = vld [vmem:[%s4598 + $0x88] sm:$0xf]
    %v4634 = vld [vmem:[%s4598 + $0x8c] sm:$0xf]
    %v4635 = vld [vmem:[%s4598 + $0x90] sm:$0xf]
    %v4636 = vld [vmem:[%s4598 + $0x94] sm:$0xf]
    %v4637 = vld [vmem:[%s4598 + $0x98] sm:$0xf]
    %v4638 = vld [vmem:[%s4598 + $0x9c] sm:$0xf]
    %v4639 = vld [vmem:[%s4598 + $0xa0] sm:$0xf]
    %v4640 = vld [vmem:[%s4598 + $0xa4] sm:$0xf]
    %v4641 = vld [vmem:[%s4598 + $0xa8] sm:$0xf]
    %v4642 = vld [vmem:[%s4598 + $0xac] sm:$0xf]
    %v4643 = vld [vmem:[%s4598 + $0xb0] sm:$0xf]
    %v4644 = vld [vmem:[%s4598 + $0xb4] sm:$0xf]
    %v4645 = vld [vmem:[%s4598 + $0xb8] sm:$0xf]
    %v4646 = vld [vmem:[%s4598 + $0xbc] sm:$0xf]
    %v4647 = vld [vmem:[%s4598 + $0xc0] sm:$0xf]
    %v4648 = vld [vmem:[%s4598 + $0xc4] sm:$0xf]
    %v4649 = vld [vmem:[%s4598 + $0xc8] sm:$0xf]
    %v4650 = vld [vmem:[%s4598 + $0xcc] sm:$0xf]
    %v4651 = vld [vmem:[%s4598 + $0xd0] sm:$0xf]
    %v4652 = vld [vmem:[%s4598 + $0xd4] sm:$0xf]
    %v4653 = vld [vmem:[%s4598 + $0xd8] sm:$0xf]
    %v4654 = vld [vmem:[%s4598 + $0xdc] sm:$0xf]
    %v4655 = vld [vmem:[%s4598 + $0xe0] sm:$0xf]
    %v4656 = vld [vmem:[%s4598 + $0xe4] sm:$0xf]
    %v4657 = vld [vmem:[%s4598 + $0xe8] sm:$0xf]
    %v4658 = vld [vmem:[%s4598 + $0xec] sm:$0xf]
    %v4659 = vld [vmem:[%s4598 + $0xf0] sm:$0xf]
    %v4660 = vld [vmem:[%s4598 + $0xf4] sm:$0xf]
    %v4661 = vld [vmem:[%s4598 + $0xf8] sm:$0xf]
    %v4662 = vld [vmem:[%s4598 + $0xfc] sm:$0xf]
    %v4667 = vunpack.c.l.b16 %v4594
    %v4668 = vunpack.c.h.b16 %v4594
    %v4669 = vunpack.c.l.b16 %v4595
    %v4670 = vunpack.c.h.b16 %v4595
    %v4671 = vunpack.c.l.b16 %v4596
    %v4672 = vunpack.c.h.b16 %v4596
    %v4673 = vunpack.c.l.b16 %v4597
    %v4674 = vunpack.c.h.b16 %v4597
    %v4675 = vpack.c.b16 %v4671, %v4667
    %v4676 = vpack.c.b16 %v4672, %v4668
    %v4677 = vpack.c.b16 %v4673, %v4669
    %v4678 = vpack.c.b16 %v4674, %v4670
    %v4747 = vunpack.c.l.b16 %v4599
    %v4748 = vunpack.c.l.b16 %v4600
    %v4749 = vunpack.c.l.b16 %v4601
    %v4750 = vunpack.c.l.b16 %v4602
    %v4751 = vunpack.c.l.b16 %v4603
    %v4752 = vunpack.c.l.b16 %v4604
    %v4753 = vunpack.c.l.b16 %v4605
    %v4754 = vunpack.c.l.b16 %v4606
    %v4755 = vunpack.c.l.b16 %v4607
    %v4756 = vunpack.c.l.b16 %v4608
    %v4757 = vunpack.c.l.b16 %v4609
    %v4758 = vunpack.c.l.b16 %v4610
    %v4759 = vunpack.c.l.b16 %v4611
    %v4760 = vunpack.c.l.b16 %v4612
    %v4761 = vunpack.c.l.b16 %v4613
    %v4762 = vunpack.c.l.b16 %v4614
    %v4763 = vunpack.c.l.b16 %v4615
    %v4764 = vunpack.c.l.b16 %v4616
    %v4765 = vunpack.c.l.b16 %v4617
    %v4766 = vunpack.c.l.b16 %v4618
    %v4767 = vunpack.c.l.b16 %v4619
    %v4768 = vunpack.c.l.b16 %v4620
    %v4769 = vunpack.c.l.b16 %v4621
    %v4770 = vunpack.c.l.b16 %v4622
    %v4771 = vunpack.c.l.b16 %v4623
    %v4772 = vunpack.c.l.b16 %v4624
    %v4773 = vunpack.c.l.b16 %v4625
    %v4774 = vunpack.c.l.b16 %v4626
    %v4775 = vunpack.c.l.b16 %v4627
    %v4776 = vunpack.c.l.b16 %v4628
    %v4777 = vunpack.c.l.b16 %v4629
    %v4778 = vunpack.c.l.b16 %v4630
    %v4779 = vunpack.c.l.b16 %v4631
    %v4780 = vunpack.c.l.b16 %v4632
    %v4781 = vunpack.c.l.b16 %v4633
    %v4782 = vunpack.c.l.b16 %v4634
    %v4783 = vunpack.c.l.b16 %v4635
    %v4784 = vunpack.c.l.b16 %v4636
    %v4785 = vunpack.c.l.b16 %v4637
    %v4786 = vunpack.c.l.b16 %v4638
    %v4787 = vunpack.c.l.b16 %v4639
    %v4788 = vunpack.c.l.b16 %v4640
    %v4789 = vunpack.c.l.b16 %v4641
    %v4790 = vunpack.c.l.b16 %v4642
    %v4791 = vunpack.c.l.b16 %v4643
    %v4792 = vunpack.c.l.b16 %v4644
    %v4793 = vunpack.c.l.b16 %v4645
    %v4794 = vunpack.c.l.b16 %v4646
    %v4795 = vunpack.c.l.b16 %v4647
    %v4796 = vunpack.c.l.b16 %v4648
    %v4797 = vunpack.c.l.b16 %v4649
    %v4798 = vunpack.c.l.b16 %v4650
    %v4799 = vunpack.c.l.b16 %v4651
    %v4800 = vunpack.c.l.b16 %v4652
    %v4801 = vunpack.c.l.b16 %v4653
    %v4802 = vunpack.c.l.b16 %v4654
    %v4803 = vunpack.c.l.b16 %v4655
    %v4804 = vunpack.c.l.b16 %v4656
    %v4805 = vunpack.c.l.b16 %v4657
    %v4806 = vunpack.c.l.b16 %v4658
    %v4807 = vunpack.c.l.b16 %v4659
    %v4808 = vunpack.c.l.b16 %v4660
    %v4809 = vunpack.c.l.b16 %v4661
    %v4810 = vunpack.c.l.b16 %v4662
    %v4811 = vpack.c.b16 %v4748, %v4747
    %v4812 = vpack.c.b16 %v4750, %v4749
    %v4813 = vpack.c.b16 %v4752, %v4751
    %v4814 = vpack.c.b16 %v4754, %v4753
    %v4815 = vpack.c.b16 %v4756, %v4755
    %v4816 = vpack.c.b16 %v4758, %v4757
    %v4817 = vpack.c.b16 %v4760, %v4759
    %v4818 = vpack.c.b16 %v4762, %v4761
    %v4819 = vpack.c.b16 %v4764, %v4763
    %v4820 = vpack.c.b16 %v4766, %v4765
    %v4821 = vpack.c.b16 %v4768, %v4767
    %v4822 = vpack.c.b16 %v4770, %v4769
    %v4823 = vpack.c.b16 %v4772, %v4771
    %v4824 = vpack.c.b16 %v4774, %v4773
    %v4825 = vpack.c.b16 %v4776, %v4775
    %v4826 = vpack.c.b16 %v4778, %v4777
    %v4827 = vpack.c.b16 %v4780, %v4779
    %v4828 = vpack.c.b16 %v4782, %v4781
    %v4829 = vpack.c.b16 %v4784, %v4783
    %v4830 = vpack.c.b16 %v4786, %v4785
    %v4831 = vpack.c.b16 %v4788, %v4787
    %v4832 = vpack.c.b16 %v4790, %v4789
    %v4833 = vpack.c.b16 %v4792, %v4791
    %v4834 = vpack.c.b16 %v4794, %v4793
    %v4835 = vpack.c.b16 %v4796, %v4795
    %v4836 = vpack.c.b16 %v4798, %v4797
    %v4837 = vpack.c.b16 %v4800, %v4799
    %v4838 = vpack.c.b16 %v4802, %v4801
    %v4839 = vpack.c.b16 %v4804, %v4803
    %v4840 = vpack.c.b16 %v4806, %v4805
    %v4841 = vpack.c.b16 %v4808, %v4807
    %v4842 = vpack.c.b16 %v4810, %v4809
    %4875 = vmatpush.bf16.msra.mxu0 %v4818
    %4876 = vmatpush.bf16.msra.mxu0 %v4817
    %4877 = vmatpush.bf16.msra.mxu0 %v4816
    %4878 = vmatpush.bf16.msra.mxu0 %v4815
    %4879 = vmatpush.bf16.msra.mxu0 %v4814
    %4880 = vmatpush.bf16.msra.mxu0 %v4813
    %4881 = vmatpush.bf16.msra.mxu0 %v4812
    %4882 = vmatpush.bf16.msra.mxu0 %v4811
    %4883 = vmatmul.bf16.gmra.mxu0 %v4675
    %v4884 = vpop.f32.mrf.mxu0
    %v4885 = vadd.f32 0.0, %v4884
    %v4886 = vpop.f32.mrf.mxu0
    %v4887 = vadd.f32 0.0, %v4886
    %4888 = vdwg.mxu0
    %4889 = vmatpush.bf16.msra.mxu0 %v4826
    %4890 = vmatpush.bf16.msra.mxu0 %v4825
    %4891 = vmatpush.bf16.msra.mxu0 %v4824
    %4892 = vmatpush.bf16.msra.mxu0 %v4823
    %4893 = vmatpush.bf16.msra.mxu0 %v4822
    %4894 = vmatpush.bf16.msra.mxu0 %v4821
    %4895 = vmatpush.bf16.msra.mxu0 %v4820
    %4896 = vmatpush.bf16.msra.mxu0 %v4819
    %4897 = vmatmul.bf16.gmra.mxu0 %v4676
    %v4898 = vpop.f32.mrf.mxu0
    %v4899 = vadd.f32 %v4885, %v4898
    %v4900 = vpop.f32.mrf.mxu0
    %v4901 = vadd.f32 %v4887, %v4900
    %4902 = vdwg.mxu0
    %4903 = vmatpush.bf16.msra.mxu0 %v4834
    %4904 = vmatpush.bf16.msra.mxu0 %v4833
    %4905 = vmatpush.bf16.msra.mxu0 %v4832
    %4906 = vmatpush.bf16.msra.mxu0 %v4831
    %4907 = vmatpush.bf16.msra.mxu0 %v4830
    %4908 = vmatpush.bf16.msra.mxu0 %v4829
    %4909 = vmatpush.bf16.msra.mxu0 %v4828
    %4910 = vmatpush.bf16.msra.mxu0 %v4827
    %4911 = vmatmul.bf16.gmra.mxu0 %v4677
    %v4912 = vpop.f32.mrf.mxu0
    %v4913 = vadd.f32 %v4899, %v4912
    %v4914 = vpop.f32.mrf.mxu0
    %v4915 = vadd.f32 %v4901, %v4914
    %4916 = vdwg.mxu0
    %4917 = vmatpush.bf16.msra.mxu0 %v4842
    %4918 = vmatpush.bf16.msra.mxu0 %v4841
    %4919 = vmatpush.bf16.msra.mxu0 %v4840
    %4920 = vmatpush.bf16.msra.mxu0 %v4839
    %4921 = vmatpush.bf16.msra.mxu0 %v4838
    %4922 = vmatpush.bf16.msra.mxu0 %v4837
    %4923 = vmatpush.bf16.msra.mxu0 %v4836
    %4924 = vmatpush.bf16.msra.mxu0 %v4835
    %4925 = vmatmul.bf16.gmra.mxu0 %v4678
    %v4926 = vpop.f32.mrf.mxu0
    %v4927 = vadd.f32 %v4913, %v4926
    %v4928 = vpop.f32.mrf.mxu0
    %v4929 = vadd.f32 %v4915, %v4928
    %4930 = vdwg.mxu0
    %v4931 = vadd.f32 %v4592, %v4927
    %v4932 = vadd.f32 %v4593, %v4929
    %v4933 = vld [vmem:[#allocation2 + $0x80] sm:$0xff]
    %v4934 = vld [vmem:[#allocation2 + $0x88] sm:$0xff]
    %v4935 = vld [vmem:[#allocation2 + $0x90] sm:$0xff]
    %v4936 = vld [vmem:[#allocation2 + $0x98] sm:$0xff]
    %s4937 = scalar_lea.vmem [#allocation6], 768
    %v4938 = vld [vmem:[%s4937] sm:$0xf]
    %v4939 = vld [vmem:[%s4937 + $0x4] sm:$0xf]
    %v4940 = vld [vmem:[%s4937 + $0x8] sm:$0xf]
    %v4941 = vld [vmem:[%s4937 + $0xc] sm:$0xf]
    %v4942 = vld [vmem:[%s4937 + $0x10] sm:$0xf]
    %v4943 = vld [vmem:[%s4937 + $0x14] sm:$0xf]
    %v4944 = vld [vmem:[%s4937 + $0x18] sm:$0xf]
    %v4945 = vld [vmem:[%s4937 + $0x1c] sm:$0xf]
    %v4946 = vld [vmem:[%s4937 + $0x20] sm:$0xf]
    %v4947 = vld [vmem:[%s4937 + $0x24] sm:$0xf]
    %v4948 = vld [vmem:[%s4937 + $0x28] sm:$0xf]
    %v4949 = vld [vmem:[%s4937 + $0x2c] sm:$0xf]
    %v4950 = vld [vmem:[%s4937 + $0x30] sm:$0xf]
    %v4951 = vld [vmem:[%s4937 + $0x34] sm:$0xf]
    %v4952 = vld [vmem:[%s4937 + $0x38] sm:$0xf]
    %v4953 = vld [vmem:[%s4937 + $0x3c] sm:$0xf]
    %v4954 = vld [vmem:[%s4937 + $0x40] sm:$0xf]
    %v4955 = vld [vmem:[%s4937 + $0x44] sm:$0xf]
    %v4956 = vld [vmem:[%s4937 + $0x48] sm:$0xf]
    %v4957 = vld [vmem:[%s4937 + $0x4c] sm:$0xf]
    %v4958 = vld [vmem:[%s4937 + $0x50] sm:$0xf]
    %v4959 = vld [vmem:[%s4937 + $0x54] sm:$0xf]
    %v4960 = vld [vmem:[%s4937 + $0x58] sm:$0xf]
    %v4961 = vld [vmem:[%s4937 + $0x5c] sm:$0xf]
    %v4962 = vld [vmem:[%s4937 + $0x60] sm:$0xf]
    %v4963 = vld [vmem:[%s4937 + $0x64] sm:$0xf]
    %v4964 = vld [vmem:[%s4937 + $0x68] sm:$0xf]
    %v4965 = vld [vmem:[%s4937 + $0x6c] sm:$0xf]
    %v4966 = vld [vmem:[%s4937 + $0x70] sm:$0xf]
    %v4967 = vld [vmem:[%s4937 + $0x74] sm:$0xf]
    %v4968 = vld [vmem:[%s4937 + $0x78] sm:$0xf]
    %v4969 = vld [vmem:[%s4937 + $0x7c] sm:$0xf]
    %v4970 = vld [vmem:[%s4937 + $0x80] sm:$0xf]
    %v4971 = vld [vmem:[%s4937 + $0x84] sm:$0xf]
    %v4972 = vld [vmem:[%s4937 + $0x88] sm:$0xf]
    %v4973 = vld [vmem:[%s4937 + $0x8c] sm:$0xf]
    %v4974 = vld [vmem:[%s4937 + $0x90] sm:$0xf]
    %v4975 = vld [vmem:[%s4937 + $0x94] sm:$0xf]
    %v4976 = vld [vmem:[%s4937 + $0x98] sm:$0xf]
    %v4977 = vld [vmem:[%s4937 + $0x9c] sm:$0xf]
    %v4978 = vld [vmem:[%s4937 + $0xa0] sm:$0xf]
    %v4979 = vld [vmem:[%s4937 + $0xa4] sm:$0xf]
    %v4980 = vld [vmem:[%s4937 + $0xa8] sm:$0xf]
    %v4981 = vld [vmem:[%s4937 + $0xac] sm:$0xf]
    %v4982 = vld [vmem:[%s4937 + $0xb0] sm:$0xf]
    %v4983 = vld [vmem:[%s4937 + $0xb4] sm:$0xf]
    %v4984 = vld [vmem:[%s4937 + $0xb8] sm:$0xf]
    %v4985 = vld [vmem:[%s4937 + $0xbc] sm:$0xf]
    %v4986 = vld [vmem:[%s4937 + $0xc0] sm:$0xf]
    %v4987 = vld [vmem:[%s4937 + $0xc4] sm:$0xf]
    %v4988 = vld [vmem:[%s4937 + $0xc8] sm:$0xf]
    %v4989 = vld [vmem:[%s4937 + $0xcc] sm:$0xf]
    %v4990 = vld [vmem:[%s4937 + $0xd0] sm:$0xf]
    %v4991 = vld [vmem:[%s4937 + $0xd4] sm:$0xf]
    %v4992 = vld [vmem:[%s4937 + $0xd8] sm:$0xf]
    %v4993 = vld [vmem:[%s4937 + $0xdc] sm:$0xf]
    %v4994 = vld [vmem:[%s4937 + $0xe0] sm:$0xf]
    %v4995 = vld [vmem:[%s4937 + $0xe4] sm:$0xf]
    %v4996 = vld [vmem:[%s4937 + $0xe8] sm:$0xf]
    %v4997 = vld [vmem:[%s4937 + $0xec] sm:$0xf]
    %v4998 = vld [vmem:[%s4937 + $0xf0] sm:$0xf]
    %v4999 = vld [vmem:[%s4937 + $0xf4] sm:$0xf]
    %v5000 = vld [vmem:[%s4937 + $0xf8] sm:$0xf]
    %v5001 = vld [vmem:[%s4937 + $0xfc] sm:$0xf]
    %v5006 = vunpack.c.l.b16 %v4933
    %v5007 = vunpack.c.h.b16 %v4933
    %v5008 = vunpack.c.l.b16 %v4934
    %v5009 = vunpack.c.h.b16 %v4934
    %v5010 = vunpack.c.l.b16 %v4935
    %v5011 = vunpack.c.h.b16 %v4935
    %v5012 = vunpack.c.l.b16 %v4936
    %v5013 = vunpack.c.h.b16 %v4936
    %v5014 = vpack.c.b16 %v5010, %v5006
    %v5015 = vpack.c.b16 %v5011, %v5007
    %v5016 = vpack.c.b16 %v5012, %v5008
    %v5017 = vpack.c.b16 %v5013, %v5009
    %v5086 = vunpack.c.l.b16 %v4938
    %v5087 = vunpack.c.l.b16 %v4939
    %v5088 = vunpack.c.l.b16 %v4940
    %v5089 = vunpack.c.l.b16 %v4941
    %v5090 = vunpack.c.l.b16 %v4942
    %v5091 = vunpack.c.l.b16 %v4943
    %v5092 = vunpack.c.l.b16 %v4944
    %v5093 = vunpack.c.l.b16 %v4945
    %v5094 = vunpack.c.l.b16 %v4946
    %v5095 = vunpack.c.l.b16 %v4947
    %v5096 = vunpack.c.l.b16 %v4948
    %v5097 = vunpack.c.l.b16 %v4949
    %v5098 = vunpack.c.l.b16 %v4950
    %v5099 = vunpack.c.l.b16 %v4951
    %v5100 = vunpack.c.l.b16 %v4952
    %v5101 = vunpack.c.l.b16 %v4953
    %v5102 = vunpack.c.l.b16 %v4954
    %v5103 = vunpack.c.l.b16 %v4955
    %v5104 = vunpack.c.l.b16 %v4956
    %v5105 = vunpack.c.l.b16 %v4957
    %v5106 = vunpack.c.l.b16 %v4958
    %v5107 = vunpack.c.l.b16 %v4959
    %v5108 = vunpack.c.l.b16 %v4960
    %v5109 = vunpack.c.l.b16 %v4961
    %v5110 = vunpack.c.l.b16 %v4962
    %v5111 = vunpack.c.l.b16 %v4963
    %v5112 = vunpack.c.l.b16 %v4964
    %v5113 = vunpack.c.l.b16 %v4965
    %v5114 = vunpack.c.l.b16 %v4966
    %v5115 = vunpack.c.l.b16 %v4967
    %v5116 = vunpack.c.l.b16 %v4968
    %v5117 = vunpack.c.l.b16 %v4969
    %v5118 = vunpack.c.l.b16 %v4970
    %v5119 = vunpack.c.l.b16 %v4971
    %v5120 = vunpack.c.l.b16 %v4972
    %v5121 = vunpack.c.l.b16 %v4973
    %v5122 = vunpack.c.l.b16 %v4974
    %v5123 = vunpack.c.l.b16 %v4975
    %v5124 = vunpack.c.l.b16 %v4976
    %v5125 = vunpack.c.l.b16 %v4977
    %v5126 = vunpack.c.l.b16 %v4978
    %v5127 = vunpack.c.l.b16 %v4979
    %v5128 = vunpack.c.l.b16 %v4980
    %v5129 = vunpack.c.l.b16 %v4981
    %v5130 = vunpack.c.l.b16 %v4982
    %v5131 = vunpack.c.l.b16 %v4983
    %v5132 = vunpack.c.l.b16 %v4984
    %v5133 = vunpack.c.l.b16 %v4985
    %v5134 = vunpack.c.l.b16 %v4986
    %v5135 = vunpack.c.l.b16 %v4987
    %v5136 = vunpack.c.l.b16 %v4988
    %v5137 = vunpack.c.l.b16 %v4989
    %v5138 = vunpack.c.l.b16 %v4990
    %v5139 = vunpack.c.l.b16 %v4991
    %v5140 = vunpack.c.l.b16 %v4992
    %v5141 = vunpack.c.l.b16 %v4993
    %v5142 = vunpack.c.l.b16 %v4994
    %v5143 = vunpack.c.l.b16 %v4995
    %v5144 = vunpack.c.l.b16 %v4996
    %v5145 = vunpack.c.l.b16 %v4997
    %v5146 = vunpack.c.l.b16 %v4998
    %v5147 = vunpack.c.l.b16 %v4999
    %v5148 = vunpack.c.l.b16 %v5000
    %v5149 = vunpack.c.l.b16 %v5001
    %v5150 = vpack.c.b16 %v5087, %v5086
    %v5151 = vpack.c.b16 %v5089, %v5088
    %v5152 = vpack.c.b16 %v5091, %v5090
    %v5153 = vpack.c.b16 %v5093, %v5092
    %v5154 = vpack.c.b16 %v5095, %v5094
    %v5155 = vpack.c.b16 %v5097, %v5096
    %v5156 = vpack.c.b16 %v5099, %v5098
    %v5157 = vpack.c.b16 %v5101, %v5100
    %v5158 = vpack.c.b16 %v5103, %v5102
    %v5159 = vpack.c.b16 %v5105, %v5104
    %v5160 = vpack.c.b16 %v5107, %v5106
    %v5161 = vpack.c.b16 %v5109, %v5108
    %v5162 = vpack.c.b16 %v5111, %v5110
    %v5163 = vpack.c.b16 %v5113, %v5112
    %v5164 = vpack.c.b16 %v5115, %v5114
    %v5165 = vpack.c.b16 %v5117, %v5116
    %v5166 = vpack.c.b16 %v5119, %v5118
    %v5167 = vpack.c.b16 %v5121, %v5120
    %v5168 = vpack.c.b16 %v5123, %v5122
    %v5169 = vpack.c.b16 %v5125, %v5124
    %v5170 = vpack.c.b16 %v5127, %v5126
    %v5171 = vpack.c.b16 %v5129, %v5128
    %v5172 = vpack.c.b16 %v5131, %v5130
    %v5173 = vpack.c.b16 %v5133, %v5132
    %v5174 = vpack.c.b16 %v5135, %v5134
    %v5175 = vpack.c.b16 %v5137, %v5136
    %v5176 = vpack.c.b16 %v5139, %v5138
    %v5177 = vpack.c.b16 %v5141, %v5140
    %v5178 = vpack.c.b16 %v5143, %v5142
    %v5179 = vpack.c.b16 %v5145, %v5144
    %v5180 = vpack.c.b16 %v5147, %v5146
    %v5181 = vpack.c.b16 %v5149, %v5148
    %5214 = vmatpush.bf16.msra.mxu0 %v5157
    %5215 = vmatpush.bf16.msra.mxu0 %v5156
    %5216 = vmatpush.bf16.msra.mxu0 %v5155
    %5217 = vmatpush.bf16.msra.mxu0 %v5154
    %5218 = vmatpush.bf16.msra.mxu0 %v5153
    %5219 = vmatpush.bf16.msra.mxu0 %v5152
    %5220 = vmatpush.bf16.msra.mxu0 %v5151
    %5221 = vmatpush.bf16.msra.mxu0 %v5150
    %5222 = vmatmul.bf16.gmra.mxu0 %v5014
    %v5223 = vpop.f32.mrf.mxu0
    %v5224 = vadd.f32 0.0, %v5223
    %v5225 = vpop.f32.mrf.mxu0
    %v5226 = vadd.f32 0.0, %v5225
    %5227 = vdwg.mxu0
    %5228 = vmatpush.bf16.msra.mxu0 %v5165
    %5229 = vmatpush.bf16.msra.mxu0 %v5164
    %5230 = vmatpush.bf16.msra.mxu0 %v5163
    %5231 = vmatpush.bf16.msra.mxu0 %v5162
    %5232 = vmatpush.bf16.msra.mxu0 %v5161
    %5233 = vmatpush.bf16.msra.mxu0 %v5160
    %5234 = vmatpush.bf16.msra.mxu0 %v5159
    %5235 = vmatpush.bf16.msra.mxu0 %v5158
    %5236 = vmatmul.bf16.gmra.mxu0 %v5015
    %v5237 = vpop.f32.mrf.mxu0
    %v5238 = vadd.f32 %v5224, %v5237
    %v5239 = vpop.f32.mrf.mxu0
    %v5240 = vadd.f32 %v5226, %v5239
    %5241 = vdwg.mxu0
    %5242 = vmatpush.bf16.msra.mxu0 %v5173
    %5243 = vmatpush.bf16.msra.mxu0 %v5172
    %5244 = vmatpush.bf16.msra.mxu0 %v5171
    %5245 = vmatpush.bf16.msra.mxu0 %v5170
    %5246 = vmatpush.bf16.msra.mxu0 %v5169
    %5247 = vmatpush.bf16.msra.mxu0 %v5168
    %5248 = vmatpush.bf16.msra.mxu0 %v5167
    %5249 = vmatpush.bf16.msra.mxu0 %v5166
    %5250 = vmatmul.bf16.gmra.mxu0 %v5016
    %v5251 = vpop.f32.mrf.mxu0
    %v5252 = vadd.f32 %v5238, %v5251
    %v5253 = vpop.f32.mrf.mxu0
    %v5254 = vadd.f32 %v5240, %v5253
    %5255 = vdwg.mxu0
    %5256 = vmatpush.bf16.msra.mxu0 %v5181
    %5257 = vmatpush.bf16.msra.mxu0 %v5180
    %5258 = vmatpush.bf16.msra.mxu0 %v5179
    %5259 = vmatpush.bf16.msra.mxu0 %v5178
    %5260 = vmatpush.bf16.msra.mxu0 %v5177
    %5261 = vmatpush.bf16.msra.mxu0 %v5176
    %5262 = vmatpush.bf16.msra.mxu0 %v5175
    %5263 = vmatpush.bf16.msra.mxu0 %v5174
    %5264 = vmatmul.bf16.gmra.mxu0 %v5017
    %v5265 = vpop.f32.mrf.mxu0
    %v5266 = vadd.f32 %v5252, %v5265
    %v5267 = vpop.f32.mrf.mxu0
    %v5268 = vadd.f32 %v5254, %v5267
    %5269 = vdwg.mxu0
    %v5270 = vadd.f32 %v4931, %v5266
    %v5271 = vadd.f32 %v4932, %v5268
    %v5272 = vld [vmem:[#allocation2 + $0xa0] sm:$0xff]
    %v5273 = vld [vmem:[#allocation2 + $0xa8] sm:$0xff]
    %v5274 = vld [vmem:[#allocation2 + $0xb0] sm:$0xff]
    %v5275 = vld [vmem:[#allocation2 + $0xb8] sm:$0xff]
    %s5276 = scalar_lea.vmem [#allocation6], 1024
    %v5277 = vld [vmem:[%s5276] sm:$0xf]
    %v5278 = vld [vmem:[%s5276 + $0x4] sm:$0xf]
    %v5279 = vld [vmem:[%s5276 + $0x8] sm:$0xf]
    %v5280 = vld [vmem:[%s5276 + $0xc] sm:$0xf]
    %v5281 = vld [vmem:[%s5276 + $0x10] sm:$0xf]
    %v5282 = vld [vmem:[%s5276 + $0x14] sm:$0xf]
    %v5283 = vld [vmem:[%s5276 + $0x18] sm:$0xf]
    %v5284 = vld [vmem:[%s5276 + $0x1c] sm:$0xf]
    %v5285 = vld [vmem:[%s5276 + $0x20] sm:$0xf]
    %v5286 = vld [vmem:[%s5276 + $0x24] sm:$0xf]
    %v5287 = vld [vmem:[%s5276 + $0x28] sm:$0xf]
    %v5288 = vld [vmem:[%s5276 + $0x2c] sm:$0xf]
    %v5289 = vld [vmem:[%s5276 + $0x30] sm:$0xf]
    %v5290 = vld [vmem:[%s5276 + $0x34] sm:$0xf]
    %v5291 = vld [vmem:[%s5276 + $0x38] sm:$0xf]
    %v5292 = vld [vmem:[%s5276 + $0x3c] sm:$0xf]
    %v5293 = vld [vmem:[%s5276 + $0x40] sm:$0xf]
    %v5294 = vld [vmem:[%s5276 + $0x44] sm:$0xf]
    %v5295 = vld [vmem:[%s5276 + $0x48] sm:$0xf]
    %v5296 = vld [vmem:[%s5276 + $0x4c] sm:$0xf]
    %v5297 = vld [vmem:[%s5276 + $0x50] sm:$0xf]
    %v5298 = vld [vmem:[%s5276 + $0x54] sm:$0xf]
    %v5299 = vld [vmem:[%s5276 + $0x58] sm:$0xf]
    %v5300 = vld [vmem:[%s5276 + $0x5c] sm:$0xf]
    %v5301 = vld [vmem:[%s5276 + $0x60] sm:$0xf]
    %v5302 = vld [vmem:[%s5276 + $0x64] sm:$0xf]
    %v5303 = vld [vmem:[%s5276 + $0x68] sm:$0xf]
    %v5304 = vld [vmem:[%s5276 + $0x6c] sm:$0xf]
    %v5305 = vld [vmem:[%s5276 + $0x70] sm:$0xf]
    %v5306 = vld [vmem:[%s5276 + $0x74] sm:$0xf]
    %v5307 = vld [vmem:[%s5276 + $0x78] sm:$0xf]
    %v5308 = vld [vmem:[%s5276 + $0x7c] sm:$0xf]
    %v5309 = vld [vmem:[%s5276 + $0x80] sm:$0xf]
    %v5310 = vld [vmem:[%s5276 + $0x84] sm:$0xf]
    %v5311 = vld [vmem:[%s5276 + $0x88] sm:$0xf]
    %v5312 = vld [vmem:[%s5276 + $0x8c] sm:$0xf]
    %v5313 = vld [vmem:[%s5276 + $0x90] sm:$0xf]
    %v5314 = vld [vmem:[%s5276 + $0x94] sm:$0xf]
    %v5315 = vld [vmem:[%s5276 + $0x98] sm:$0xf]
    %v5316 = vld [vmem:[%s5276 + $0x9c] sm:$0xf]
    %v5317 = vld [vmem:[%s5276 + $0xa0] sm:$0xf]
    %v5318 = vld [vmem:[%s5276 + $0xa4] sm:$0xf]
    %v5319 = vld [vmem:[%s5276 + $0xa8] sm:$0xf]
    %v5320 = vld [vmem:[%s5276 + $0xac] sm:$0xf]
    %v5321 = vld [vmem:[%s5276 + $0xb0] sm:$0xf]
    %v5322 = vld [vmem:[%s5276 + $0xb4] sm:$0xf]
    %v5323 = vld [vmem:[%s5276 + $0xb8] sm:$0xf]
    %v5324 = vld [vmem:[%s5276 + $0xbc] sm:$0xf]
    %v5325 = vld [vmem:[%s5276 + $0xc0] sm:$0xf]
    %v5326 = vld [vmem:[%s5276 + $0xc4] sm:$0xf]
    %v5327 = vld [vmem:[%s5276 + $0xc8] sm:$0xf]
    %v5328 = vld [vmem:[%s5276 + $0xcc] sm:$0xf]
    %v5329 = vld [vmem:[%s5276 + $0xd0] sm:$0xf]
    %v5330 = vld [vmem:[%s5276 + $0xd4] sm:$0xf]
    %v5331 = vld [vmem:[%s5276 + $0xd8] sm:$0xf]
    %v5332 = vld [vmem:[%s5276 + $0xdc] sm:$0xf]
    %v5333 = vld [vmem:[%s5276 + $0xe0] sm:$0xf]
    %v5334 = vld [vmem:[%s5276 + $0xe4] sm:$0xf]
    %v5335 = vld [vmem:[%s5276 + $0xe8] sm:$0xf]
    %v5336 = vld [vmem:[%s5276 + $0xec] sm:$0xf]
    %v5337 = vld [vmem:[%s5276 + $0xf0] sm:$0xf]
    %v5338 = vld [vmem:[%s5276 + $0xf4] sm:$0xf]
    %v5339 = vld [vmem:[%s5276 + $0xf8] sm:$0xf]
    %v5340 = vld [vmem:[%s5276 + $0xfc] sm:$0xf]
    %v5345 = vunpack.c.l.b16 %v5272
    %v5346 = vunpack.c.h.b16 %v5272
    %v5347 = vunpack.c.l.b16 %v5273
    %v5348 = vunpack.c.h.b16 %v5273
    %v5349 = vunpack.c.l.b16 %v5274
    %v5350 = vunpack.c.h.b16 %v5274
    %v5351 = vunpack.c.l.b16 %v5275
    %v5352 = vunpack.c.h.b16 %v5275
    %v5353 = vpack.c.b16 %v5349, %v5345
    %v5354 = vpack.c.b16 %v5350, %v5346
    %v5355 = vpack.c.b16 %v5351, %v5347
    %v5356 = vpack.c.b16 %v5352, %v5348
    %v5425 = vunpack.c.l.b16 %v5277
    %v5426 = vunpack.c.l.b16 %v5278
    %v5427 = vunpack.c.l.b16 %v5279
    %v5428 = vunpack.c.l.b16 %v5280
    %v5429 = vunpack.c.l.b16 %v5281
    %v5430 = vunpack.c.l.b16 %v5282
    %v5431 = vunpack.c.l.b16 %v5283
    %v5432 = vunpack.c.l.b16 %v5284
    %v5433 = vunpack.c.l.b16 %v5285
    %v5434 = vunpack.c.l.b16 %v5286
    %v5435 = vunpack.c.l.b16 %v5287
    %v5436 = vunpack.c.l.b16 %v5288
    %v5437 = vunpack.c.l.b16 %v5289
    %v5438 = vunpack.c.l.b16 %v5290
    %v5439 = vunpack.c.l.b16 %v5291
    %v5440 = vunpack.c.l.b16 %v5292
    %v5441 = vunpack.c.l.b16 %v5293
    %v5442 = vunpack.c.l.b16 %v5294
    %v5443 = vunpack.c.l.b16 %v5295
    %v5444 = vunpack.c.l.b16 %v5296
    %v5445 = vunpack.c.l.b16 %v5297
    %v5446 = vunpack.c.l.b16 %v5298
    %v5447 = vunpack.c.l.b16 %v5299
    %v5448 = vunpack.c.l.b16 %v5300
    %v5449 = vunpack.c.l.b16 %v5301
    %v5450 = vunpack.c.l.b16 %v5302
    %v5451 = vunpack.c.l.b16 %v5303
    %v5452 = vunpack.c.l.b16 %v5304
    %v5453 = vunpack.c.l.b16 %v5305
    %v5454 = vunpack.c.l.b16 %v5306
    %v5455 = vunpack.c.l.b16 %v5307
    %v5456 = vunpack.c.l.b16 %v5308
    %v5457 = vunpack.c.l.b16 %v5309
    %v5458 = vunpack.c.l.b16 %v5310
    %v5459 = vunpack.c.l.b16 %v5311
    %v5460 = vunpack.c.l.b16 %v5312
    %v5461 = vunpack.c.l.b16 %v5313
    %v5462 = vunpack.c.l.b16 %v5314
    %v5463 = vunpack.c.l.b16 %v5315
    %v5464 = vunpack.c.l.b16 %v5316
    %v5465 = vunpack.c.l.b16 %v5317
    %v5466 = vunpack.c.l.b16 %v5318
    %v5467 = vunpack.c.l.b16 %v5319
    %v5468 = vunpack.c.l.b16 %v5320
    %v5469 = vunpack.c.l.b16 %v5321
    %v5470 = vunpack.c.l.b16 %v5322
    %v5471 = vunpack.c.l.b16 %v5323
    %v5472 = vunpack.c.l.b16 %v5324
    %v5473 = vunpack.c.l.b16 %v5325
    %v5474 = vunpack.c.l.b16 %v5326
    %v5475 = vunpack.c.l.b16 %v5327
    %v5476 = vunpack.c.l.b16 %v5328
    %v5477 = vunpack.c.l.b16 %v5329
    %v5478 = vunpack.c.l.b16 %v5330
    %v5479 = vunpack.c.l.b16 %v5331
    %v5480 = vunpack.c.l.b16 %v5332
    %v5481 = vunpack.c.l.b16 %v5333
    %v5482 = vunpack.c.l.b16 %v5334
    %v5483 = vunpack.c.l.b16 %v5335
    %v5484 = vunpack.c.l.b16 %v5336
    %v5485 = vunpack.c.l.b16 %v5337
    %v5486 = vunpack.c.l.b16 %v5338
    %v5487 = vunpack.c.l.b16 %v5339
    %v5488 = vunpack.c.l.b16 %v5340
    %v5489 = vpack.c.b16 %v5426, %v5425
    %v5490 = vpack.c.b16 %v5428, %v5427
    %v5491 = vpack.c.b16 %v5430, %v5429
    %v5492 = vpack.c.b16 %v5432, %v5431
    %v5493 = vpack.c.b16 %v5434, %v5433
    %v5494 = vpack.c.b16 %v5436, %v5435
    %v5495 = vpack.c.b16 %v5438, %v5437
    %v5496 = vpack.c.b16 %v5440, %v5439
    %v5497 = vpack.c.b16 %v5442, %v5441
    %v5498 = vpack.c.b16 %v5444, %v5443
    %v5499 = vpack.c.b16 %v5446, %v5445
    %v5500 = vpack.c.b16 %v5448, %v5447
    %v5501 = vpack.c.b16 %v5450, %v5449
    %v5502 = vpack.c.b16 %v5452, %v5451
    %v5503 = vpack.c.b16 %v5454, %v5453
    %v5504 = vpack.c.b16 %v5456, %v5455
    %v5505 = vpack.c.b16 %v5458, %v5457
    %v5506 = vpack.c.b16 %v5460, %v5459
    %v5507 = vpack.c.b16 %v5462, %v5461
    %v5508 = vpack.c.b16 %v5464, %v5463
    %v5509 = vpack.c.b16 %v5466, %v5465
    %v5510 = vpack.c.b16 %v5468, %v5467
    %v5511 = vpack.c.b16 %v5470, %v5469
    %v5512 = vpack.c.b16 %v5472, %v5471
    %v5513 = vpack.c.b16 %v5474, %v5473
    %v5514 = vpack.c.b16 %v5476, %v5475
    %v5515 = vpack.c.b16 %v5478, %v5477
    %v5516 = vpack.c.b16 %v5480, %v5479
    %v5517 = vpack.c.b16 %v5482, %v5481
    %v5518 = vpack.c.b16 %v5484, %v5483
    %v5519 = vpack.c.b16 %v5486, %v5485
    %v5520 = vpack.c.b16 %v5488, %v5487
    %5553 = vmatpush.bf16.msra.mxu0 %v5496
    %5554 = vmatpush.bf16.msra.mxu0 %v5495
    %5555 = vmatpush.bf16.msra.mxu0 %v5494
    %5556 = vmatpush.bf16.msra.mxu0 %v5493
    %5557 = vmatpush.bf16.msra.mxu0 %v5492
    %5558 = vmatpush.bf16.msra.mxu0 %v5491
    %5559 = vmatpush.bf16.msra.mxu0 %v5490
    %5560 = vmatpush.bf16.msra.mxu0 %v5489
    %5561 = vmatmul.bf16.gmra.mxu0 %v5353
    %v5562 = vpop.f32.mrf.mxu0
    %v5563 = vadd.f32 0.0, %v5562
    %v5564 = vpop.f32.mrf.mxu0
    %v5565 = vadd.f32 0.0, %v5564
    %5566 = vdwg.mxu0
    %5567 = vmatpush.bf16.msra.mxu0 %v5504
    %5568 = vmatpush.bf16.msra.mxu0 %v5503
    %5569 = vmatpush.bf16.msra.mxu0 %v5502
    %5570 = vmatpush.bf16.msra.mxu0 %v5501
    %5571 = vmatpush.bf16.msra.mxu0 %v5500
    %5572 = vmatpush.bf16.msra.mxu0 %v5499
    %5573 = vmatpush.bf16.msra.mxu0 %v5498
    %5574 = vmatpush.bf16.msra.mxu0 %v5497
    %5575 = vmatmul.bf16.gmra.mxu0 %v5354
    %v5576 = vpop.f32.mrf.mxu0
    %v5577 = vadd.f32 %v5563, %v5576
    %v5578 = vpop.f32.mrf.mxu0
    %v5579 = vadd.f32 %v5565, %v5578
    %5580 = vdwg.mxu0
    %5581 = vmatpush.bf16.msra.mxu0 %v5512
    %5582 = vmatpush.bf16.msra.mxu0 %v5511
    %5583 = vmatpush.bf16.msra.mxu0 %v5510
    %5584 = vmatpush.bf16.msra.mxu0 %v5509
    %5585 = vmatpush.bf16.msra.mxu0 %v5508
    %5586 = vmatpush.bf16.msra.mxu0 %v5507
    %5587 = vmatpush.bf16.msra.mxu0 %v5506
    %5588 = vmatpush.bf16.msra.mxu0 %v5505
    %5589 = vmatmul.bf16.gmra.mxu0 %v5355
    %v5590 = vpop.f32.mrf.mxu0
    %v5591 = vadd.f32 %v5577, %v5590
    %v5592 = vpop.f32.mrf.mxu0
    %v5593 = vadd.f32 %v5579, %v5592
    %5594 = vdwg.mxu0
    %5595 = vmatpush.bf16.msra.mxu0 %v5520
    %5596 = vmatpush.bf16.msra.mxu0 %v5519
    %5597 = vmatpush.bf16.msra.mxu0 %v5518
    %5598 = vmatpush.bf16.msra.mxu0 %v5517
    %5599 = vmatpush.bf16.msra.mxu0 %v5516
    %5600 = vmatpush.bf16.msra.mxu0 %v5515
    %5601 = vmatpush.bf16.msra.mxu0 %v5514
    %5602 = vmatpush.bf16.msra.mxu0 %v5513
    %5603 = vmatmul.bf16.gmra.mxu0 %v5356
    %v5604 = vpop.f32.mrf.mxu0
    %v5605 = vadd.f32 %v5591, %v5604
    %v5606 = vpop.f32.mrf.mxu0
    %v5607 = vadd.f32 %v5593, %v5606
    %5608 = vdwg.mxu0
    %v5609 = vadd.f32 %v5270, %v5605
    %v5610 = vadd.f32 %v5271, %v5607
    %v5611 = vld [vmem:[#allocation2 + $0xc0] sm:$0xff]
    %v5612 = vld [vmem:[#allocation2 + $0xc8] sm:$0xff]
    %v5613 = vld [vmem:[#allocation2 + $0xd0] sm:$0xff]
    %v5614 = vld [vmem:[#allocation2 + $0xd8] sm:$0xff]
    %s5615 = scalar_lea.vmem [#allocation6], 1280
    %v5616 = vld [vmem:[%s5615] sm:$0xf]
    %v5617 = vld [vmem:[%s5615 + $0x4] sm:$0xf]
    %v5618 = vld [vmem:[%s5615 + $0x8] sm:$0xf]
    %v5619 = vld [vmem:[%s5615 + $0xc] sm:$0xf]
    %v5620 = vld [vmem:[%s5615 + $0x10] sm:$0xf]
    %v5621 = vld [vmem:[%s5615 + $0x14] sm:$0xf]
    %v5622 = vld [vmem:[%s5615 + $0x18] sm:$0xf]
    %v5623 = vld [vmem:[%s5615 + $0x1c] sm:$0xf]
    %v5624 = vld [vmem:[%s5615 + $0x20] sm:$0xf]
    %v5625 = vld [vmem:[%s5615 + $0x24] sm:$0xf]
    %v5626 = vld [vmem:[%s5615 + $0x28] sm:$0xf]
    %v5627 = vld [vmem:[%s5615 + $0x2c] sm:$0xf]
    %v5628 = vld [vmem:[%s5615 + $0x30] sm:$0xf]
    %v5629 = vld [vmem:[%s5615 + $0x34] sm:$0xf]
    %v5630 = vld [vmem:[%s5615 + $0x38] sm:$0xf]
    %v5631 = vld [vmem:[%s5615 + $0x3c] sm:$0xf]
    %v5632 = vld [vmem:[%s5615 + $0x40] sm:$0xf]
    %v5633 = vld [vmem:[%s5615 + $0x44] sm:$0xf]
    %v5634 = vld [vmem:[%s5615 + $0x48] sm:$0xf]
    %v5635 = vld [vmem:[%s5615 + $0x4c] sm:$0xf]
    %v5636 = vld [vmem:[%s5615 + $0x50] sm:$0xf]
    %v5637 = vld [vmem:[%s5615 + $0x54] sm:$0xf]
    %v5638 = vld [vmem:[%s5615 + $0x58] sm:$0xf]
    %v5639 = vld [vmem:[%s5615 + $0x5c] sm:$0xf]
    %v5640 = vld [vmem:[%s5615 + $0x60] sm:$0xf]
    %v5641 = vld [vmem:[%s5615 + $0x64] sm:$0xf]
    %v5642 = vld [vmem:[%s5615 + $0x68] sm:$0xf]
    %v5643 = vld [vmem:[%s5615 + $0x6c] sm:$0xf]
    %v5644 = vld [vmem:[%s5615 + $0x70] sm:$0xf]
    %v5645 = vld [vmem:[%s5615 + $0x74] sm:$0xf]
    %v5646 = vld [vmem:[%s5615 + $0x78] sm:$0xf]
    %v5647 = vld [vmem:[%s5615 + $0x7c] sm:$0xf]
    %v5648 = vld [vmem:[%s5615 + $0x80] sm:$0xf]
    %v5649 = vld [vmem:[%s5615 + $0x84] sm:$0xf]
    %v5650 = vld [vmem:[%s5615 + $0x88] sm:$0xf]
    %v5651 = vld [vmem:[%s5615 + $0x8c] sm:$0xf]
    %v5652 = vld [vmem:[%s5615 + $0x90] sm:$0xf]
    %v5653 = vld [vmem:[%s5615 + $0x94] sm:$0xf]
    %v5654 = vld [vmem:[%s5615 + $0x98] sm:$0xf]
    %v5655 = vld [vmem:[%s5615 + $0x9c] sm:$0xf]
    %v5656 = vld [vmem:[%s5615 + $0xa0] sm:$0xf]
    %v5657 = vld [vmem:[%s5615 + $0xa4] sm:$0xf]
    %v5658 = vld [vmem:[%s5615 + $0xa8] sm:$0xf]
    %v5659 = vld [vmem:[%s5615 + $0xac] sm:$0xf]
    %v5660 = vld [vmem:[%s5615 + $0xb0] sm:$0xf]
    %v5661 = vld [vmem:[%s5615 + $0xb4] sm:$0xf]
    %v5662 = vld [vmem:[%s5615 + $0xb8] sm:$0xf]
    %v5663 = vld [vmem:[%s5615 + $0xbc] sm:$0xf]
    %v5664 = vld [vmem:[%s5615 + $0xc0] sm:$0xf]
    %v5665 = vld [vmem:[%s5615 + $0xc4] sm:$0xf]
    %v5666 = vld [vmem:[%s5615 + $0xc8] sm:$0xf]
    %v5667 = vld [vmem:[%s5615 + $0xcc] sm:$0xf]
    %v5668 = vld [vmem:[%s5615 + $0xd0] sm:$0xf]
    %v5669 = vld [vmem:[%s5615 + $0xd4] sm:$0xf]
    %v5670 = vld [vmem:[%s5615 + $0xd8] sm:$0xf]
    %v5671 = vld [vmem:[%s5615 + $0xdc] sm:$0xf]
    %v5672 = vld [vmem:[%s5615 + $0xe0] sm:$0xf]
    %v5673 = vld [vmem:[%s5615 + $0xe4] sm:$0xf]
    %v5674 = vld [vmem:[%s5615 + $0xe8] sm:$0xf]
    %v5675 = vld [vmem:[%s5615 + $0xec] sm:$0xf]
    %v5676 = vld [vmem:[%s5615 + $0xf0] sm:$0xf]
    %v5677 = vld [vmem:[%s5615 + $0xf4] sm:$0xf]
    %v5678 = vld [vmem:[%s5615 + $0xf8] sm:$0xf]
    %v5679 = vld [vmem:[%s5615 + $0xfc] sm:$0xf]
    %v5684 = vunpack.c.l.b16 %v5611
    %v5685 = vunpack.c.h.b16 %v5611
    %v5686 = vunpack.c.l.b16 %v5612
    %v5687 = vunpack.c.h.b16 %v5612
    %v5688 = vunpack.c.l.b16 %v5613
    %v5689 = vunpack.c.h.b16 %v5613
    %v5690 = vunpack.c.l.b16 %v5614
    %v5691 = vunpack.c.h.b16 %v5614
    %v5692 = vpack.c.b16 %v5688, %v5684
    %v5693 = vpack.c.b16 %v5689, %v5685
    %v5694 = vpack.c.b16 %v5690, %v5686
    %v5695 = vpack.c.b16 %v5691, %v5687
    %v5764 = vunpack.c.l.b16 %v5616
    %v5765 = vunpack.c.l.b16 %v5617
    %v5766 = vunpack.c.l.b16 %v5618
    %v5767 = vunpack.c.l.b16 %v5619
    %v5768 = vunpack.c.l.b16 %v5620
    %v5769 = vunpack.c.l.b16 %v5621
    %v5770 = vunpack.c.l.b16 %v5622
    %v5771 = vunpack.c.l.b16 %v5623
    %v5772 = vunpack.c.l.b16 %v5624
    %v5773 = vunpack.c.l.b16 %v5625
    %v5774 = vunpack.c.l.b16 %v5626
    %v5775 = vunpack.c.l.b16 %v5627
    %v5776 = vunpack.c.l.b16 %v5628
    %v5777 = vunpack.c.l.b16 %v5629
    %v5778 = vunpack.c.l.b16 %v5630
    %v5779 = vunpack.c.l.b16 %v5631
    %v5780 = vunpack.c.l.b16 %v5632
    %v5781 = vunpack.c.l.b16 %v5633
    %v5782 = vunpack.c.l.b16 %v5634
    %v5783 = vunpack.c.l.b16 %v5635
    %v5784 = vunpack.c.l.b16 %v5636
    %v5785 = vunpack.c.l.b16 %v5637
    %v5786 = vunpack.c.l.b16 %v5638
    %v5787 = vunpack.c.l.b16 %v5639
    %v5788 = vunpack.c.l.b16 %v5640
    %v5789 = vunpack.c.l.b16 %v5641
    %v5790 = vunpack.c.l.b16 %v5642
    %v5791 = vunpack.c.l.b16 %v5643
    %v5792 = vunpack.c.l.b16 %v5644
    %v5793 = vunpack.c.l.b16 %v5645
    %v5794 = vunpack.c.l.b16 %v5646
    %v5795 = vunpack.c.l.b16 %v5647
    %v5796 = vunpack.c.l.b16 %v5648
    %v5797 = vunpack.c.l.b16 %v5649
    %v5798 = vunpack.c.l.b16 %v5650
    %v5799 = vunpack.c.l.b16 %v5651
    %v5800 = vunpack.c.l.b16 %v5652
    %v5801 = vunpack.c.l.b16 %v5653
    %v5802 = vunpack.c.l.b16 %v5654
    %v5803 = vunpack.c.l.b16 %v5655
    %v5804 = vunpack.c.l.b16 %v5656
    %v5805 = vunpack.c.l.b16 %v5657
    %v5806 = vunpack.c.l.b16 %v5658
    %v5807 = vunpack.c.l.b16 %v5659
    %v5808 = vunpack.c.l.b16 %v5660
    %v5809 = vunpack.c.l.b16 %v5661
    %v5810 = vunpack.c.l.b16 %v5662
    %v5811 = vunpack.c.l.b16 %v5663
    %v5812 = vunpack.c.l.b16 %v5664
    %v5813 = vunpack.c.l.b16 %v5665
    %v5814 = vunpack.c.l.b16 %v5666
    %v5815 = vunpack.c.l.b16 %v5667
    %v5816 = vunpack.c.l.b16 %v5668
    %v5817 = vunpack.c.l.b16 %v5669
    %v5818 = vunpack.c.l.b16 %v5670
    %v5819 = vunpack.c.l.b16 %v5671
    %v5820 = vunpack.c.l.b16 %v5672
    %v5821 = vunpack.c.l.b16 %v5673
    %v5822 = vunpack.c.l.b16 %v5674
    %v5823 = vunpack.c.l.b16 %v5675
    %v5824 = vunpack.c.l.b16 %v5676
    %v5825 = vunpack.c.l.b16 %v5677
    %v5826 = vunpack.c.l.b16 %v5678
    %v5827 = vunpack.c.l.b16 %v5679
    %v5828 = vpack.c.b16 %v5765, %v5764
    %v5829 = vpack.c.b16 %v5767, %v5766
    %v5830 = vpack.c.b16 %v5769, %v5768
    %v5831 = vpack.c.b16 %v5771, %v5770
    %v5832 = vpack.c.b16 %v5773, %v5772
    %v5833 = vpack.c.b16 %v5775, %v5774
    %v5834 = vpack.c.b16 %v5777, %v5776
    %v5835 = vpack.c.b16 %v5779, %v5778
    %v5836 = vpack.c.b16 %v5781, %v5780
    %v5837 = vpack.c.b16 %v5783, %v5782
    %v5838 = vpack.c.b16 %v5785, %v5784
    %v5839 = vpack.c.b16 %v5787, %v5786
    %v5840 = vpack.c.b16 %v5789, %v5788
    %v5841 = vpack.c.b16 %v5791, %v5790
    %v5842 = vpack.c.b16 %v5793, %v5792
    %v5843 = vpack.c.b16 %v5795, %v5794
    %v5844 = vpack.c.b16 %v5797, %v5796
    %v5845 = vpack.c.b16 %v5799, %v5798
    %v5846 = vpack.c.b16 %v5801, %v5800
    %v5847 = vpack.c.b16 %v5803, %v5802
    %v5848 = vpack.c.b16 %v5805, %v5804
    %v5849 = vpack.c.b16 %v5807, %v5806
    %v5850 = vpack.c.b16 %v5809, %v5808
    %v5851 = vpack.c.b16 %v5811, %v5810
    %v5852 = vpack.c.b16 %v5813, %v5812
    %v5853 = vpack.c.b16 %v5815, %v5814
    %v5854 = vpack.c.b16 %v5817, %v5816
    %v5855 = vpack.c.b16 %v5819, %v5818
    %v5856 = vpack.c.b16 %v5821, %v5820
    %v5857 = vpack.c.b16 %v5823, %v5822
    %v5858 = vpack.c.b16 %v5825, %v5824
    %v5859 = vpack.c.b16 %v5827, %v5826
    %5892 = vmatpush.bf16.msra.mxu0 %v5835
    %5893 = vmatpush.bf16.msra.mxu0 %v5834
    %5894 = vmatpush.bf16.msra.mxu0 %v5833
    %5895 = vmatpush.bf16.msra.mxu0 %v5832
    %5896 = vmatpush.bf16.msra.mxu0 %v5831
    %5897 = vmatpush.bf16.msra.mxu0 %v5830
    %5898 = vmatpush.bf16.msra.mxu0 %v5829
    %5899 = vmatpush.bf16.msra.mxu0 %v5828
    %5900 = vmatmul.bf16.gmra.mxu0 %v5692
    %v5901 = vpop.f32.mrf.mxu0
    %v5902 = vadd.f32 0.0, %v5901
    %v5903 = vpop.f32.mrf.mxu0
    %v5904 = vadd.f32 0.0, %v5903
    %5905 = vdwg.mxu0
    %5906 = vmatpush.bf16.msra.mxu0 %v5843
    %5907 = vmatpush.bf16.msra.mxu0 %v5842
    %5908 = vmatpush.bf16.msra.mxu0 %v5841
    %5909 = vmatpush.bf16.msra.mxu0 %v5840
    %5910 = vmatpush.bf16.msra.mxu0 %v5839
    %5911 = vmatpush.bf16.msra.mxu0 %v5838
    %5912 = vmatpush.bf16.msra.mxu0 %v5837
    %5913 = vmatpush.bf16.msra.mxu0 %v5836
    %5914 = vmatmul.bf16.gmra.mxu0 %v5693
    %v5915 = vpop.f32.mrf.mxu0
    %v5916 = vadd.f32 %v5902, %v5915
    %v5917 = vpop.f32.mrf.mxu0
    %v5918 = vadd.f32 %v5904, %v5917
    %5919 = vdwg.mxu0
    %5920 = vmatpush.bf16.msra.mxu0 %v5851
    %5921 = vmatpush.bf16.msra.mxu0 %v5850
    %5922 = vmatpush.bf16.msra.mxu0 %v5849
    %5923 = vmatpush.bf16.msra.mxu0 %v5848
    %5924 = vmatpush.bf16.msra.mxu0 %v5847
    %5925 = vmatpush.bf16.msra.mxu0 %v5846
    %5926 = vmatpush.bf16.msra.mxu0 %v5845
    %5927 = vmatpush.bf16.msra.mxu0 %v5844
    %5928 = vmatmul.bf16.gmra.mxu0 %v5694
    %v5929 = vpop.f32.mrf.mxu0
    %v5930 = vadd.f32 %v5916, %v5929
    %v5931 = vpop.f32.mrf.mxu0
    %v5932 = vadd.f32 %v5918, %v5931
    %5933 = vdwg.mxu0
    %5934 = vmatpush.bf16.msra.mxu0 %v5859
    %5935 = vmatpush.bf16.msra.mxu0 %v5858
    %5936 = vmatpush.bf16.msra.mxu0 %v5857
    %5937 = vmatpush.bf16.msra.mxu0 %v5856
    %5938 = vmatpush.bf16.msra.mxu0 %v5855
    %5939 = vmatpush.bf16.msra.mxu0 %v5854
    %5940 = vmatpush.bf16.msra.mxu0 %v5853
    %5941 = vmatpush.bf16.msra.mxu0 %v5852
    %5942 = vmatmul.bf16.gmra.mxu0 %v5695
    %v5943 = vpop.f32.mrf.mxu0
    %v5944 = vadd.f32 %v5930, %v5943
    %v5945 = vpop.f32.mrf.mxu0
    %v5946 = vadd.f32 %v5932, %v5945
    %5947 = vdwg.mxu0
    %v5948 = vadd.f32 %v5609, %v5944
    %v5949 = vadd.f32 %v5610, %v5946
    %v5950 = vld [vmem:[#allocation2 + $0xe0] sm:$0xff]
    %v5951 = vld [vmem:[#allocation2 + $0xe8] sm:$0xff]
    %v5952 = vld [vmem:[#allocation2 + $0xf0] sm:$0xff]
    %v5953 = vld [vmem:[#allocation2 + $0xf8] sm:$0xff]
    %s5954 = scalar_lea.vmem [#allocation6], 1536
    %v5955 = vld [vmem:[%s5954] sm:$0xf]
    %v5956 = vld [vmem:[%s5954 + $0x4] sm:$0xf]
    %v5957 = vld [vmem:[%s5954 + $0x8] sm:$0xf]
    %v5958 = vld [vmem:[%s5954 + $0xc] sm:$0xf]
    %v5959 = vld [vmem:[%s5954 + $0x10] sm:$0xf]
    %v5960 = vld [vmem:[%s5954 + $0x14] sm:$0xf]
    %v5961 = vld [vmem:[%s5954 + $0x18] sm:$0xf]
    %v5962 = vld [vmem:[%s5954 + $0x1c] sm:$0xf]
    %v5963 = vld [vmem:[%s5954 + $0x20] sm:$0xf]
    %v5964 = vld [vmem:[%s5954 + $0x24] sm:$0xf]
    %v5965 = vld [vmem:[%s5954 + $0x28] sm:$0xf]
    %v5966 = vld [vmem:[%s5954 + $0x2c] sm:$0xf]
    %v5967 = vld [vmem:[%s5954 + $0x30] sm:$0xf]
    %v5968 = vld [vmem:[%s5954 + $0x34] sm:$0xf]
    %v5969 = vld [vmem:[%s5954 + $0x38] sm:$0xf]
    %v5970 = vld [vmem:[%s5954 + $0x3c] sm:$0xf]
    %v5971 = vld [vmem:[%s5954 + $0x40] sm:$0xf]
    %v5972 = vld [vmem:[%s5954 + $0x44] sm:$0xf]
    %v5973 = vld [vmem:[%s5954 + $0x48] sm:$0xf]
    %v5974 = vld [vmem:[%s5954 + $0x4c] sm:$0xf]
    %v5975 = vld [vmem:[%s5954 + $0x50] sm:$0xf]
    %v5976 = vld [vmem:[%s5954 + $0x54] sm:$0xf]
    %v5977 = vld [vmem:[%s5954 + $0x58] sm:$0xf]
    %v5978 = vld [vmem:[%s5954 + $0x5c] sm:$0xf]
    %v5979 = vld [vmem:[%s5954 + $0x60] sm:$0xf]
    %v5980 = vld [vmem:[%s5954 + $0x64] sm:$0xf]
    %v5981 = vld [vmem:[%s5954 + $0x68] sm:$0xf]
    %v5982 = vld [vmem:[%s5954 + $0x6c] sm:$0xf]
    %v5983 = vld [vmem:[%s5954 + $0x70] sm:$0xf]
    %v5984 = vld [vmem:[%s5954 + $0x74] sm:$0xf]
    %v5985 = vld [vmem:[%s5954 + $0x78] sm:$0xf]
    %v5986 = vld [vmem:[%s5954 + $0x7c] sm:$0xf]
    %v5987 = vld [vmem:[%s5954 + $0x80] sm:$0xf]
    %v5988 = vld [vmem:[%s5954 + $0x84] sm:$0xf]
    %v5989 = vld [vmem:[%s5954 + $0x88] sm:$0xf]
    %v5990 = vld [vmem:[%s5954 + $0x8c] sm:$0xf]
    %v5991 = vld [vmem:[%s5954 + $0x90] sm:$0xf]
    %v5992 = vld [vmem:[%s5954 + $0x94] sm:$0xf]
    %v5993 = vld [vmem:[%s5954 + $0x98] sm:$0xf]
    %v5994 = vld [vmem:[%s5954 + $0x9c] sm:$0xf]
    %v5995 = vld [vmem:[%s5954 + $0xa0] sm:$0xf]
    %v5996 = vld [vmem:[%s5954 + $0xa4] sm:$0xf]
    %v5997 = vld [vmem:[%s5954 + $0xa8] sm:$0xf]
    %v5998 = vld [vmem:[%s5954 + $0xac] sm:$0xf]
    %v5999 = vld [vmem:[%s5954 + $0xb0] sm:$0xf]
    %v6000 = vld [vmem:[%s5954 + $0xb4] sm:$0xf]
    %v6001 = vld [vmem:[%s5954 + $0xb8] sm:$0xf]
    %v6002 = vld [vmem:[%s5954 + $0xbc] sm:$0xf]
    %v6003 = vld [vmem:[%s5954 + $0xc0] sm:$0xf]
    %v6004 = vld [vmem:[%s5954 + $0xc4] sm:$0xf]
    %v6005 = vld [vmem:[%s5954 + $0xc8] sm:$0xf]
    %v6006 = vld [vmem:[%s5954 + $0xcc] sm:$0xf]
    %v6007 = vld [vmem:[%s5954 + $0xd0] sm:$0xf]
    %v6008 = vld [vmem:[%s5954 + $0xd4] sm:$0xf]
    %v6009 = vld [vmem:[%s5954 + $0xd8] sm:$0xf]
    %v6010 = vld [vmem:[%s5954 + $0xdc] sm:$0xf]
    %v6011 = vld [vmem:[%s5954 + $0xe0] sm:$0xf]
    %v6012 = vld [vmem:[%s5954 + $0xe4] sm:$0xf]
    %v6013 = vld [vmem:[%s5954 + $0xe8] sm:$0xf]
    %v6014 = vld [vmem:[%s5954 + $0xec] sm:$0xf]
    %v6015 = vld [vmem:[%s5954 + $0xf0] sm:$0xf]
    %v6016 = vld [vmem:[%s5954 + $0xf4] sm:$0xf]
    %v6017 = vld [vmem:[%s5954 + $0xf8] sm:$0xf]
    %v6018 = vld [vmem:[%s5954 + $0xfc] sm:$0xf]
    %v6023 = vunpack.c.l.b16 %v5950
    %v6024 = vunpack.c.h.b16 %v5950
    %v6025 = vunpack.c.l.b16 %v5951
    %v6026 = vunpack.c.h.b16 %v5951
    %v6027 = vunpack.c.l.b16 %v5952
    %v6028 = vunpack.c.h.b16 %v5952
    %v6029 = vunpack.c.l.b16 %v5953
    %v6030 = vunpack.c.h.b16 %v5953
    %v6031 = vpack.c.b16 %v6027, %v6023
    %v6032 = vpack.c.b16 %v6028, %v6024
    %v6033 = vpack.c.b16 %v6029, %v6025
    %v6034 = vpack.c.b16 %v6030, %v6026
    %v6103 = vunpack.c.l.b16 %v5955
    %v6104 = vunpack.c.l.b16 %v5956
    %v6105 = vunpack.c.l.b16 %v5957
    %v6106 = vunpack.c.l.b16 %v5958
    %v6107 = vunpack.c.l.b16 %v5959
    %v6108 = vunpack.c.l.b16 %v5960
    %v6109 = vunpack.c.l.b16 %v5961
    %v6110 = vunpack.c.l.b16 %v5962
    %v6111 = vunpack.c.l.b16 %v5963
    %v6112 = vunpack.c.l.b16 %v5964
    %v6113 = vunpack.c.l.b16 %v5965
    %v6114 = vunpack.c.l.b16 %v5966
    %v6115 = vunpack.c.l.b16 %v5967
    %v6116 = vunpack.c.l.b16 %v5968
    %v6117 = vunpack.c.l.b16 %v5969
    %v6118 = vunpack.c.l.b16 %v5970
    %v6119 = vunpack.c.l.b16 %v5971
    %v6120 = vunpack.c.l.b16 %v5972
    %v6121 = vunpack.c.l.b16 %v5973
    %v6122 = vunpack.c.l.b16 %v5974
    %v6123 = vunpack.c.l.b16 %v5975
    %v6124 = vunpack.c.l.b16 %v5976
    %v6125 = vunpack.c.l.b16 %v5977
    %v6126 = vunpack.c.l.b16 %v5978
    %v6127 = vunpack.c.l.b16 %v5979
    %v6128 = vunpack.c.l.b16 %v5980
    %v6129 = vunpack.c.l.b16 %v5981
    %v6130 = vunpack.c.l.b16 %v5982
    %v6131 = vunpack.c.l.b16 %v5983
    %v6132 = vunpack.c.l.b16 %v5984
    %v6133 = vunpack.c.l.b16 %v5985
    %v6134 = vunpack.c.l.b16 %v5986
    %v6135 = vunpack.c.l.b16 %v5987
    %v6136 = vunpack.c.l.b16 %v5988
    %v6137 = vunpack.c.l.b16 %v5989
    %v6138 = vunpack.c.l.b16 %v5990
    %v6139 = vunpack.c.l.b16 %v5991
    %v6140 = vunpack.c.l.b16 %v5992
    %v6141 = vunpack.c.l.b16 %v5993
    %v6142 = vunpack.c.l.b16 %v5994
    %v6143 = vunpack.c.l.b16 %v5995
    %v6144 = vunpack.c.l.b16 %v5996
    %v6145 = vunpack.c.l.b16 %v5997
    %v6146 = vunpack.c.l.b16 %v5998
    %v6147 = vunpack.c.l.b16 %v5999
    %v6148 = vunpack.c.l.b16 %v6000
    %v6149 = vunpack.c.l.b16 %v6001
    %v6150 = vunpack.c.l.b16 %v6002
    %v6151 = vunpack.c.l.b16 %v6003
    %v6152 = vunpack.c.l.b16 %v6004
    %v6153 = vunpack.c.l.b16 %v6005
    %v6154 = vunpack.c.l.b16 %v6006
    %v6155 = vunpack.c.l.b16 %v6007
    %v6156 = vunpack.c.l.b16 %v6008
    %v6157 = vunpack.c.l.b16 %v6009
    %v6158 = vunpack.c.l.b16 %v6010
    %v6159 = vunpack.c.l.b16 %v6011
    %v6160 = vunpack.c.l.b16 %v6012
    %v6161 = vunpack.c.l.b16 %v6013
    %v6162 = vunpack.c.l.b16 %v6014
    %v6163 = vunpack.c.l.b16 %v6015
    %v6164 = vunpack.c.l.b16 %v6016
    %v6165 = vunpack.c.l.b16 %v6017
    %v6166 = vunpack.c.l.b16 %v6018
    %v6167 = vpack.c.b16 %v6104, %v6103
    %v6168 = vpack.c.b16 %v6106, %v6105
    %v6169 = vpack.c.b16 %v6108, %v6107
    %v6170 = vpack.c.b16 %v6110, %v6109
    %v6171 = vpack.c.b16 %v6112, %v6111
    %v6172 = vpack.c.b16 %v6114, %v6113
    %v6173 = vpack.c.b16 %v6116, %v6115
    %v6174 = vpack.c.b16 %v6118, %v6117
    %v6175 = vpack.c.b16 %v6120, %v6119
    %v6176 = vpack.c.b16 %v6122, %v6121
    %v6177 = vpack.c.b16 %v6124, %v6123
    %v6178 = vpack.c.b16 %v6126, %v6125
    %v6179 = vpack.c.b16 %v6128, %v6127
    %v6180 = vpack.c.b16 %v6130, %v6129
    %v6181 = vpack.c.b16 %v6132, %v6131
    %v6182 = vpack.c.b16 %v6134, %v6133
    %v6183 = vpack.c.b16 %v6136, %v6135
    %v6184 = vpack.c.b16 %v6138, %v6137
    %v6185 = vpack.c.b16 %v6140, %v6139
    %v6186 = vpack.c.b16 %v6142, %v6141
    %v6187 = vpack.c.b16 %v6144, %v6143
    %v6188 = vpack.c.b16 %v6146, %v6145
    %v6189 = vpack.c.b16 %v6148, %v6147
    %v6190 = vpack.c.b16 %v6150, %v6149
    %v6191 = vpack.c.b16 %v6152, %v6151
    %v6192 = vpack.c.b16 %v6154, %v6153
    %v6193 = vpack.c.b16 %v6156, %v6155
    %v6194 = vpack.c.b16 %v6158, %v6157
    %v6195 = vpack.c.b16 %v6160, %v6159
    %v6196 = vpack.c.b16 %v6162, %v6161
    %v6197 = vpack.c.b16 %v6164, %v6163
    %v6198 = vpack.c.b16 %v6166, %v6165
    %6231 = vmatpush.bf16.msra.mxu0 %v6174
    %6232 = vmatpush.bf16.msra.mxu0 %v6173
    %6233 = vmatpush.bf16.msra.mxu0 %v6172
    %6234 = vmatpush.bf16.msra.mxu0 %v6171
    %6235 = vmatpush.bf16.msra.mxu0 %v6170
    %6236 = vmatpush.bf16.msra.mxu0 %v6169
    %6237 = vmatpush.bf16.msra.mxu0 %v6168
    %6238 = vmatpush.bf16.msra.mxu0 %v6167
    %6239 = vmatmul.bf16.gmra.mxu0 %v6031
    %v6240 = vpop.f32.mrf.mxu0
    %v6241 = vadd.f32 0.0, %v6240
    %v6242 = vpop.f32.mrf.mxu0
    %v6243 = vadd.f32 0.0, %v6242
    %6244 = vdwg.mxu0
    %6245 = vmatpush.bf16.msra.mxu0 %v6182
    %6246 = vmatpush.bf16.msra.mxu0 %v6181
    %6247 = vmatpush.bf16.msra.mxu0 %v6180
    %6248 = vmatpush.bf16.msra.mxu0 %v6179
    %6249 = vmatpush.bf16.msra.mxu0 %v6178
    %6250 = vmatpush.bf16.msra.mxu0 %v6177
    %6251 = vmatpush.bf16.msra.mxu0 %v6176
    %6252 = vmatpush.bf16.msra.mxu0 %v6175
    %6253 = vmatmul.bf16.gmra.mxu0 %v6032
    %v6254 = vpop.f32.mrf.mxu0
    %v6255 = vadd.f32 %v6241, %v6254
    %v6256 = vpop.f32.mrf.mxu0
    %v6257 = vadd.f32 %v6243, %v6256
    %6258 = vdwg.mxu0
    %6259 = vmatpush.bf16.msra.mxu0 %v6190
    %6260 = vmatpush.bf16.msra.mxu0 %v6189
    %6261 = vmatpush.bf16.msra.mxu0 %v6188
    %6262 = vmatpush.bf16.msra.mxu0 %v6187
    %6263 = vmatpush.bf16.msra.mxu0 %v6186
    %6264 = vmatpush.bf16.msra.mxu0 %v6185
    %6265 = vmatpush.bf16.msra.mxu0 %v6184
    %6266 = vmatpush.bf16.msra.mxu0 %v6183
    %6267 = vmatmul.bf16.gmra.mxu0 %v6033
    %v6268 = vpop.f32.mrf.mxu0
    %v6269 = vadd.f32 %v6255, %v6268
    %v6270 = vpop.f32.mrf.mxu0
    %v6271 = vadd.f32 %v6257, %v6270
    %6272 = vdwg.mxu0
    %6273 = vmatpush.bf16.msra.mxu0 %v6198
    %6274 = vmatpush.bf16.msra.mxu0 %v6197
    %6275 = vmatpush.bf16.msra.mxu0 %v6196
    %6276 = vmatpush.bf16.msra.mxu0 %v6195
    %6277 = vmatpush.bf16.msra.mxu0 %v6194
    %6278 = vmatpush.bf16.msra.mxu0 %v6193
    %6279 = vmatpush.bf16.msra.mxu0 %v6192
    %6280 = vmatpush.bf16.msra.mxu0 %v6191
    %6281 = vmatmul.bf16.gmra.mxu0 %v6034
    %v6282 = vpop.f32.mrf.mxu0
    %v6283 = vadd.f32 %v6269, %v6282
    %v6284 = vpop.f32.mrf.mxu0
    %v6285 = vadd.f32 %v6271, %v6284
    %6286 = vdwg.mxu0
    %v6287 = vadd.f32 %v5948, %v6283
    %v6288 = vadd.f32 %v5949, %v6285
    %v6289 = vld [vmem:[%s9] sm:$0x1]
    %v6291 = vperm.slane %v6289, 0
    %v6293 = vadd.f32 %v6287, %v6291
    %v6294 = vadd.f32 %v6288, %v6291
    %v6295 = vmax.f32 %v6293, 0.0
    %v6296 = vmax.f32 %v6294, 0.0
    %v6297 = vpack.c.bf16 %v6296, %v6295
    %v6298 = vld [vmem:[%s10] sm:$0xf]
    %v6299 = vld [vmem:[%s10 + $0x4] sm:$0xf]
    %v6300 = vld [vmem:[%s10 + $0x8] sm:$0xf]
    %v6301 = vld [vmem:[%s10 + $0xc] sm:$0xf]
    %v6302 = vld [vmem:[%s10 + $0x10] sm:$0xf]
    %v6303 = vld [vmem:[%s10 + $0x14] sm:$0xf]
    %v6304 = vld [vmem:[%s10 + $0x18] sm:$0xf]
    %v6305 = vld [vmem:[%s10 + $0x1c] sm:$0xf]
    %v6306 = vld [vmem:[%s10 + $0x20] sm:$0xf]
    %v6307 = vld [vmem:[%s10 + $0x24] sm:$0xf]
    %v6308 = vld [vmem:[%s10 + $0x28] sm:$0xf]
    %v6309 = vld [vmem:[%s10 + $0x2c] sm:$0xf]
    %v6310 = vld [vmem:[%s10 + $0x30] sm:$0xf]
    %v6311 = vld [vmem:[%s10 + $0x34] sm:$0xf]
    %v6312 = vld [vmem:[%s10 + $0x38] sm:$0xf]
    %v6313 = vld [vmem:[%s10 + $0x3c] sm:$0xf]
    %v6314 = vld [vmem:[%s11] sm:$0x1]
    %v6316 = vperm.slane %v6314, 0
    %v6334 = vunpack.c.l.b16 %v6298
    %v6335 = vunpack.c.l.b16 %v6299
    %v6336 = vunpack.c.l.b16 %v6300
    %v6337 = vunpack.c.l.b16 %v6301
    %v6338 = vunpack.c.l.b16 %v6302
    %v6339 = vunpack.c.l.b16 %v6303
    %v6340 = vunpack.c.l.b16 %v6304
    %v6341 = vunpack.c.l.b16 %v6305
    %v6342 = vunpack.c.l.b16 %v6306
    %v6343 = vunpack.c.l.b16 %v6307
    %v6344 = vunpack.c.l.b16 %v6308
    %v6345 = vunpack.c.l.b16 %v6309
    %v6346 = vunpack.c.l.b16 %v6310
    %v6347 = vunpack.c.l.b16 %v6311
    %v6348 = vunpack.c.l.b16 %v6312
    %v6349 = vunpack.c.l.b16 %v6313
    %v6350 = vpack.c.b16 %v6335, %v6334
    %v6351 = vpack.c.b16 %v6337, %v6336
    %v6352 = vpack.c.b16 %v6339, %v6338
    %v6353 = vpack.c.b16 %v6341, %v6340
    %v6354 = vpack.c.b16 %v6343, %v6342
    %v6355 = vpack.c.b16 %v6345, %v6344
    %v6356 = vpack.c.b16 %v6347, %v6346
    %v6357 = vpack.c.b16 %v6349, %v6348
    %6366 = vmatpush.bf16.msra.mxu0 %v6357
    %6367 = vmatpush.bf16.msra.mxu0 %v6356
    %6368 = vmatpush.bf16.msra.mxu0 %v6355
    %6369 = vmatpush.bf16.msra.mxu0 %v6354
    %6370 = vmatpush.bf16.msra.mxu0 %v6353
    %6371 = vmatpush.bf16.msra.mxu0 %v6352
    %6372 = vmatpush.bf16.msra.mxu0 %v6351
    %6373 = vmatpush.bf16.msra.mxu0 %v6350
    %6374 = vmatmul.bf16.gmra.mxu0 %v6297
    %v6375 = vpop.f32.mrf.mxu0
    %v6376 = vadd.f32 %v6316, %v6375
    %v6377 = vpop.f32.mrf.mxu0
    %v6378 = vadd.f32 %v6316, %v6377
    %6379 = vdwg.mxu0
    %v6380 = vmax.f32 %v6376, 0.0
    %v6381 = vmax.f32 %v6378, 0.0
    %v6382 = vpack.c.bf16 %v6381, %v6380
    %v6383 = vld [vmem:[%s12] sm:$0xf]
    %v6384 = vld [vmem:[%s12 + $0x4] sm:$0xf]
    %v6385 = vld [vmem:[%s12 + $0x8] sm:$0xf]
    %v6386 = vld [vmem:[%s12 + $0xc] sm:$0xf]
    %v6387 = vld [vmem:[%s12 + $0x10] sm:$0xf]
    %v6388 = vld [vmem:[%s12 + $0x14] sm:$0xf]
    %v6389 = vld [vmem:[%s12 + $0x18] sm:$0xf]
    %v6390 = vld [vmem:[%s12 + $0x1c] sm:$0xf]
    %v6391 = vld [vmem:[%s13] sm:$0x1]
    %v6393 = vperm.slane %v6391, 0
    %v6403 = vunpack.c.l.b16 %v6383
    %v6404 = vunpack.c.l.b16 %v6384
    %v6405 = vunpack.c.l.b16 %v6385
    %v6406 = vunpack.c.l.b16 %v6386
    %v6407 = vunpack.c.l.b16 %v6387
    %v6408 = vunpack.c.l.b16 %v6388
    %v6409 = vunpack.c.l.b16 %v6389
    %v6410 = vunpack.c.l.b16 %v6390
    %v6411 = vpack.c.b16 %v6404, %v6403
    %v6412 = vpack.c.b16 %v6406, %v6405
    %v6413 = vpack.c.b16 %v6408, %v6407
    %v6414 = vpack.c.b16 %v6410, %v6409
    %vm6419 = vcmask 523264
    %v6421 = vsel %vm6419, %v6382, 0
    %6423 = vmatpush.bf16.msra.mxu0 0
    %6424 = vmatpush.bf16.msra.mxu0 0
    %6425 = vmatpush.bf16.msra.mxu0 0
    %6426 = vmatpush.bf16.msra.mxu0 0
    %6427 = vmatpush.bf16.msra.mxu0 %v6414
    %6428 = vmatpush.bf16.msra.mxu0 %v6413
    %6429 = vmatpush.bf16.msra.mxu0 %v6412
    %6430 = vmatpush.bf16.msra.mxu0 %v6411
    %6431 = vmatmul.bf16.gmra.mxu0 %v6421
    %v6432 = vpop.f32.mrf.mxu0
    %v6433 = vadd.f32 %v6393, %v6432
    %v6434 = vpop.f32.mrf.mxu0
    %v6435 = vadd.f32 %v6393, %v6434
    %6436 = vdwg.mxu0
    %6437 = vst [vmem:[%s14] sm:$0xff] %v6433
    %6438 = vst [vmem:[%s14 + $0x8] sm:$0xff] %v6435
    // Predicated region
    $region66: #{forward.1} parent=1 // pred_check
      _
    $region67: #{forward.1} parent=1 // pred_check_branch
      %6440 = sbr.rel (0) target = $region69
    $region68: #{forward.1} parent=1 // pred_region
      _
    $region69: #{forward.1} parent=1 // pred_fallthru
      _
    // Predicated region
    $region70: #{forward.1} parent=1 // pred_check
      _
    $region71: #{forward.1} parent=1 // pred_check_branch
      %6442 = sbr.rel (0) target = $region73
    $region72: #{forward.1} parent=1 // pred_region
      _
    $region73: #{forward.1} parent=1 // pred_fallthru
      _
    %6443 = vsyncpa [#allocation5], 1
    %6444 = vsyncpa [#allocation7], 1

</llo_original>
